<compile_context>
chip_gen: v7x
topology: tpu7x:2x2x1
jax: 0.10.0
libtpu: 0.0.40
codegen_flags: <defaults>
</compile_context>

<pallas_src>
import functools

import jax
import jax.numpy as jnp
from jax.experimental import pallas as pl
from jax.experimental.pallas import tpu as pltpu

_GUARD = 8  # zero guard rows at each end of the stage-1 buffer (keeps interior store 8-aligned)


def _round_up(x, m):
    return (x + m - 1) // m * m


def _bottleneck_kernel(x_ref, w1_ref, w2_ref, s1_ref, b1_ref, s2_ref, b2_ref,
                       o_ref, p_ref, acc_ref, *, H, W):
    """Fused Bottleneck forward for one image (one grid step).

    x_ref  : (1, H*W, Cin)                 bf16  channels-last rows
    w1_ref : (Cin, ICp)                    bf16  1x1 conv weight (channel padded)
    w2_ref : (9, ICp, GP)                  bf16  3x3 taps, tap index = ky*3 + kx
    s1/b1  : (1, ICp) f32, s2/b2 : (1, GP) f32  folded eval-mode BN scale/shift
    o_ref  : (1, H*W, GP)                  f32   lane-dense stage-2 output
    p_ref  : (2*GUARD + (H+2)*W, ICp)      bf16  scratch: stage-1 result, zero-padded in H
    acc_ref: (H*W, GP)                     f32   scratch: stage-2 accumulator
    """
    HW = H * W

    # ---- stage 1: 1x1 conv + BN1 + ReLU (single large-M MXU matmul) ----
    y1 = jnp.dot(x_ref[0], w1_ref[...], preferred_element_type=jnp.float32)
    y1 = jnp.maximum(y1 * s1_ref[...] + b1_ref[...], 0.0)

    # Stage-1 result stays in VMEM only. Zero the buffer (guard + H-padding rows
    # must read as zeros), then write the interior with one aligned store.
    p_ref[...] = jnp.zeros_like(p_ref)
    p_ref[pl.ds(_GUARD + W, HW), :] = y1.astype(p_ref.dtype)

    # ---- stage 2: 3x3 conv (pad=1) as 9 shifted matmuls, fp32 accumulation ----
    # Width padding handled by masking the column-shifted taps at the image border.
    col = jax.lax.broadcasted_iota(jnp.int32, (HW, 1), 0) % W
    mask_l = (col > 0).astype(jnp.float32)       # kx == 0 tap reads w-1: invalid at w == 0
    mask_r = (col < W - 1).astype(jnp.float32)   # kx == 2 tap reads w+1: invalid at w == W-1

    for idx in range(9):
        ky, kx = divmod(idx, 3)
        off = _GUARD + ky * W + (kx - 1)                       # static sublane offset
        patch = p_ref[pl.ds(off, HW), :]                       # (HW, ICp) bf16
        contrib = jnp.dot(patch, w2_ref[idx], preferred_element_type=jnp.float32)
        if kx == 0:
            contrib = contrib * mask_l
        elif kx == 2:
            contrib = contrib * mask_r
        if idx == 0:
            acc_ref[...] = contrib
        else:
            acc_ref[...] += contrib

    # ---- BN2 + ReLU epilogue, lane-dense (GP = multiple of 128) store ----
    y2 = jnp.maximum(acc_ref[...] * s2_ref[...] + b2_ref[...], 0.0)
    o_ref[0, :, :] = y2.astype(o_ref.dtype)


def bottleneck_forward(x, params):
    """x: (N, C, H, W) float32 NCHW (PyTorch convention). Returns (N, C+growth, H, W)."""
    N, C, H, W = x.shape
    w1_t = params["conv1_w"]   # (interC, C, 1, 1)  torch layout
    w2_t = params["conv2_w"]   # (growth, interC, 3, 3)  torch layout
    interC = w1_t.shape[0]
    growth = w2_t.shape[0]
    eps = 1e-5

    ICp = _round_up(interC, 128)   # lane-dense intermediate channel count
    GP = _round_up(growth, 128)    # lane-dense output channel count

    # Fold eval-mode BatchNorm into per-channel scale/shift; padded channels -> 0.
    scale1 = params["bn1_g"] / jnp.sqrt(params["bn1_v"] + eps)
    shift1 = params["bn1_b"] - params["bn1_m"] * scale1
    scale2 = params["bn2_g"] / jnp.sqrt(params["bn2_v"] + eps)
    shift2 = params["bn2_b"] - params["bn2_m"] * scale2

    def pad_vec(v, n):
        return jnp.zeros((1, n), jnp.float32).at[0, :v.shape[0]].set(v)

    s1 = pad_vec(scale1, ICp)
    b1 = pad_vec(shift1, ICp)
    s2 = pad_vec(scale2, GP)
    b2 = pad_vec(shift2, GP)

    # Weights: channel-padded, bf16 MXU operands.
    w1 = jnp.zeros((C, ICp), jnp.bfloat16).at[:, :interC].set(
        w1_t.reshape(interC, C).T.astype(jnp.bfloat16))
    w2 = jnp.zeros((9, ICp, GP), jnp.bfloat16).at[:, :interC, :growth].set(
        jnp.transpose(w2_t, (2, 3, 1, 0)).reshape(9, interC, growth).astype(jnp.bfloat16))

    # NCHW -> (N, H*W, C) channels-last rows, bf16 (halves HBM read of activations).
    x_rows = jnp.transpose(x, (0, 2, 3, 1)).reshape(N, H * W, C).astype(jnp.bfloat16)

    p_rows = (H + 2) * W + 2 * _GUARD
    kernel = functools.partial(_bottleneck_kernel, H=H, W=W)

    out2_rows = pl.pallas_call(
        kernel,
        out_shape=jax.ShapeDtypeStruct((N, H * W, GP), jnp.float32),
        grid_spec=pltpu.PrefetchScalarGridSpec(
            num_scalar_prefetch=0,
            grid=(N,),
            in_specs=[
                pl.BlockSpec((1, H * W, C), lambda n: (n, 0, 0)),   # x rows for image n
                pl.BlockSpec((C, ICp), lambda n: (0, 0)),           # w1 (resident, not re-fetched)
                pl.BlockSpec((9, ICp, GP), lambda n: (0, 0, 0)),    # w2
                pl.BlockSpec((1, ICp), lambda n: (0, 0)),           # bn1 scale
                pl.BlockSpec((1, ICp), lambda n: (0, 0)),           # bn1 shift
                pl.BlockSpec((1, GP), lambda n: (0, 0)),            # bn2 scale
                pl.BlockSpec((1, GP), lambda n: (0, 0)),            # bn2 shift
            ],
            out_specs=pl.BlockSpec((1, H * W, GP), lambda n: (n, 0, 0)),
            scratch_shapes=[
                pltpu.VMEM((p_rows, ICp), jnp.bfloat16),   # H-padded stage-1 buffer
                pltpu.VMEM((H * W, GP), jnp.float32),      # stage-2 fp32 accumulator
            ],
        ),
        compiler_params=pltpu.CompilerParams(
            dimension_semantics=("parallel",),          # shard batch across v7x's 2 TCs
            vmem_limit_bytes=32 * 1024 * 1024,          # explicit scoped VMEM (v5e/v7x safe)
        ),
    )(x_rows, w1, w2, s1, b1, s2, b2)

    # Drop channel padding, back to NCHW, concat with the input (PyTorch NCHW contract).
    out2 = out2_rows[:, :, :growth].reshape(N, H, W, growth)
    out2_nchw = jnp.transpose(out2, (0, 3, 1, 2))
    return jnp.concatenate([x, out2_nchw], axis=1)


def _reference_forward(x, params):
    """Plain-JAX reference (fp32) of the eval-mode Bottleneck forward."""
    eps = 1e-5
    w1 = params["conv1_w"][:, :, 0, 0]                      # (interC, C)
    out1 = jnp.einsum("nchw,oc->nohw", x, w1)
    s1 = params["bn1_g"] / jnp.sqrt(params["bn1_v"] + eps)
    sh1 = params["bn1_b"] - params["bn1_m"] * s1
    out1 = jax.nn.relu(out1 * s1[None, :, None, None] + sh1[None, :, None, None])
    out2 = jax.lax.conv_general_dilated(
        out1, params["conv2_w"], window_strides=(1, 1), padding=((1, 1), (1, 1)),
        dimension_numbers=("NCHW", "OIHW", "NCHW"))
    s2 = params["bn2_g"] / jnp.sqrt(params["bn2_v"] + eps)
    sh2 = params["bn2_b"] - params["bn2_m"] * s2
    out2 = jax.nn.relu(out2 * s2[None, :, None, None] + sh2[None, :, None, None])
    return jnp.concatenate([x, out2], axis=1)


def make_params(key, nChannels, growthRate):
    interC = 4 * growthRate
    ks = jax.random.split(key, 10)
    return {
        # conv weights, torch layout (out, in, kh, kw)
        "conv1_w": jax.random.normal(ks[0], (interC, nChannels, 1, 1), jnp.float32) * 0.2,
        "conv2_w": jax.random.normal(ks[1], (growthRate, interC, 3, 3), jnp.float32) * 0.1,
        # bn1 params (on interC channels)
        "bn1_g": 1.0 + 0.1 * jax.random.normal(ks[2], (interC,), jnp.float32),
        "bn1_b": 0.1 * jax.random.normal(ks[3], (interC,), jnp.float32),
        "bn1_m": 0.1 * jax.random.normal(ks[4], (interC,), jnp.float32),
        "bn1_v": 1.0 + 0.1 * jnp.abs(jax.random.normal(ks[5], (interC,), jnp.float32)),
        # bn2 params (on growthRate channels)
        "bn2_g": 1.0 + 0.1 * jax.random.normal(ks[6], (growthRate,), jnp.float32),
        "bn2_b": 0.1 * jax.random.normal(ks[7], (growthRate,), jnp.float32),
        "bn2_m": 0.1 * jax.random.normal(ks[8], (growthRate,), jnp.float32),
        "bn2_v": 1.0 + 0.1 * jnp.abs(jax.random.normal(ks[9], (growthRate,), jnp.float32)),
    }


if __name__ == "__main__":
    key = jax.random.PRNGKey(0)
    kx, kp = jax.random.split(key)

    N, nChannels, H, W = 2, 4, 16, 16
    growthRate = 4  # interChannels = 16; use_dropout = False

    x = jax.random.normal(kx, (N, nChannels, H, W), jnp.float32)
    params = make_params(kp, nChannels, growthRate)

    out = jax.block_until_ready(jax.jit(bottleneck_forward)(x, params))
    assert out.shape == (N, nChannels + growthRate, H, W), out.shape

    ref = jax.block_until_ready(_reference_forward(x, params))
    max_err = float(jnp.max(jnp.abs(out - ref)))
    # bf16 MXU operands with fp32 accumulation -> small numerical difference vs fp32 ref.
    assert max_err < 1e-1, f"max abs error vs reference: {max_err}"

    print("KERNEL_OK")
</pallas_src>

<mosaic_0001>
module attributes {stable_mosaic.version = 11 : i64} {
  func.func @_bottleneck_kernel(%arg0: i32, %arg1: memref<1x256x4xbf16, #tpu.memory_space<vmem>>, %arg2: memref<4x128xbf16, #tpu.memory_space<vmem>>, %arg3: memref<9x128x128xbf16, #tpu.memory_space<vmem>>, %arg4: memref<1x128xf32, #tpu.memory_space<vmem>>, %arg5: memref<1x128xf32, #tpu.memory_space<vmem>>, %arg6: memref<1x128xf32, #tpu.memory_space<vmem>>, %arg7: memref<1x128xf32, #tpu.memory_space<vmem>>, %arg8: memref<1x256x128xf32, #tpu.memory_space<vmem>>, %arg9: memref<304x128xbf16, #tpu.memory_space<vmem>>, %arg10: memref<256x128xf32, #tpu.memory_space<vmem>>) attributes {dimension_semantics = [#tpu.dimension_semantics<parallel>], iteration_bounds = array<i64: 2>, scalar_prefetch = 0 : i64, scratch_operands = 2 : i64, tpu.core_type = #tpu.core_type<tc>, window_params = [{transform_indices = @transform_0, window_bounds = array<i64: 1, 256, 4>}, {pipeline_mode = #tpu.pipeline_mode<synchronous>, transform_indices = @transform_1, window_bounds = array<i64: 4, 128>}, {pipeline_mode = #tpu.pipeline_mode<synchronous>, transform_indices = @transform_2, window_bounds = array<i64: 9, 128, 128>}, {pipeline_mode = #tpu.pipeline_mode<synchronous>, transform_indices = @transform_3, window_bounds = array<i64: 1, 128>}, {pipeline_mode = #tpu.pipeline_mode<synchronous>, transform_indices = @transform_4, window_bounds = array<i64: 1, 128>}, {pipeline_mode = #tpu.pipeline_mode<synchronous>, transform_indices = @transform_5, window_bounds = array<i64: 1, 128>}, {pipeline_mode = #tpu.pipeline_mode<synchronous>, transform_indices = @transform_6, window_bounds = array<i64: 1, 128>}, {transform_indices = @transform_7, window_bounds = array<i64: 1, 256, 128>}]} {
    %c0 = arith.constant 0 : index
    %c0_0 = arith.constant 0 : index
    %c0_1 = arith.constant 0 : index
    %0 = vector.load %arg1[%c0, %c0_0, %c0_1] : memref<1x256x4xbf16, #tpu.memory_space<vmem>>, vector<1x256x4xbf16>
    %1 = vector.shape_cast %0 : vector<1x256x4xbf16> to vector<256x4xbf16>
    %c0_2 = arith.constant 0 : index
    %c0_3 = arith.constant 0 : index
    %2 = vector.load %arg2[%c0_2, %c0_3] : memref<4x128xbf16, #tpu.memory_space<vmem>>, vector<4x128xbf16>
    %cst = arith.constant dense<0.000000e+00> : vector<256x128xf32>
    %3 = tpu.matmul %1, %2, %cst {dimension_numbers = #tpu.dot_dimension_numbers<[1], [0], [0], [1], [0, 0, 1, 1], [], []>} : vector<256x4xbf16>, vector<4x128xbf16>, vector<256x128xf32> -> vector<256x128xf32>
    %c0_4 = arith.constant 0 : index
    %c0_5 = arith.constant 0 : index
    %4 = vector.load %arg4[%c0_4, %c0_5] : memref<1x128xf32, #tpu.memory_space<vmem>>, vector<1x128xf32>
    %5 = vector.broadcast %4 : vector<1x128xf32> to vector<256x128xf32>
    %6 = arith.mulf %3, %5 : vector<256x128xf32>
    %c0_6 = arith.constant 0 : index
    %c0_7 = arith.constant 0 : index
    %7 = vector.load %arg5[%c0_6, %c0_7] : memref<1x128xf32, #tpu.memory_space<vmem>>, vector<1x128xf32>
    %8 = vector.broadcast %7 : vector<1x128xf32> to vector<256x128xf32>
    %9 = arith.addf %6, %8 : vector<256x128xf32>
    %cst_8 = arith.constant 0.000000e+00 : f32
    %10 = vector.broadcast %cst_8 : f32 to vector<256x128xf32>
    %11 = arith.maximumf %9, %10 : vector<256x128xf32>
    %cst_9 = arith.constant 0.000000e+00 : bf16
    %12 = vector.broadcast %cst_9 : bf16 to vector<304x128xbf16>
    %c0_10 = arith.constant 0 : index
    %c0_11 = arith.constant 0 : index
    %13 = vector.load %arg9[%c0_10, %c0_11] : memref<304x128xbf16, #tpu.memory_space<vmem>>, vector<304x128xbf16>
    tpu.vector_store %arg9[%c0_10, %c0_11], %12 {strides = array<i32>} : memref<304x128xbf16, #tpu.memory_space<vmem>>, vector<304x128xbf16>,
    %14 = arith.truncf %11 : vector<256x128xf32> to vector<256x128xbf16>
    %c24 = arith.constant 24 : index
    %c0_12 = arith.constant 0 : index
    %15 = vector.load %arg9[%c24, %c0_12] : memref<304x128xbf16, #tpu.memory_space<vmem>>, vector<256x128xbf16>
    tpu.vector_store %arg9[%c24, %c0_12], %14 {strides = array<i32>} : memref<304x128xbf16, #tpu.memory_space<vmem>>, vector<256x128xbf16>,
    %16 = tpu.iota {dimensions = array<i32: 0>} : vector<256x1xi32>
    %c16_i32 = arith.constant 16 : i32
    %c0_i32 = arith.constant 0 : i32
    %17 = arith.cmpi eq, %c16_i32, %c0_i32 : i32
    %c1_i32 = arith.constant 1 : i32
    %18 = arith.select %17, %c1_i32, %c16_i32 : i32
    %19 = vector.broadcast %18 : i32 to vector<256x1xi32>
    %20 = arith.remsi %16, %19 : vector<256x1xi32>
    %c0_i32_13 = arith.constant 0 : i32
    %21 = vector.broadcast %c0_i32_13 : i32 to vector<256x1xi32>
    %22 = arith.cmpi ne, %20, %21 : vector<256x1xi32>
    %c0_i32_14 = arith.constant 0 : i32
    %23 = vector.broadcast %c0_i32_14 : i32 to vector<256x1xi32>
    %24 = arith.cmpi slt, %20, %23 : vector<256x1xi32>
    %c0_i32_15 = arith.constant 0 : i32
    %25 = arith.cmpi slt, %18, %c0_i32_15 : i32
    %26 = vector.broadcast %25 : i1 to vector<256x1xi1>
    %27 = vector.broadcast %26 : vector<256x1xi1> to vector<256x1xi1>
    %28 = arith.xori %24, %27 : vector<256x1xi1>
    %29 = arith.andi %28, %22 : vector<256x1xi1>
    %30 = vector.broadcast %18 : i32 to vector<256x1xi32>
    %31 = arith.addi %20, %30 : vector<256x1xi32>
    %32 = arith.select %29, %31, %20 : vector<256x1xi1>, vector<256x1xi32>
    %c0_i32_16 = arith.constant 0 : i32
    %33 = vector.broadcast %c0_i32_16 : i32 to vector<256x1xi32>
    %34 = arith.cmpi sgt, %32, %33 : vector<256x1xi32>
    %35 = arith.extui %34 : vector<256x1xi1> to vector<256x1xi32>
    %36 = arith.sitofp %35 : vector<256x1xi32> to vector<256x1xf32>
    %c15_i32 = arith.constant 15 : i32
    %37 = vector.broadcast %c15_i32 : i32 to vector<256x1xi32>
    %38 = arith.cmpi slt, %32, %37 : vector<256x1xi32>
    %39 = arith.extui %38 : vector<256x1xi1> to vector<256x1xi32>
    %40 = arith.sitofp %39 : vector<256x1xi32> to vector<256x1xf32>
    %c7 = arith.constant 7 : index
    %c0_17 = arith.constant 0 : index
    %41 = vector.load %arg9[%c7, %c0_17] : memref<304x128xbf16, #tpu.memory_space<vmem>>, vector<256x128xbf16>
    %c0_18 = arith.constant 0 : index
    %c0_19 = arith.constant 0 : index
    %c0_20 = arith.constant 0 : index
    %42 = vector.load %arg3[%c0_18, %c0_19, %c0_20] : memref<9x128x128xbf16, #tpu.memory_space<vmem>>, vector<1x128x128xbf16>
    %43 = vector.shape_cast %42 : vector<1x128x128xbf16> to vector<128x128xbf16>
    %cst_21 = arith.constant dense<0.000000e+00> : vector<256x128xf32>
    %44 = tpu.matmul %41, %43, %cst_21 {dimension_numbers = #tpu.dot_dimension_numbers<[1], [0], [0], [1], [0, 0, 1, 1], [], []>} : vector<256x128xbf16>, vector<128x128xbf16>, vector<256x128xf32> -> vector<256x128xf32>
    %45 = vector.broadcast %36 : vector<256x1xf32> to vector<256x128xf32>
    %46 = arith.mulf %44, %45 : vector<256x128xf32>
    %c0_22 = arith.constant 0 : index
    %c0_23 = arith.constant 0 : index
    %47 = vector.load %arg10[%c0_22, %c0_23] : memref<256x128xf32, #tpu.memory_space<vmem>>, vector<256x128xf32>
    tpu.vector_store %arg10[%c0_22, %c0_23], %46 {strides = array<i32>} : memref<256x128xf32, #tpu.memory_space<vmem>>, vector<256x128xf32>,
    %c8 = arith.constant 8 : index
    %c0_24 = arith.constant 0 : index
    %48 = vector.load %arg9[%c8, %c0_24] : memref<304x128xbf16, #tpu.memory_space<vmem>>, vector<256x128xbf16>
    %c1 = arith.constant 1 : index
    %c0_25 = arith.constant 0 : index
    %c0_26 = arith.constant 0 : index
    %49 = vector.load %arg3[%c1, %c0_25, %c0_26] : memref<9x128x128xbf16, #tpu.memory_space<vmem>>, vector<1x128x128xbf16>
    %50 = vector.shape_cast %49 : vector<1x128x128xbf16> to vector<128x128xbf16>
    %cst_27 = arith.constant dense<0.000000e+00> : vector<256x128xf32>
    %51 = tpu.matmul %48, %50, %cst_27 {dimension_numbers = #tpu.dot_dimension_numbers<[1], [0], [0], [1], [0, 0, 1, 1], [], []>} : vector<256x128xbf16>, vector<128x128xbf16>, vector<256x128xf32> -> vector<256x128xf32>
    %c0_28 = arith.constant 0 : index
    %c0_29 = arith.constant 0 : index
    %52 = vector.load %arg10[%c0_28, %c0_29] : memref<256x128xf32, #tpu.memory_space<vmem>>, vector<256x128xf32>
    %53 = arith.addf %52, %51 : vector<256x128xf32>
    %c0_30 = arith.constant 0 : index
    %c0_31 = arith.constant 0 : index
    %54 = vector.load %arg10[%c0_30, %c0_31] : memref<256x128xf32, #tpu.memory_space<vmem>>, vector<256x128xf32>
    tpu.vector_store %arg10[%c0_30, %c0_31], %53 {strides = array<i32>} : memref<256x128xf32, #tpu.memory_space<vmem>>, vector<256x128xf32>,
    %c9 = arith.constant 9 : index
    %c0_32 = arith.constant 0 : index
    %55 = vector.load %arg9[%c9, %c0_32] : memref<304x128xbf16, #tpu.memory_space<vmem>>, vector<256x128xbf16>
    %c2 = arith.constant 2 : index
    %c0_33 = arith.constant 0 : index
    %c0_34 = arith.constant 0 : index
    %56 = vector.load %arg3[%c2, %c0_33, %c0_34] : memref<9x128x128xbf16, #tpu.memory_space<vmem>>, vector<1x128x128xbf16>
    %57 = vector.shape_cast %56 : vector<1x128x128xbf16> to vector<128x128xbf16>
    %cst_35 = arith.constant dense<0.000000e+00> : vector<256x128xf32>
    %58 = tpu.matmul %55, %57, %cst_35 {dimension_numbers = #tpu.dot_dimension_numbers<[1], [0], [0], [1], [0, 0, 1, 1], [], []>} : vector<256x128xbf16>, vector<128x128xbf16>, vector<256x128xf32> -> vector<256x128xf32>
    %59 = vector.broadcast %40 : vector<256x1xf32> to vector<256x128xf32>
    %60 = arith.mulf %58, %59 : vector<256x128xf32>
    %c0_36 = arith.constant 0 : index
    %c0_37 = arith.constant 0 : index
    %61 = vector.load %arg10[%c0_36, %c0_37] : memref<256x128xf32, #tpu.memory_space<vmem>>, vector<256x128xf32>
    %62 = arith.addf %61, %60 : vector<256x128xf32>
    %c0_38 = arith.constant 0 : index
    %c0_39 = arith.constant 0 : index
    %63 = vector.load %arg10[%c0_38, %c0_39] : memref<256x128xf32, #tpu.memory_space<vmem>>, vector<256x128xf32>
    tpu.vector_store %arg10[%c0_38, %c0_39], %62 {strides = array<i32>} : memref<256x128xf32, #tpu.memory_space<vmem>>, vector<256x128xf32>,
    %c23 = arith.constant 23 : index
    %c0_40 = arith.constant 0 : index
    %64 = vector.load %arg9[%c23, %c0_40] : memref<304x128xbf16, #tpu.memory_space<vmem>>, vector<256x128xbf16>
    %c3 = arith.constant 3 : index
    %c0_41 = arith.constant 0 : index
    %c0_42 = arith.constant 0 : index
    %65 = vector.load %arg3[%c3, %c0_41, %c0_42] : memref<9x128x128xbf16, #tpu.memory_space<vmem>>, vector<1x128x128xbf16>
    %66 = vector.shape_cast %65 : vector<1x128x128xbf16> to vector<128x128xbf16>
    %cst_43 = arith.constant dense<0.000000e+00> : vector<256x128xf32>
    %67 = tpu.matmul %64, %66, %cst_43 {dimension_numbers = #tpu.dot_dimension_numbers<[1], [0], [0], [1], [0, 0, 1, 1], [], []>} : vector<256x128xbf16>, vector<128x128xbf16>, vector<256x128xf32> -> vector<256x128xf32>
    %68 = vector.broadcast %36 : vector<256x1xf32> to vector<256x128xf32>
    %69 = arith.mulf %67, %68 : vector<256x128xf32>
    %c0_44 = arith.constant 0 : index
    %c0_45 = arith.constant 0 : index
    %70 = vector.load %arg10[%c0_44, %c0_45] : memref<256x128xf32, #tpu.memory_space<vmem>>, vector<256x128xf32>
    %71 = arith.addf %70, %69 : vector<256x128xf32>
    %c0_46 = arith.constant 0 : index
    %c0_47 = arith.constant 0 : index
    %72 = vector.load %arg10[%c0_46, %c0_47] : memref<256x128xf32, #tpu.memory_space<vmem>>, vector<256x128xf32>
    tpu.vector_store %arg10[%c0_46, %c0_47], %71 {strides = array<i32>} : memref<256x128xf32, #tpu.memory_space<vmem>>, vector<256x128xf32>,
    %c24_48 = arith.constant 24 : index
    %c0_49 = arith.constant 0 : index
    %73 = vector.load %arg9[%c24_48, %c0_49] : memref<304x128xbf16, #tpu.memory_space<vmem>>, vector<256x128xbf16>
    %c4 = arith.constant 4 : index
    %c0_50 = arith.constant 0 : index
    %c0_51 = arith.constant 0 : index
    %74 = vector.load %arg3[%c4, %c0_50, %c0_51] : memref<9x128x128xbf16, #tpu.memory_space<vmem>>, vector<1x128x128xbf16>
    %75 = vector.shape_cast %74 : vector<1x128x128xbf16> to vector<128x128xbf16>
    %cst_52 = arith.constant dense<0.000000e+00> : vector<256x128xf32>
    %76 = tpu.matmul %73, %75, %cst_52 {dimension_numbers = #tpu.dot_dimension_numbers<[1], [0], [0], [1], [0, 0, 1, 1], [], []>} : vector<256x128xbf16>, vector<128x128xbf16>, vector<256x128xf32> -> vector<256x128xf32>
    %c0_53 = arith.constant 0 : index
    %c0_54 = arith.constant 0 : index
    %77 = vector.load %arg10[%c0_53, %c0_54] : memref<256x128xf32, #tpu.memory_space<vmem>>, vector<256x128xf32>
    %78 = arith.addf %77, %76 : vector<256x128xf32>
    %c0_55 = arith.constant 0 : index
    %c0_56 = arith.constant 0 : index
    %79 = vector.load %arg10[%c0_55, %c0_56] : memref<256x128xf32, #tpu.memory_space<vmem>>, vector<256x128xf32>
    tpu.vector_store %arg10[%c0_55, %c0_56], %78 {strides = array<i32>} : memref<256x128xf32, #tpu.memory_space<vmem>>, vector<256x128xf32>,
    %c25 = arith.constant 25 : index
    %c0_57 = arith.constant 0 : index
    %80 = vector.load %arg9[%c25, %c0_57] : memref<304x128xbf16, #tpu.memory_space<vmem>>, vector<256x128xbf16>
    %c5 = arith.constant 5 : index
    %c0_58 = arith.constant 0 : index
    %c0_59 = arith.constant 0 : index
    %81 = vector.load %arg3[%c5, %c0_58, %c0_59] : memref<9x128x128xbf16, #tpu.memory_space<vmem>>, vector<1x128x128xbf16>
    %82 = vector.shape_cast %81 : vector<1x128x128xbf16> to vector<128x128xbf16>
    %cst_60 = arith.constant dense<0.000000e+00> : vector<256x128xf32>
    %83 = tpu.matmul %80, %82, %cst_60 {dimension_numbers = #tpu.dot_dimension_numbers<[1], [0], [0], [1], [0, 0, 1, 1], [], []>} : vector<256x128xbf16>, vector<128x128xbf16>, vector<256x128xf32> -> vector<256x128xf32>
    %84 = vector.broadcast %40 : vector<256x1xf32> to vector<256x128xf32>
    %85 = arith.mulf %83, %84 : vector<256x128xf32>
    %c0_61 = arith.constant 0 : index
    %c0_62 = arith.constant 0 : index
    %86 = vector.load %arg10[%c0_61, %c0_62] : memref<256x128xf32, #tpu.memory_space<vmem>>, vector<256x128xf32>
    %87 = arith.addf %86, %85 : vector<256x128xf32>
    %c0_63 = arith.constant 0 : index
    %c0_64 = arith.constant 0 : index
    %88 = vector.load %arg10[%c0_63, %c0_64] : memref<256x128xf32, #tpu.memory_space<vmem>>, vector<256x128xf32>
    tpu.vector_store %arg10[%c0_63, %c0_64], %87 {strides = array<i32>} : memref<256x128xf32, #tpu.memory_space<vmem>>, vector<256x128xf32>,
    %c39 = arith.constant 39 : index
    %c0_65 = arith.constant 0 : index
    %89 = vector.load %arg9[%c39, %c0_65] : memref<304x128xbf16, #tpu.memory_space<vmem>>, vector<256x128xbf16>
    %c6 = arith.constant 6 : index
    %c0_66 = arith.constant 0 : index
    %c0_67 = arith.constant 0 : index
    %90 = vector.load %arg3[%c6, %c0_66, %c0_67] : memref<9x128x128xbf16, #tpu.memory_space<vmem>>, vector<1x128x128xbf16>
    %91 = vector.shape_cast %90 : vector<1x128x128xbf16> to vector<128x128xbf16>
    %cst_68 = arith.constant dense<0.000000e+00> : vector<256x128xf32>
    %92 = tpu.matmul %89, %91, %cst_68 {dimension_numbers = #tpu.dot_dimension_numbers<[1], [0], [0], [1], [0, 0, 1, 1], [], []>} : vector<256x128xbf16>, vector<128x128xbf16>, vector<256x128xf32> -> vector<256x128xf32>
    %93 = vector.broadcast %36 : vector<256x1xf32> to vector<256x128xf32>
    %94 = arith.mulf %92, %93 : vector<256x128xf32>
    %c0_69 = arith.constant 0 : index
    %c0_70 = arith.constant 0 : index
    %95 = vector.load %arg10[%c0_69, %c0_70] : memref<256x128xf32, #tpu.memory_space<vmem>>, vector<256x128xf32>
    %96 = arith.addf %95, %94 : vector<256x128xf32>
    %c0_71 = arith.constant 0 : index
    %c0_72 = arith.constant 0 : index
    %97 = vector.load %arg10[%c0_71, %c0_72] : memref<256x128xf32, #tpu.memory_space<vmem>>, vector<256x128xf32>
    tpu.vector_store %arg10[%c0_71, %c0_72], %96 {strides = array<i32>} : memref<256x128xf32, #tpu.memory_space<vmem>>, vector<256x128xf32>,
    %c40 = arith.constant 40 : index
    %c0_73 = arith.constant 0 : index
    %98 = vector.load %arg9[%c40, %c0_73] : memref<304x128xbf16, #tpu.memory_space<vmem>>, vector<256x128xbf16>
    %c7_74 = arith.constant 7 : index
    %c0_75 = arith.constant 0 : index
    %c0_76 = arith.constant 0 : index
    %99 = vector.load %arg3[%c7_74, %c0_75, %c0_76] : memref<9x128x128xbf16, #tpu.memory_space<vmem>>, vector<1x128x128xbf16>
    %100 = vector.shape_cast %99 : vector<1x128x128xbf16> to vector<128x128xbf16>
    %cst_77 = arith.constant dense<0.000000e+00> : vector<256x128xf32>
    %101 = tpu.matmul %98, %100, %cst_77 {dimension_numbers = #tpu.dot_dimension_numbers<[1], [0], [0], [1], [0, 0, 1, 1], [], []>} : vector<256x128xbf16>, vector<128x128xbf16>, vector<256x128xf32> -> vector<256x128xf32>
    %c0_78 = arith.constant 0 : index
    %c0_79 = arith.constant 0 : index
    %102 = vector.load %arg10[%c0_78, %c0_79] : memref<256x128xf32, #tpu.memory_space<vmem>>, vector<256x128xf32>
    %103 = arith.addf %102, %101 : vector<256x128xf32>
    %c0_80 = arith.constant 0 : index
    %c0_81 = arith.constant 0 : index
    %104 = vector.load %arg10[%c0_80, %c0_81] : memref<256x128xf32, #tpu.memory_space<vmem>>, vector<256x128xf32>
    tpu.vector_store %arg10[%c0_80, %c0_81], %103 {strides = array<i32>} : memref<256x128xf32, #tpu.memory_space<vmem>>, vector<256x128xf32>,
    %c41 = arith.constant 41 : index
    %c0_82 = arith.constant 0 : index
    %105 = vector.load %arg9[%c41, %c0_82] : memref<304x128xbf16, #tpu.memory_space<vmem>>, vector<256x128xbf16>
    %c8_83 = arith.constant 8 : index
    %c0_84 = arith.constant 0 : index
    %c0_85 = arith.constant 0 : index
    %106 = vector.load %arg3[%c8_83, %c0_84, %c0_85] : memref<9x128x128xbf16, #tpu.memory_space<vmem>>, vector<1x128x128xbf16>
    %107 = vector.shape_cast %106 : vector<1x128x128xbf16> to vector<128x128xbf16>
    %cst_86 = arith.constant dense<0.000000e+00> : vector<256x128xf32>
    %108 = tpu.matmul %105, %107, %cst_86 {dimension_numbers = #tpu.dot_dimension_numbers<[1], [0], [0], [1], [0, 0, 1, 1], [], []>} : vector<256x128xbf16>, vector<128x128xbf16>, vector<256x128xf32> -> vector<256x128xf32>
    %109 = vector.broadcast %40 : vector<256x1xf32> to vector<256x128xf32>
    %110 = arith.mulf %108, %109 : vector<256x128xf32>
    %c0_87 = arith.constant 0 : index
    %c0_88 = arith.constant 0 : index
    %111 = vector.load %arg10[%c0_87, %c0_88] : memref<256x128xf32, #tpu.memory_space<vmem>>, vector<256x128xf32>
    %112 = arith.addf %111, %110 : vector<256x128xf32>
    %c0_89 = arith.constant 0 : index
    %c0_90 = arith.constant 0 : index
    %113 = vector.load %arg10[%c0_89, %c0_90] : memref<256x128xf32, #tpu.memory_space<vmem>>, vector<256x128xf32>
    tpu.vector_store %arg10[%c0_89, %c0_90], %112 {strides = array<i32>} : memref<256x128xf32, #tpu.memory_space<vmem>>, vector<256x128xf32>,
    %c0_91 = arith.constant 0 : index
    %c0_92 = arith.constant 0 : index
    %114 = vector.load %arg10[%c0_91, %c0_92] : memref<256x128xf32, #tpu.memory_space<vmem>>, vector<256x128xf32>
    %c0_93 = arith.constant 0 : index
    %c0_94 = arith.constant 0 : index
    %115 = vector.load %arg6[%c0_93, %c0_94] : memref<1x128xf32, #tpu.memory_space<vmem>>, vector<1x128xf32>
    %116 = vector.broadcast %115 : vector<1x128xf32> to vector<256x128xf32>
    %117 = arith.mulf %114, %116 : vector<256x128xf32>
    %c0_95 = arith.constant 0 : index
    %c0_96 = arith.constant 0 : index
    %118 = vector.load %arg7[%c0_95, %c0_96] : memref<1x128xf32, #tpu.memory_space<vmem>>, vector<1x128xf32>
    %119 = vector.broadcast %118 : vector<1x128xf32> to vector<256x128xf32>
    %120 = arith.addf %117, %119 : vector<256x128xf32>
    %cst_97 = arith.constant 0.000000e+00 : f32
    %121 = vector.broadcast %cst_97 : f32 to vector<256x128xf32>
    %122 = arith.maximumf %120, %121 : vector<256x128xf32>
    %c0_98 = arith.constant 0 : index
    %c0_99 = arith.constant 0 : index
    %c0_100 = arith.constant 0 : index
    %123 = vector.load %arg8[%c0_98, %c0_99, %c0_100] : memref<1x256x128xf32, #tpu.memory_space<vmem>>, vector<1x256x128xf32>
    %124 = vector.shape_cast %123 : vector<1x256x128xf32> to vector<256x128xf32>
    %125 = vector.shape_cast %122 : vector<256x128xf32> to vector<1x256x128xf32>
    tpu.vector_store %arg8[%c0_98, %c0_99, %c0_100], %125 {strides = array<i32>} : memref<1x256x128xf32, #tpu.memory_space<vmem>>, vector<1x256x128xf32>,
    return
  }
  func.func @transform_0(%arg0: i32) -> (i32, i32, i32) {
    %c0_i32 = arith.constant 0 : i32
    %c0_i32_0 = arith.constant 0 : i32
    %c0_i32_1 = arith.constant 0 : i32
    return %arg0, %c0_i32, %c0_i32_0 : i32, i32, i32
  }
  func.func @transform_1(%arg0: i32) -> (i32, i32) {
    %c0_i32 = arith.constant 0 : i32
    %c0_i32_0 = arith.constant 0 : i32
    %c0_i32_1 = arith.constant 0 : i32
    return %c0_i32, %c0_i32_0 : i32, i32
  }
  func.func @transform_2(%arg0: i32) -> (i32, i32, i32) {
    %c0_i32 = arith.constant 0 : i32
    %c0_i32_0 = arith.constant 0 : i32
    %c0_i32_1 = arith.constant 0 : i32
    %c0_i32_2 = arith.constant 0 : i32
    return %c0_i32, %c0_i32_0, %c0_i32_1 : i32, i32, i32
  }
  func.func @transform_3(%arg0: i32) -> (i32, i32) {
    %c0_i32 = arith.constant 0 : i32
    %c0_i32_0 = arith.constant 0 : i32
    %c0_i32_1 = arith.constant 0 : i32
    return %c0_i32, %c0_i32_0 : i32, i32
  }
  func.func @transform_4(%arg0: i32) -> (i32, i32) {
    %c0_i32 = arith.constant 0 : i32
    %c0_i32_0 = arith.constant 0 : i32
    %c0_i32_1 = arith.constant 0 : i32
    return %c0_i32, %c0_i32_0 : i32, i32
  }
  func.func @transform_5(%arg0: i32) -> (i32, i32) {
    %c0_i32 = arith.constant 0 : i32
    %c0_i32_0 = arith.constant 0 : i32
    %c0_i32_1 = arith.constant 0 : i32
    return %c0_i32, %c0_i32_0 : i32, i32
  }
  func.func @transform_6(%arg0: i32) -> (i32, i32) {
    %c0_i32 = arith.constant 0 : i32
    %c0_i32_0 = arith.constant 0 : i32
    %c0_i32_1 = arith.constant 0 : i32
    return %c0_i32, %c0_i32_0 : i32, i32
  }
  func.func @transform_7(%arg0: i32) -> (i32, i32, i32) {
    %c0_i32 = arith.constant 0 : i32
    %c0_i32_0 = arith.constant 0 : i32
    %c0_i32_1 = arith.constant 0 : i32
    return %arg0, %c0_i32, %c0_i32_0 : i32, i32, i32
  }
}

</mosaic_0001>

<llo_original>
// kernel: bottleneck_forward.1
$region0: #{bottleneck_forward.1}
  #allocation0 [shape = 'u32[]', space=smem, size = 0x4, offset = 0x4, fixed_abs, tag = 'smem constant byte address 0x4 - core index']
  #allocation1 [shape = 'u32[144,128]{1,0:T(1,128)}', space=vmem, size = 0x12000, scoped, tag = 'internal scratch']
  #allocation2 [shape = 'bf16[304,128]{1,0:T(16,128)(2,1)}', space=vmem, size = 0x13000, scoped, tag = 'scratch operand']
  #allocation3 [shape = 'f32[256,128]{1,0:T(8,128)}', space=vmem, size = 0x20000, scoped, tag = 'scratch operand']
  %s0 = inlined_call_operand.vmem [shape: bf16[2,256,4], index: 0, kind: input, shape index: {}]
  %s1 = inlined_call_operand.vmem [shape: bf16[4,128], index: 1, kind: input, shape index: {}]
  %s2 = inlined_call_operand.vmem [shape: bf16[9,128,128], index: 2, kind: input, shape index: {}]
  %s3 = inlined_call_operand.vmem [shape: f32[1,128], index: 3, kind: input, shape index: {}]
  %s4 = inlined_call_operand.vmem [shape: f32[1,128], index: 4, kind: input, shape index: {}]
  %s5 = inlined_call_operand.vmem [shape: f32[1,128], index: 5, kind: input, shape index: {}]
  %s6 = inlined_call_operand.vmem [shape: f32[1,128], index: 6, kind: input, shape index: {}]
  %s7 = inlined_call_operand.vmem [shape: f32[2,256,128], index: 7, kind: output, shape index: {}]
  %s8 = sld [smem:[#allocation0]]
  $region61: #{bottleneck_forward.1} parent=0
    _
  %s10 = ssub.s32 1, %s8
  %s11 = scalar_select 0, %s10, %s8
  loop: start=0, step=1, limit=4
  $region2: #{bottleneck_forward.1} parent=0 // loop_pre_header
    _
  $region3: #{bottleneck_forward.1} parent=0 // loop_header
    %s13 = sphi 0, %s17
    %p14 = scmp.ge.s32.totalorder %s13, 4
    %s23 = sphi 0, %s25
    %s26 = sphi 0, %s23
    %s27 = sphi 0, %s26
    %s43 = sphi 0, %s27
    %s47 = sphi 0, %s47
    %s49 = sphi 0, %s47
    %s50 = sphi 0, %s49
    %s64 = sphi 0, %s50
    %s68 = sphi 0, %s68
    %s70 = sphi 0, %s68
    %s71 = sphi 0, %s70
    %s85 = sphi 0, %s71
    %s89 = sphi 0, %s89
    %s91 = sphi 0, %s89
    %s92 = sphi 0, %s91
    %s106 = sphi 0, %s92
    %s110 = sphi 0, %s110
    %s112 = sphi 0, %s110
    %s113 = sphi 0, %s112
    %s127 = sphi 0, %s113
    %s131 = sphi 0, %s131
    %s133 = sphi 0, %s131
    %s134 = sphi 0, %s133
    %s148 = sphi 0, %s134
    %s152 = sphi 0, %s152
    %s154 = sphi 0, %s152
    %s155 = sphi 0, %s154
    %s169 = sphi 0, %s155
    %s175 = sphi 0, %s177
    %s178 = sphi 0, %s175
    %s179 = sphi 0, %s178
    %s195 = sphi 0, %s179
  $region4: #{bottleneck_forward.1} parent=0 // loop_header_branch
    %16 = sbr.rel (%p14) target = $region8
  $region5: #{bottleneck_forward.1} parent=0 // loop_body
    %s18 = ssub.s32 %s13, 1
    %s19 = ssub.s32 %s13, 2
    %s20 = sadd.s32 %s13, 1
    %s21 = ssub.s32 %s13, %s20
    %p22 = scmp.eq.s32.totalorder %s21, 0
    %s24 = sadd.s32 %s23, 1
    %s25 = scalar_select %p22, %s23, %s24
    %p28 = pneg %p22
    %p29 = scmp.eq.s32.totalorder %s13, 1
    %p30 = por %p28, %p29
    %p31 = scmp.ne.s32.totalorder %s23, %s26
    %p32 = scmp.eq.s32.totalorder %s13, 0
    %p33 = por %p31, %p32
    %p34 = scmp.ne.s32.totalorder %s23, %s26
    %p35 = scmp.eq.s32.totalorder %s18, 1
    %p36 = por %p34, %p35
    %p37 = scmp.ne.s32.totalorder %s26, %s27
    %p38 = scmp.eq.s32.totalorder %s18, 0
    %p39 = por %p37, %p38
    %p40 = scmp.ne.s32.totalorder %s26, %s27
    %p41 = scmp.eq.s32.totalorder %s19, 1
    %p42 = por %p40, %p41
    %p44 = scmp.ne.s32.totalorder %s27, %s43
    %p45 = scmp.eq.s32.totalorder %s19, 0
    %p46 = por %p44, %p45
    %s48 = sadd.s32 %s47, 1
    %p51 = scmp.eq.s32.totalorder %s13, 1
    %p52 = scmp.ne.s32.totalorder %s47, %s49
    %p53 = scmp.eq.s32.totalorder %s13, 0
    %p54 = por %p52, %p53
    %p55 = scmp.ne.s32.totalorder %s47, %s49
    %p56 = scmp.eq.s32.totalorder %s18, 1
    %p57 = por %p55, %p56
    %p58 = scmp.ne.s32.totalorder %s49, %s50
    %p59 = scmp.eq.s32.totalorder %s18, 0
    %p60 = por %p58, %p59
    %p61 = scmp.ne.s32.totalorder %s49, %s50
    %p62 = scmp.eq.s32.totalorder %s19, 1
    %p63 = por %p61, %p62
    %p65 = scmp.ne.s32.totalorder %s50, %s64
    %p66 = scmp.eq.s32.totalorder %s19, 0
    %p67 = por %p65, %p66
    %s69 = sadd.s32 %s68, 1
    %p72 = scmp.eq.s32.totalorder %s13, 1
    %p73 = scmp.ne.s32.totalorder %s68, %s70
    %p74 = scmp.eq.s32.totalorder %s13, 0
    %p75 = por %p73, %p74
    %p76 = scmp.ne.s32.totalorder %s68, %s70
    %p77 = scmp.eq.s32.totalorder %s18, 1
    %p78 = por %p76, %p77
    %p79 = scmp.ne.s32.totalorder %s70, %s71
    %p80 = scmp.eq.s32.totalorder %s18, 0
    %p81 = por %p79, %p80
    %p82 = scmp.ne.s32.totalorder %s70, %s71
    %p83 = scmp.eq.s32.totalorder %s19, 1
    %p84 = por %p82, %p83
    %p86 = scmp.ne.s32.totalorder %s71, %s85
    %p87 = scmp.eq.s32.totalorder %s19, 0
    %p88 = por %p86, %p87
    %s90 = sadd.s32 %s89, 1
    %p93 = scmp.eq.s32.totalorder %s13, 1
    %p94 = scmp.ne.s32.totalorder %s89, %s91
    %p95 = scmp.eq.s32.totalorder %s13, 0
    %p96 = por %p94, %p95
    %p97 = scmp.ne.s32.totalorder %s89, %s91
    %p98 = scmp.eq.s32.totalorder %s18, 1
    %p99 = por %p97, %p98
    %p100 = scmp.ne.s32.totalorder %s91, %s92
    %p101 = scmp.eq.s32.totalorder %s18, 0
    %p102 = por %p100, %p101
    %p103 = scmp.ne.s32.totalorder %s91, %s92
    %p104 = scmp.eq.s32.totalorder %s19, 1
    %p105 = por %p103, %p104
    %p107 = scmp.ne.s32.totalorder %s92, %s106
    %p108 = scmp.eq.s32.totalorder %s19, 0
    %p109 = por %p107, %p108
    %s111 = sadd.s32 %s110, 1
    %p114 = scmp.eq.s32.totalorder %s13, 1
    %p115 = scmp.ne.s32.totalorder %s110, %s112
    %p116 = scmp.eq.s32.totalorder %s13, 0
    %p117 = por %p115, %p116
    %p118 = scmp.ne.s32.totalorder %s110, %s112
    %p119 = scmp.eq.s32.totalorder %s18, 1
    %p120 = por %p118, %p119
    %p121 = scmp.ne.s32.totalorder %s112, %s113
    %p122 = scmp.eq.s32.totalorder %s18, 0
    %p123 = por %p121, %p122
    %p124 = scmp.ne.s32.totalorder %s112, %s113
    %p125 = scmp.eq.s32.totalorder %s19, 1
    %p126 = por %p124, %p125
    %p128 = scmp.ne.s32.totalorder %s113, %s127
    %p129 = scmp.eq.s32.totalorder %s19, 0
    %p130 = por %p128, %p129
    %s132 = sadd.s32 %s131, 1
    %p135 = scmp.eq.s32.totalorder %s13, 1
    %p136 = scmp.ne.s32.totalorder %s131, %s133
    %p137 = scmp.eq.s32.totalorder %s13, 0
    %p138 = por %p136, %p137
    %p139 = scmp.ne.s32.totalorder %s131, %s133
    %p140 = scmp.eq.s32.totalorder %s18, 1
    %p141 = por %p139, %p140
    %p142 = scmp.ne.s32.totalorder %s133, %s134
    %p143 = scmp.eq.s32.totalorder %s18, 0
    %p144 = por %p142, %p143
    %p145 = scmp.ne.s32.totalorder %s133, %s134
    %p146 = scmp.eq.s32.totalorder %s19, 1
    %p147 = por %p145, %p146
    %p149 = scmp.ne.s32.totalorder %s134, %s148
    %p150 = scmp.eq.s32.totalorder %s19, 0
    %p151 = por %p149, %p150
    %s153 = sadd.s32 %s152, 1
    %p156 = scmp.eq.s32.totalorder %s13, 1
    %p157 = scmp.ne.s32.totalorder %s152, %s154
    %p158 = scmp.eq.s32.totalorder %s13, 0
    %p159 = por %p157, %p158
    %p160 = scmp.ne.s32.totalorder %s152, %s154
    %p161 = scmp.eq.s32.totalorder %s18, 1
    %p162 = por %p160, %p161
    %p163 = scmp.ne.s32.totalorder %s154, %s155
    %p164 = scmp.eq.s32.totalorder %s18, 0
    %p165 = por %p163, %p164
    %p166 = scmp.ne.s32.totalorder %s154, %s155
    %p167 = scmp.eq.s32.totalorder %s19, 1
    %p168 = por %p166, %p167
    %p170 = scmp.ne.s32.totalorder %s155, %s169
    %p171 = scmp.eq.s32.totalorder %s19, 0
    %p172 = por %p170, %p171
    %s173 = ssub.s32 %s13, %s20
    %p174 = scmp.eq.s32.totalorder %s173, 0
    %s176 = sadd.s32 %s175, 1
    %s177 = scalar_select %p174, %s175, %s176
    %p180 = pneg %p174
    %p181 = scmp.eq.s32.totalorder %s13, 1
    %p182 = por %p180, %p181
    %p183 = scmp.ne.s32.totalorder %s175, %s178
    %p184 = scmp.eq.s32.totalorder %s13, 0
    %p185 = por %p183, %p184
    %p186 = scmp.ne.s32.totalorder %s175, %s178
    %p187 = scmp.eq.s32.totalorder %s18, 1
    %p188 = por %p186, %p187
    %p189 = scmp.ne.s32.totalorder %s178, %s179
    %p190 = scmp.eq.s32.totalorder %s18, 0
    %p191 = por %p189, %p190
    %p192 = scmp.ne.s32.totalorder %s178, %s179
    %p193 = scmp.eq.s32.totalorder %s19, 1
    %p194 = por %p192, %p193
    %p196 = scmp.ne.s32.totalorder %s179, %s195
    %p197 = scmp.eq.s32.totalorder %s19, 0
    %p198 = por %p196, %p197
    %p199 = scmp.le.s32.totalorder 1, %s13
    %p200 = scmp.lt.s32.totalorder %s13, 3
    %p201 = pnand %p199, %p200
    %p202 = pneg %p201
    // Predicated region
    $region9: #{bottleneck_forward.1} parent=5 // pred_check
      _
    $region10: #{bottleneck_forward.1} parent=5 // pred_check_branch
      %204 = sbr.rel (%p201) target = $region12
    $region11: #{bottleneck_forward.1} parent=5 // pred_region
      %s205 = ssub.s32 %s13, 1
      // Predicated region
      $region13: #{bottleneck_forward.1} parent=11 // pred_check
        %p206 = pneg %p60
      $region14: #{bottleneck_forward.1} parent=11 // pred_check_branch
        %208 = sbr.rel (%p206) target = $region16
      $region15: #{bottleneck_forward.1} parent=11 // pred_region
        _
      $region16: #{bottleneck_forward.1} parent=11 // pred_fallthru
        _
      // Predicated region
      $region17: #{bottleneck_forward.1} parent=11 // pred_check
        %p209 = pneg %p81
      $region18: #{bottleneck_forward.1} parent=11 // pred_check_branch
        %211 = sbr.rel (%p209) target = $region20
      $region19: #{bottleneck_forward.1} parent=11 // pred_region
        _
      $region20: #{bottleneck_forward.1} parent=11 // pred_fallthru
        _
      // Predicated region
      $region21: #{bottleneck_forward.1} parent=11 // pred_check
        %p212 = pneg %p102
      $region22: #{bottleneck_forward.1} parent=11 // pred_check_branch
        %214 = sbr.rel (%p212) target = $region24
      $region23: #{bottleneck_forward.1} parent=11 // pred_region
        _
      $region24: #{bottleneck_forward.1} parent=11 // pred_fallthru
        _
      // Predicated region
      $region25: #{bottleneck_forward.1} parent=11 // pred_check
        %p215 = pneg %p123
      $region26: #{bottleneck_forward.1} parent=11 // pred_check_branch
        %217 = sbr.rel (%p215) target = $region28
      $region27: #{bottleneck_forward.1} parent=11 // pred_region
        _
      $region28: #{bottleneck_forward.1} parent=11 // pred_fallthru
        _
      // Predicated region
      $region29: #{bottleneck_forward.1} parent=11 // pred_check
        %p218 = pneg %p144
      $region30: #{bottleneck_forward.1} parent=11 // pred_check_branch
        %220 = sbr.rel (%p218) target = $region32
      $region31: #{bottleneck_forward.1} parent=11 // pred_region
        _
      $region32: #{bottleneck_forward.1} parent=11 // pred_fallthru
        _
      // Predicated region
      $region33: #{bottleneck_forward.1} parent=11 // pred_check
        %p221 = pneg %p165
      $region34: #{bottleneck_forward.1} parent=11 // pred_check_branch
        %223 = sbr.rel (%p221) target = $region36
      $region35: #{bottleneck_forward.1} parent=11 // pred_region
        _
      $region36: #{bottleneck_forward.1} parent=11 // pred_fallthru
        _
    $region12: #{bottleneck_forward.1} parent=5 // pred_fallthru
      _
    %p224 = scmp.lt.s32.totalorder %s13, 2
    // Predicated region
    $region37: #{bottleneck_forward.1} parent=5 // pred_check
      %p225 = pneg %p224
    $region38: #{bottleneck_forward.1} parent=5 // pred_check_branch
      %227 = sbr.rel (%p225) target = $region40
    $region39: #{bottleneck_forward.1} parent=5 // pred_region
      // Predicated region
      $region41: #{bottleneck_forward.1} parent=39 // pred_check
        %p228 = pneg %p33
      $region42: #{bottleneck_forward.1} parent=39 // pred_check_branch
        %230 = sbr.rel (%p228) target = $region44
      $region43: #{bottleneck_forward.1} parent=39 // pred_region
        %p231 = scmp.lt.s32.totalorder %s13, 1
        %s232 = scalar_select %p231, %s13, 1
        %s233 = smul.addr %s232, 32
        %s234 = smul.addr %s233, 4
        %s235 = scalar_lea.vmem %s0, %s234
      $region44: #{bottleneck_forward.1} parent=39 // pred_fallthru
        _
    $region40: #{bottleneck_forward.1} parent=5 // pred_fallthru
      _
    %p236 = scmp.le.s32.totalorder 1, %s13
    %p237 = scmp.lt.s32.totalorder %s13, 3
    %p238 = pnand %p236, %p237
    %p239 = pneg %p238
    // Predicated region
    $region45: #{bottleneck_forward.1} parent=5 // pred_check
      _
    $region46: #{bottleneck_forward.1} parent=5 // pred_check_branch
      %241 = sbr.rel (%p238) target = $region48
    $region47: #{bottleneck_forward.1} parent=5 // pred_region
      %s242 = ssub.s32 %s13, 1
      %p243 = scmp.lt.s32.totalorder %s18, 1
      %s244 = scalar_select %p243, %s18, 1
      %s245 = smul.addr %s244, 32
      %s246 = smul.addr %s245, 4
      %s247 = scalar_lea.vmem %s0, %s246
      %p248 = pneg %p39
      %p249 = pneg %p36
      %p250 = pneg %p60
      %p251 = pneg %p57
      %p252 = pneg %p81
      %p253 = pneg %p78
      %p254 = pneg %p102
      %p255 = pneg %p99
      %p256 = pneg %p123
      %p257 = pneg %p120
      %p258 = pneg %p144
      %p259 = pneg %p141
      %p260 = pneg %p165
      %p261 = pneg %p162
      %p262 = pneg %p191
      %p263 = pneg %p188
      %p264 = scmp.lt.s32.totalorder %s18, 1
      %s265 = scalar_select %p264, %s18, 1
      %s266 = smul.addr %s265, 32
      %s267 = smul.addr %s266, 8
      %s268 = scalar_lea.vmem %s7, %s267
      %p269 = scmp.lt.s32.totalorder %s18, 1
      %s270 = scalar_select %p269, %s18, 1
      %s271 = smul.addr %s270, 32
      %s272 = smul.addr %s271, 4
      %s273 = scalar_lea.vmem %s0, %s272
      %p274 = scmp.lt.s32.totalorder %s18, 1
      %s275 = scalar_select %p274, %s18, 1
      %s276 = smul.addr %s275, 32
      %s277 = smul.addr %s276, 8
      %s278 = scalar_lea.vmem %s7, %s277
      %v280 = vld [vmem:[%s273] sm:$0xf]
      %v281 = vld [vmem:[%s273 + $0x4] sm:$0xf]
      %v282 = vld [vmem:[%s273 + $0x8] sm:$0xf]
      %v283 = vld [vmem:[%s273 + $0xc] sm:$0xf]
      %v284 = vld [vmem:[%s273 + $0x10] sm:$0xf]
      %v285 = vld [vmem:[%s273 + $0x14] sm:$0xf]
      %v286 = vld [vmem:[%s273 + $0x18] sm:$0xf]
      %v287 = vld [vmem:[%s273 + $0x1c] sm:$0xf]
      %v288 = vld [vmem:[%s273 + $0x20] sm:$0xf]
      %v289 = vld [vmem:[%s273 + $0x24] sm:$0xf]
      %v290 = vld [vmem:[%s273 + $0x28] sm:$0xf]
      %v291 = vld [vmem:[%s273 + $0x2c] sm:$0xf]
      %v292 = vld [vmem:[%s273 + $0x30] sm:$0xf]
      %v293 = vld [vmem:[%s273 + $0x34] sm:$0xf]
      %v294 = vld [vmem:[%s273 + $0x38] sm:$0xf]
      %v295 = vld [vmem:[%s273 + $0x3c] sm:$0xf]
      %v296 = vld [vmem:[%s273 + $0x40] sm:$0xf]
      %v297 = vld [vmem:[%s273 + $0x44] sm:$0xf]
      %v298 = vld [vmem:[%s273 + $0x48] sm:$0xf]
      %v299 = vld [vmem:[%s273 + $0x4c] sm:$0xf]
      %v300 = vld [vmem:[%s273 + $0x50] sm:$0xf]
      %v301 = vld [vmem:[%s273 + $0x54] sm:$0xf]
      %v302 = vld [vmem:[%s273 + $0x58] sm:$0xf]
      %v303 = vld [vmem:[%s273 + $0x5c] sm:$0xf]
      %v304 = vld [vmem:[%s273 + $0x60] sm:$0xf]
      %v305 = vld [vmem:[%s273 + $0x64] sm:$0xf]
      %v306 = vld [vmem:[%s273 + $0x68] sm:$0xf]
      %v307 = vld [vmem:[%s273 + $0x6c] sm:$0xf]
      %v308 = vld [vmem:[%s273 + $0x70] sm:$0xf]
      %v309 = vld [vmem:[%s273 + $0x74] sm:$0xf]
      %v310 = vld [vmem:[%s273 + $0x78] sm:$0xf]
      %v311 = vld [vmem:[%s273 + $0x7c] sm:$0xf]
      %v312 = vld [vmem:[%s1] sm:$0x3]
      %v345 = vunpack.c.l.b16 %v280
      %v346 = vunpack.c.l.b16 %v281
      %v347 = vunpack.c.l.b16 %v282
      %v348 = vunpack.c.l.b16 %v283
      %v349 = vunpack.c.l.b16 %v284
      %v350 = vunpack.c.l.b16 %v285
      %v351 = vunpack.c.l.b16 %v286
      %v352 = vunpack.c.l.b16 %v287
      %v353 = vunpack.c.l.b16 %v288
      %v354 = vunpack.c.l.b16 %v289
      %v355 = vunpack.c.l.b16 %v290
      %v356 = vunpack.c.l.b16 %v291
      %v357 = vunpack.c.l.b16 %v292
      %v358 = vunpack.c.l.b16 %v293
      %v359 = vunpack.c.l.b16 %v294
      %v360 = vunpack.c.l.b16 %v295
      %v361 = vunpack.c.l.b16 %v296
      %v362 = vunpack.c.l.b16 %v297
      %v363 = vunpack.c.l.b16 %v298
      %v364 = vunpack.c.l.b16 %v299
      %v365 = vunpack.c.l.b16 %v300
      %v366 = vunpack.c.l.b16 %v301
      %v367 = vunpack.c.l.b16 %v302
      %v368 = vunpack.c.l.b16 %v303
      %v369 = vunpack.c.l.b16 %v304
      %v370 = vunpack.c.l.b16 %v305
      %v371 = vunpack.c.l.b16 %v306
      %v372 = vunpack.c.l.b16 %v307
      %v373 = vunpack.c.l.b16 %v308
      %v374 = vunpack.c.l.b16 %v309
      %v375 = vunpack.c.l.b16 %v310
      %v376 = vunpack.c.l.b16 %v311
      %v377 = vpack.c.b16 %v346, %v345
      %v378 = vpack.c.b16 %v348, %v347
      %v379 = vpack.c.b16 %v350, %v349
      %v380 = vpack.c.b16 %v352, %v351
      %v381 = vpack.c.b16 %v354, %v353
      %v382 = vpack.c.b16 %v356, %v355
      %v383 = vpack.c.b16 %v358, %v357
      %v384 = vpack.c.b16 %v360, %v359
      %v385 = vpack.c.b16 %v362, %v361
      %v386 = vpack.c.b16 %v364, %v363
      %v387 = vpack.c.b16 %v366, %v365
      %v388 = vpack.c.b16 %v368, %v367
      %v389 = vpack.c.b16 %v370, %v369
      %v390 = vpack.c.b16 %v372, %v371
      %v391 = vpack.c.b16 %v374, %v373
      %v392 = vpack.c.b16 %v376, %v375
      %vm393 = vcmask 31744
      %v395 = vsel %vm393, %v377, 0
      %v398 = vsel %vm393, %v378, 0
      %v401 = vsel %vm393, %v379, 0
      %v404 = vsel %vm393, %v380, 0
      %v407 = vsel %vm393, %v381, 0
      %v410 = vsel %vm393, %v382, 0
      %v413 = vsel %vm393, %v383, 0
      %v416 = vsel %vm393, %v384, 0
      %v419 = vsel %vm393, %v385, 0
      %v422 = vsel %vm393, %v386, 0
      %v425 = vsel %vm393, %v387, 0
      %v428 = vsel %vm393, %v388, 0
      %v431 = vsel %vm393, %v389, 0
      %v434 = vsel %vm393, %v390, 0
      %v437 = vsel %vm393, %v391, 0
      %v440 = vsel %vm393, %v392, 0
      %vm442 = vcmask 1041408
      %v444 = vsel %vm442, %v312, 0
      %446 = vmatprep.subr.bf16.mxu0 0
      %447 = vmatpush1.bf16.msra.mxu0 %v444
      %448 = vmatprep.subr.bf16.mxu0 0
      %449 = vmatpush1.bf16.msra.mxu0 0
      %450 = vmatprep.subr.bf16.mxu0 0
      %451 = vmatpush1.bf16.msra.mxu0 0
      %452 = vmatprep.subr.bf16.mxu0 0
      %453 = vmatpush1.bf16.msra.mxu0 0
      %454 = vmatprep.subr.bf16.mxu0 0
      %455 = vmatpush1.bf16.msra.mxu0 0
      %456 = vmatprep.subr.bf16.mxu0 0
      %457 = vmatpush1.bf16.msra.mxu0 0
      %458 = vmatprep.subr.bf16.mxu0 0
      %459 = vmatpush1.bf16.msra.mxu0 0
      %460 = vmatprep.subr.bf16.mxu0 0
      %461 = vmatpush1.bf16.msra.mxu0 0
      %462 = vmatprep.subr.bf16.mxu0 0
      %463 = vmatpush1.bf16.msra.mxu0 0
      %464 = vmatprep.subr.bf16.mxu0 0
      %465 = vmatpush1.bf16.msra.mxu0 0
      %466 = vmatprep.subr.bf16.mxu0 0
      %467 = vmatpush1.bf16.msra.mxu0 0
      %468 = vmatprep.subr.bf16.mxu0 0
      %469 = vmatpush1.bf16.msra.mxu0 0
      %470 = vmatprep.subr.bf16.mxu0 0
      %471 = vmatpush1.bf16.msra.mxu0 0
      %472 = vmatprep.subr.bf16.mxu0 0
      %473 = vmatpush1.bf16.msra.mxu0 0
      %474 = vmatprep.subr.bf16.mxu0 0
      %475 = vmatpush1.bf16.msra.mxu0 0
      %476 = vmatprep.subr.bf16.mxu0 0
      %477 = vmatpush1.bf16.msra.mxu0 0
      %478 = vmatprep.mubr.bf16.mxu0 0
      %479 = vmatmul.mubr.bf16.gmra.mrb[0].mxu0 %v395
      %v480 = vpop.f32.mrb[0].mxu0
      %v481 = vadd.f32 0.0, %v480
      %v482 = vpop.f32.mrb[0].mxu0
      %v483 = vpop.f32.mrb[0].mxu0
      %v484 = vadd.f32 0.0, %v483
      %v485 = vpop.f32.mrb[0].mxu0
      %486 = vmatprep.mubr.bf16.mxu0 0
      %487 = vmatmul.mubr.bf16.gmra.mrb[0].mxu0 %v398
      %v488 = vpop.f32.mrb[0].mxu0
      %v489 = vadd.f32 0.0, %v488
      %v490 = vpop.f32.mrb[0].mxu0
      %v491 = vpop.f32.mrb[0].mxu0
      %v492 = vadd.f32 0.0, %v491
      %v493 = vpop.f32.mrb[0].mxu0
      %494 = vmatprep.mubr.bf16.mxu0 0
      %495 = vmatmul.mubr.bf16.gmra.mrb[0].mxu0 %v401
      %v496 = vpop.f32.mrb[0].mxu0
      %v497 = vadd.f32 0.0, %v496
      %v498 = vpop.f32.mrb[0].mxu0
      %v499 = vpop.f32.mrb[0].mxu0
      %v500 = vadd.f32 0.0, %v499
      %v501 = vpop.f32.mrb[0].mxu0
      %502 = vmatprep.mubr.bf16.mxu0 0
      %503 = vmatmul.mubr.bf16.gmra.mrb[0].mxu0 %v404
      %v504 = vpop.f32.mrb[0].mxu0
      %v505 = vadd.f32 0.0, %v504
      %v506 = vpop.f32.mrb[0].mxu0
      %v507 = vpop.f32.mrb[0].mxu0
      %v508 = vadd.f32 0.0, %v507
      %v509 = vpop.f32.mrb[0].mxu0
      %510 = vmatprep.mubr.bf16.mxu0 0
      %511 = vmatmul.mubr.bf16.gmra.mrb[0].mxu0 %v407
      %v512 = vpop.f32.mrb[0].mxu0
      %v513 = vadd.f32 0.0, %v512
      %v514 = vpop.f32.mrb[0].mxu0
      %v515 = vpop.f32.mrb[0].mxu0
      %v516 = vadd.f32 0.0, %v515
      %v517 = vpop.f32.mrb[0].mxu0
      %518 = vmatprep.mubr.bf16.mxu0 0
      %519 = vmatmul.mubr.bf16.gmra.mrb[0].mxu0 %v410
      %v520 = vpop.f32.mrb[0].mxu0
      %v521 = vadd.f32 0.0, %v520
      %v522 = vpop.f32.mrb[0].mxu0
      %v523 = vpop.f32.mrb[0].mxu0
      %v524 = vadd.f32 0.0, %v523
      %v525 = vpop.f32.mrb[0].mxu0
      %526 = vmatprep.mubr.bf16.mxu0 0
      %527 = vmatmul.mubr.bf16.gmra.mrb[0].mxu0 %v413
      %v528 = vpop.f32.mrb[0].mxu0
      %v529 = vadd.f32 0.0, %v528
      %v530 = vpop.f32.mrb[0].mxu0
      %v531 = vpop.f32.mrb[0].mxu0
      %v532 = vadd.f32 0.0, %v531
      %v533 = vpop.f32.mrb[0].mxu0
      %534 = vmatprep.mubr.bf16.mxu0 0
      %535 = vmatmul.mubr.bf16.gmra.mrb[0].mxu0 %v416
      %v536 = vpop.f32.mrb[0].mxu0
      %v537 = vadd.f32 0.0, %v536
      %v538 = vpop.f32.mrb[0].mxu0
      %v539 = vpop.f32.mrb[0].mxu0
      %v540 = vadd.f32 0.0, %v539
      %v541 = vpop.f32.mrb[0].mxu0
      %542 = vmatprep.mubr.bf16.mxu0 0
      %543 = vmatmul.mubr.bf16.gmra.mrb[0].mxu0 %v419
      %v544 = vpop.f32.mrb[0].mxu0
      %v545 = vadd.f32 0.0, %v544
      %v546 = vpop.f32.mrb[0].mxu0
      %v547 = vpop.f32.mrb[0].mxu0
      %v548 = vadd.f32 0.0, %v547
      %v549 = vpop.f32.mrb[0].mxu0
      %550 = vmatprep.mubr.bf16.mxu0 0
      %551 = vmatmul.mubr.bf16.gmra.mrb[0].mxu0 %v422
      %v552 = vpop.f32.mrb[0].mxu0
      %v553 = vadd.f32 0.0, %v552
      %v554 = vpop.f32.mrb[0].mxu0
      %v555 = vpop.f32.mrb[0].mxu0
      %v556 = vadd.f32 0.0, %v555
      %v557 = vpop.f32.mrb[0].mxu0
      %558 = vmatprep.mubr.bf16.mxu0 0
      %559 = vmatmul.mubr.bf16.gmra.mrb[0].mxu0 %v425
      %v560 = vpop.f32.mrb[0].mxu0
      %v561 = vadd.f32 0.0, %v560
      %v562 = vpop.f32.mrb[0].mxu0
      %v563 = vpop.f32.mrb[0].mxu0
      %v564 = vadd.f32 0.0, %v563
      %v565 = vpop.f32.mrb[0].mxu0
      %566 = vmatprep.mubr.bf16.mxu0 0
      %567 = vmatmul.mubr.bf16.gmra.mrb[0].mxu0 %v428
      %v568 = vpop.f32.mrb[0].mxu0
      %v569 = vadd.f32 0.0, %v568
      %v570 = vpop.f32.mrb[0].mxu0
      %v571 = vpop.f32.mrb[0].mxu0
      %v572 = vadd.f32 0.0, %v571
      %v573 = vpop.f32.mrb[0].mxu0
      %574 = vmatprep.mubr.bf16.mxu0 0
      %575 = vmatmul.mubr.bf16.gmra.mrb[0].mxu0 %v431
      %v576 = vpop.f32.mrb[0].mxu0
      %v577 = vadd.f32 0.0, %v576
      %v578 = vpop.f32.mrb[0].mxu0
      %v579 = vpop.f32.mrb[0].mxu0
      %v580 = vadd.f32 0.0, %v579
      %v581 = vpop.f32.mrb[0].mxu0
      %582 = vmatprep.mubr.bf16.mxu0 0
      %583 = vmatmul.mubr.bf16.gmra.mrb[0].mxu0 %v434
      %v584 = vpop.f32.mrb[0].mxu0
      %v585 = vadd.f32 0.0, %v584
      %v586 = vpop.f32.mrb[0].mxu0
      %v587 = vpop.f32.mrb[0].mxu0
      %v588 = vadd.f32 0.0, %v587
      %v589 = vpop.f32.mrb[0].mxu0
      %590 = vmatprep.mubr.bf16.mxu0 0
      %591 = vmatmul.mubr.bf16.gmra.mrb[0].mxu0 %v437
      %v592 = vpop.f32.mrb[0].mxu0
      %v593 = vadd.f32 0.0, %v592
      %v594 = vpop.f32.mrb[0].mxu0
      %v595 = vpop.f32.mrb[0].mxu0
      %v596 = vadd.f32 0.0, %v595
      %v597 = vpop.f32.mrb[0].mxu0
      %598 = vmatprep.mubr.bf16.mxu0 0
      %599 = vmatmul.mubr.bf16.gmra.mrb[0].mxu0 %v440
      %v600 = vpop.f32.mrb[0].mxu0
      %v601 = vadd.f32 0.0, %v600
      %v602 = vpop.f32.mrb[0].mxu0
      %v603 = vpop.f32.mrb[0].mxu0
      %v604 = vadd.f32 0.0, %v603
      %v605 = vpop.f32.mrb[0].mxu0
      %606 = vdwg.mxu0
      %v607 = vld [vmem:[%s3] sm:$0x1]
      %v609 = vlaneseq
      %v610 = vshrl.u32 %v609, 7
      %v611 = vsub.s32 0, %v610
      %v612 = vrot.slane %v607, %v611
      %v614 = vmul.f32 %v481, %v612
      %v615 = vmul.f32 %v484, %v612
      %v616 = vmul.f32 %v489, %v612
      %v617 = vmul.f32 %v492, %v612
      %v618 = vmul.f32 %v497, %v612
      %v619 = vmul.f32 %v500, %v612
      %v620 = vmul.f32 %v505, %v612
      %v621 = vmul.f32 %v508, %v612
      %v622 = vmul.f32 %v513, %v612
      %v623 = vmul.f32 %v516, %v612
      %v624 = vmul.f32 %v521, %v612
      %v625 = vmul.f32 %v524, %v612
      %v626 = vmul.f32 %v529, %v612
      %v627 = vmul.f32 %v532, %v612
      %v628 = vmul.f32 %v537, %v612
      %v629 = vmul.f32 %v540, %v612
      %v630 = vmul.f32 %v545, %v612
      %v631 = vmul.f32 %v548, %v612
      %v632 = vmul.f32 %v553, %v612
      %v633 = vmul.f32 %v556, %v612
      %v634 = vmul.f32 %v561, %v612
      %v635 = vmul.f32 %v564, %v612
      %v636 = vmul.f32 %v569, %v612
      %v637 = vmul.f32 %v572, %v612
      %v638 = vmul.f32 %v577, %v612
      %v639 = vmul.f32 %v580, %v612
      %v640 = vmul.f32 %v585, %v612
      %v641 = vmul.f32 %v588, %v612
      %v642 = vmul.f32 %v593, %v612
      %v643 = vmul.f32 %v596, %v612
      %v644 = vmul.f32 %v601, %v612
      %v645 = vmul.f32 %v604, %v612
      %v646 = vld [vmem:[%s4] sm:$0x1]
      %v648 = vlaneseq
      %v649 = vshrl.u32 %v648, 7
      %v650 = vsub.s32 0, %v649
      %v651 = vrot.slane %v646, %v650
      %v653 = vadd.f32 %v614, %v651
      %v654 = vadd.f32 %v615, %v651
      %v655 = vadd.f32 %v616, %v651
      %v656 = vadd.f32 %v617, %v651
      %v657 = vadd.f32 %v618, %v651
      %v658 = vadd.f32 %v619, %v651
      %v659 = vadd.f32 %v620, %v651
      %v660 = vadd.f32 %v621, %v651
      %v661 = vadd.f32 %v622, %v651
      %v662 = vadd.f32 %v623, %v651
      %v663 = vadd.f32 %v624, %v651
      %v664 = vadd.f32 %v625, %v651
      %v665 = vadd.f32 %v626, %v651
      %v666 = vadd.f32 %v627, %v651
      %v667 = vadd.f32 %v628, %v651
      %v668 = vadd.f32 %v629, %v651
      %v669 = vadd.f32 %v630, %v651
      %v670 = vadd.f32 %v631, %v651
      %v671 = vadd.f32 %v632, %v651
      %v672 = vadd.f32 %v633, %v651
      %v673 = vadd.f32 %v634, %v651
      %v674 = vadd.f32 %v635, %v651
      %v675 = vadd.f32 %v636, %v651
      %v676 = vadd.f32 %v637, %v651
      %v677 = vadd.f32 %v638, %v651
      %v678 = vadd.f32 %v639, %v651
      %v679 = vadd.f32 %v640, %v651
      %v680 = vadd.f32 %v641, %v651
      %v681 = vadd.f32 %v642, %v651
      %v682 = vadd.f32 %v643, %v651
      %v683 = vadd.f32 %v644, %v651
      %v684 = vadd.f32 %v645, %v651
      %v685 = vmax.f32 %v653, 0.0
      %v686 = vmax.f32 %v654, 0.0
      %v687 = vmax.f32 %v655, 0.0
      %v688 = vmax.f32 %v656, 0.0
      %v689 = vmax.f32 %v657, 0.0
      %v690 = vmax.f32 %v658, 0.0
      %v691 = vmax.f32 %v659, 0.0
      %v692 = vmax.f32 %v660, 0.0
      %v693 = vmax.f32 %v661, 0.0
      %v694 = vmax.f32 %v662, 0.0
      %v695 = vmax.f32 %v663, 0.0
      %v696 = vmax.f32 %v664, 0.0
      %v697 = vmax.f32 %v665, 0.0
      %v698 = vmax.f32 %v666, 0.0
      %v699 = vmax.f32 %v667, 0.0
      %v700 = vmax.f32 %v668, 0.0
      %v701 = vmax.f32 %v669, 0.0
      %v702 = vmax.f32 %v670, 0.0
      %v703 = vmax.f32 %v671, 0.0
      %v704 = vmax.f32 %v672, 0.0
      %v705 = vmax.f32 %v673, 0.0
      %v706 = vmax.f32 %v674, 0.0
      %v707 = vmax.f32 %v675, 0.0
      %v708 = vmax.f32 %v676, 0.0
      %v709 = vmax.f32 %v677, 0.0
      %v710 = vmax.f32 %v678, 0.0
      %v711 = vmax.f32 %v679, 0.0
      %v712 = vmax.f32 %v680, 0.0
      %v713 = vmax.f32 %v681, 0.0
      %v714 = vmax.f32 %v682, 0.0
      %v715 = vmax.f32 %v683, 0.0
      %v716 = vmax.f32 %v684, 0.0
      %717 = vst [vmem:[#allocation2] sm:$0xff] 0
      %718 = vst [vmem:[#allocation2 + $0x8] sm:$0xff] 0
      %719 = vst [vmem:[#allocation2 + $0x10] sm:$0xff] 0
      %720 = vst [vmem:[#allocation2 + $0x18] sm:$0xff] 0
      %721 = vst [vmem:[#allocation2 + $0x20] sm:$0xff] 0
      %722 = vst [vmem:[#allocation2 + $0x28] sm:$0xff] 0
      %723 = vst [vmem:[#allocation2 + $0x30] sm:$0xff] 0
      %724 = vst [vmem:[#allocation2 + $0x38] sm:$0xff] 0
      %725 = vst [vmem:[#allocation2 + $0x40] sm:$0xff] 0
      %726 = vst [vmem:[#allocation2 + $0x48] sm:$0xff] 0
      %727 = vst [vmem:[#allocation2 + $0x50] sm:$0xff] 0
      %728 = vst [vmem:[#allocation2 + $0x58] sm:$0xff] 0
      %729 = vst [vmem:[#allocation2 + $0x60] sm:$0xff] 0
      %730 = vst [vmem:[#allocation2 + $0x68] sm:$0xff] 0
      %731 = vst [vmem:[#allocation2 + $0x70] sm:$0xff] 0
      %732 = vst [vmem:[#allocation2 + $0x78] sm:$0xff] 0
      %733 = vst [vmem:[#allocation2 + $0x80] sm:$0xff] 0
      %734 = vst [vmem:[#allocation2 + $0x88] sm:$0xff] 0
      %735 = vst [vmem:[#allocation2 + $0x90] sm:$0xff] 0
      %v736 = vpack.c.bf16 %v686, %v685
      %v737 = vpack.c.bf16 %v688, %v687
      %v738 = vpack.c.bf16 %v690, %v689
      %v739 = vpack.c.bf16 %v692, %v691
      %v740 = vpack.c.bf16 %v694, %v693
      %v741 = vpack.c.bf16 %v696, %v695
      %v742 = vpack.c.bf16 %v698, %v697
      %v743 = vpack.c.bf16 %v700, %v699
      %v744 = vpack.c.bf16 %v702, %v701
      %v745 = vpack.c.bf16 %v704, %v703
      %v746 = vpack.c.bf16 %v706, %v705
      %v747 = vpack.c.bf16 %v708, %v707
      %v748 = vpack.c.bf16 %v710, %v709
      %v749 = vpack.c.bf16 %v712, %v711
      %v750 = vpack.c.bf16 %v714, %v713
      %v751 = vpack.c.bf16 %v716, %v715
      %vm768 = vcmask 1043456
      %v769 = vrot.slane %v736, 4
      %v770 = vrot.slane %v737, 4
      %v771 = vsel %vm768, %v769, %v770
      %v772 = vrot.slane %v738, 4
      %v773 = vsel %vm768, %v770, %v772
      %v774 = vrot.slane %v739, 4
      %v775 = vsel %vm768, %v772, %v774
      %v776 = vrot.slane %v740, 4
      %v777 = vsel %vm768, %v774, %v776
      %v778 = vrot.slane %v741, 4
      %v779 = vsel %vm768, %v776, %v778
      %v780 = vrot.slane %v742, 4
      %v781 = vsel %vm768, %v778, %v780
      %v782 = vrot.slane %v743, 4
      %v783 = vsel %vm768, %v780, %v782
      %v784 = vrot.slane %v744, 4
      %v785 = vsel %vm768, %v782, %v784
      %v786 = vrot.slane %v745, 4
      %v787 = vsel %vm768, %v784, %v786
      %v788 = vrot.slane %v746, 4
      %v789 = vsel %vm768, %v786, %v788
      %v790 = vrot.slane %v747, 4
      %v791 = vsel %vm768, %v788, %v790
      %v792 = vrot.slane %v748, 4
      %v793 = vsel %vm768, %v790, %v792
      %v794 = vrot.slane %v749, 4
      %v795 = vsel %vm768, %v792, %v794
      %v796 = vrot.slane %v750, 4
      %v797 = vsel %vm768, %v794, %v796
      %v798 = vrot.slane %v751, 4
      %v799 = vsel %vm768, %v796, %v798
      %817 = vst [vmem:[#allocation2 + $0x8] sm:$0xf0] %v769
      %818 = vst [vmem:[#allocation2 + $0x10] sm:$0xff] %v771
      %819 = vst [vmem:[#allocation2 + $0x18] sm:$0xff] %v773
      %820 = vst [vmem:[#allocation2 + $0x20] sm:$0xff] %v775
      %821 = vst [vmem:[#allocation2 + $0x28] sm:$0xff] %v777
      %822 = vst [vmem:[#allocation2 + $0x30] sm:$0xff] %v779
      %823 = vst [vmem:[#allocation2 + $0x38] sm:$0xff] %v781
      %824 = vst [vmem:[#allocation2 + $0x40] sm:$0xff] %v783
      %825 = vst [vmem:[#allocation2 + $0x48] sm:$0xff] %v785
      %826 = vst [vmem:[#allocation2 + $0x50] sm:$0xff] %v787
      %827 = vst [vmem:[#allocation2 + $0x58] sm:$0xff] %v789
      %828 = vst [vmem:[#allocation2 + $0x60] sm:$0xff] %v791
      %829 = vst [vmem:[#allocation2 + $0x68] sm:$0xff] %v793
      %830 = vst [vmem:[#allocation2 + $0x70] sm:$0xff] %v795
      %831 = vst [vmem:[#allocation2 + $0x78] sm:$0xff] %v797
      %832 = vst [vmem:[#allocation2 + $0x80] sm:$0xff] %v799
      %833 = vst [vmem:[#allocation2 + $0x88] sm:$0xf] %v798
      %v834 = vlaneseq
      %v835 = vshrl.u32 %v834, 7
      %v836 = vadd.s32 %v835, 8
      %v837 = vadd.s32 %v835, 16
      %v838 = vadd.s32 %v835, 24
      %v839 = vadd.s32 %v835, 32
      %v840 = vadd.s32 %v835, 40
      %v841 = vadd.s32 %v835, 48
      %v842 = vadd.s32 %v835, 56
      %v843 = vadd.s32 %v835, 64
      %v844 = vadd.s32 %v835, 72
      %v845 = vadd.s32 %v835, 80
      %v846 = vadd.s32 %v835, 88
      %v847 = vadd.s32 %v835, 96
      %v848 = vadd.s32 %v835, 104
      %v849 = vadd.s32 %v835, 112
      %v850 = vadd.s32 %v835, 120
      %v851 = vadd.s32 %v835, 128
      %v852 = vadd.s32 %v835, 136
      %v853 = vadd.s32 %v835, 144
      %v854 = vadd.s32 %v835, 152
      %v855 = vadd.s32 %v835, 160
      %v856 = vadd.s32 %v835, 168
      %v857 = vadd.s32 %v835, 176
      %v858 = vadd.s32 %v835, 184
      %v859 = vadd.s32 %v835, 192
      %v860 = vadd.s32 %v835, 200
      %v861 = vadd.s32 %v835, 208
      %v862 = vadd.s32 %v835, 216
      %v863 = vadd.s32 %v835, 224
      %v864 = vadd.s32 %v835, 232
      %v865 = vadd.s32 %v835, 240
      %v866 = vadd.s32 %v835, 248
      %vm867 = vcmp.lt.s32.totalorder %v835, 0
      %v868 = vsub.s32 0, %v835
      %v869 = vsel %vm867, %v868, %v835
      %v870 = vshrl.u32 %v869, 4
      %v871 = vand.u32 %v869, 15
      %v872 = vsub.s32 0, %v871
      %v873 = vsel %vm867, %v872, %v871
      %vm874 = vcmp.lt.s32.totalorder %v836, 0
      %v875 = vsub.s32 0, %v836
      %v876 = vsel %vm874, %v875, %v836
      %v877 = vshrl.u32 %v876, 4
      %v878 = vand.u32 %v876, 15
      %v879 = vsub.s32 0, %v878
      %v880 = vsel %vm874, %v879, %v878
      %vm881 = vcmp.lt.s32.totalorder %v837, 0
      %v882 = vsub.s32 0, %v837
      %v883 = vsel %vm881, %v882, %v837
      %v884 = vshrl.u32 %v883, 4
      %v885 = vand.u32 %v883, 15
      %v886 = vsub.s32 0, %v885
      %v887 = vsel %vm881, %v886, %v885
      %vm888 = vcmp.lt.s32.totalorder %v838, 0
      %v889 = vsub.s32 0, %v838
      %v890 = vsel %vm888, %v889, %v838
      %v891 = vshrl.u32 %v890, 4
      %v892 = vand.u32 %v890, 15
      %v893 = vsub.s32 0, %v892
      %v894 = vsel %vm888, %v893, %v892
      %vm895 = vcmp.lt.s32.totalorder %v839, 0
      %v896 = vsub.s32 0, %v839
      %v897 = vsel %vm895, %v896, %v839
      %v898 = vshrl.u32 %v897, 4
      %v899 = vand.u32 %v897, 15
      %v900 = vsub.s32 0, %v899
      %v901 = vsel %vm895, %v900, %v899
      %vm902 = vcmp.lt.s32.totalorder %v840, 0
      %v903 = vsub.s32 0, %v840
      %v904 = vsel %vm902, %v903, %v840
      %v905 = vshrl.u32 %v904, 4
      %v906 = vand.u32 %v904, 15
      %v907 = vsub.s32 0, %v906
      %v908 = vsel %vm902, %v907, %v906
      %vm909 = vcmp.lt.s32.totalorder %v841, 0
      %v910 = vsub.s32 0, %v841
      %v911 = vsel %vm909, %v910, %v841
      %v912 = vshrl.u32 %v911, 4
      %v913 = vand.u32 %v911, 15
      %v914 = vsub.s32 0, %v913
      %v915 = vsel %vm909, %v914, %v913
      %vm916 = vcmp.lt.s32.totalorder %v842, 0
      %v917 = vsub.s32 0, %v842
      %v918 = vsel %vm916, %v917, %v842
      %v919 = vshrl.u32 %v918, 4
      %v920 = vand.u32 %v918, 15
      %v921 = vsub.s32 0, %v920
      %v922 = vsel %vm916, %v921, %v920
      %vm923 = vcmp.lt.s32.totalorder %v843, 0
      %v924 = vsub.s32 0, %v843
      %v925 = vsel %vm923, %v924, %v843
      %v926 = vshrl.u32 %v925, 4
      %v927 = vand.u32 %v925, 15
      %v928 = vsub.s32 0, %v927
      %v929 = vsel %vm923, %v928, %v927
      %vm930 = vcmp.lt.s32.totalorder %v844, 0
      %v931 = vsub.s32 0, %v844
      %v932 = vsel %vm930, %v931, %v844
      %v933 = vshrl.u32 %v932, 4
      %v934 = vand.u32 %v932, 15
      %v935 = vsub.s32 0, %v934
      %v936 = vsel %vm930, %v935, %v934
      %vm937 = vcmp.lt.s32.totalorder %v845, 0
      %v938 = vsub.s32 0, %v845
      %v939 = vsel %vm937, %v938, %v845
      %v940 = vshrl.u32 %v939, 4
      %v941 = vand.u32 %v939, 15
      %v942 = vsub.s32 0, %v941
      %v943 = vsel %vm937, %v942, %v941
      %vm944 = vcmp.lt.s32.totalorder %v846, 0
      %v945 = vsub.s32 0, %v846
      %v946 = vsel %vm944, %v945, %v846
      %v947 = vshrl.u32 %v946, 4
      %v948 = vand.u32 %v946, 15
      %v949 = vsub.s32 0, %v948
      %v950 = vsel %vm944, %v949, %v948
      %vm951 = vcmp.lt.s32.totalorder %v847, 0
      %v952 = vsub.s32 0, %v847
      %v953 = vsel %vm951, %v952, %v847
      %v954 = vshrl.u32 %v953, 4
      %v955 = vand.u32 %v953, 15
      %v956 = vsub.s32 0, %v955
      %v957 = vsel %vm951, %v956, %v955
      %vm958 = vcmp.lt.s32.totalorder %v848, 0
      %v959 = vsub.s32 0, %v848
      %v960 = vsel %vm958, %v959, %v848
      %v961 = vshrl.u32 %v960, 4
      %v962 = vand.u32 %v960, 15
      %v963 = vsub.s32 0, %v962
      %v964 = vsel %vm958, %v963, %v962
      %vm965 = vcmp.lt.s32.totalorder %v849, 0
      %v966 = vsub.s32 0, %v849
      %v967 = vsel %vm965, %v966, %v849
      %v968 = vshrl.u32 %v967, 4
      %v969 = vand.u32 %v967, 15
      %v970 = vsub.s32 0, %v969
      %v971 = vsel %vm965, %v970, %v969
      %vm972 = vcmp.lt.s32.totalorder %v850, 0
      %v973 = vsub.s32 0, %v850
      %v974 = vsel %vm972, %v973, %v850
      %v975 = vshrl.u32 %v974, 4
      %v976 = vand.u32 %v974, 15
      %v977 = vsub.s32 0, %v976
      %v978 = vsel %vm972, %v977, %v976
      %vm979 = vcmp.lt.s32.totalorder %v851, 0
      %v980 = vsub.s32 0, %v851
      %v981 = vsel %vm979, %v980, %v851
      %v982 = vshrl.u32 %v981, 4
      %v983 = vand.u32 %v981, 15
      %v984 = vsub.s32 0, %v983
      %v985 = vsel %vm979, %v984, %v983
      %vm986 = vcmp.lt.s32.totalorder %v852, 0
      %v987 = vsub.s32 0, %v852
      %v988 = vsel %vm986, %v987, %v852
      %v989 = vshrl.u32 %v988, 4
      %v990 = vand.u32 %v988, 15
      %v991 = vsub.s32 0, %v990
      %v992 = vsel %vm986, %v991, %v990
      %vm993 = vcmp.lt.s32.totalorder %v853, 0
      %v994 = vsub.s32 0, %v853
      %v995 = vsel %vm993, %v994, %v853
      %v996 = vshrl.u32 %v995, 4
      %v997 = vand.u32 %v995, 15
      %v998 = vsub.s32 0, %v997
      %v999 = vsel %vm993, %v998, %v997
      %vm1000 = vcmp.lt.s32.totalorder %v854, 0
      %v1001 = vsub.s32 0, %v854
      %v1002 = vsel %vm1000, %v1001, %v854
      %v1003 = vshrl.u32 %v1002, 4
      %v1004 = vand.u32 %v1002, 15
      %v1005 = vsub.s32 0, %v1004
      %v1006 = vsel %vm1000, %v1005, %v1004
      %vm1007 = vcmp.lt.s32.totalorder %v855, 0
      %v1008 = vsub.s32 0, %v855
      %v1009 = vsel %vm1007, %v1008, %v855
      %v1010 = vshrl.u32 %v1009, 4
      %v1011 = vand.u32 %v1009, 15
      %v1012 = vsub.s32 0, %v1011
      %v1013 = vsel %vm1007, %v1012, %v1011
      %vm1014 = vcmp.lt.s32.totalorder %v856, 0
      %v1015 = vsub.s32 0, %v856
      %v1016 = vsel %vm1014, %v1015, %v856
      %v1017 = vshrl.u32 %v1016, 4
      %v1018 = vand.u32 %v1016, 15
      %v1019 = vsub.s32 0, %v1018
      %v1020 = vsel %vm1014, %v1019, %v1018
      %vm1021 = vcmp.lt.s32.totalorder %v857, 0
      %v1022 = vsub.s32 0, %v857
      %v1023 = vsel %vm1021, %v1022, %v857
      %v1024 = vshrl.u32 %v1023, 4
      %v1025 = vand.u32 %v1023, 15
      %v1026 = vsub.s32 0, %v1025
      %v1027 = vsel %vm1021, %v1026, %v1025
      %vm1028 = vcmp.lt.s32.totalorder %v858, 0
      %v1029 = vsub.s32 0, %v858
      %v1030 = vsel %vm1028, %v1029, %v858
      %v1031 = vshrl.u32 %v1030, 4
      %v1032 = vand.u32 %v1030, 15
      %v1033 = vsub.s32 0, %v1032
      %v1034 = vsel %vm1028, %v1033, %v1032
      %vm1035 = vcmp.lt.s32.totalorder %v859, 0
      %v1036 = vsub.s32 0, %v859
      %v1037 = vsel %vm1035, %v1036, %v859
      %v1038 = vshrl.u32 %v1037, 4
      %v1039 = vand.u32 %v1037, 15
      %v1040 = vsub.s32 0, %v1039
      %v1041 = vsel %vm1035, %v1040, %v1039
      %vm1042 = vcmp.lt.s32.totalorder %v860, 0
      %v1043 = vsub.s32 0, %v860
      %v1044 = vsel %vm1042, %v1043, %v860
      %v1045 = vshrl.u32 %v1044, 4
      %v1046 = vand.u32 %v1044, 15
      %v1047 = vsub.s32 0, %v1046
      %v1048 = vsel %vm1042, %v1047, %v1046
      %vm1049 = vcmp.lt.s32.totalorder %v861, 0
      %v1050 = vsub.s32 0, %v861
      %v1051 = vsel %vm1049, %v1050, %v861
      %v1052 = vshrl.u32 %v1051, 4
      %v1053 = vand.u32 %v1051, 15
      %v1054 = vsub.s32 0, %v1053
      %v1055 = vsel %vm1049, %v1054, %v1053
      %vm1056 = vcmp.lt.s32.totalorder %v862, 0
      %v1057 = vsub.s32 0, %v862
      %v1058 = vsel %vm1056, %v1057, %v862
      %v1059 = vshrl.u32 %v1058, 4
      %v1060 = vand.u32 %v1058, 15
      %v1061 = vsub.s32 0, %v1060
      %v1062 = vsel %vm1056, %v1061, %v1060
      %vm1063 = vcmp.lt.s32.totalorder %v863, 0
      %v1064 = vsub.s32 0, %v863
      %v1065 = vsel %vm1063, %v1064, %v863
      %v1066 = vshrl.u32 %v1065, 4
      %v1067 = vand.u32 %v1065, 15
      %v1068 = vsub.s32 0, %v1067
      %v1069 = vsel %vm1063, %v1068, %v1067
      %vm1070 = vcmp.lt.s32.totalorder %v864, 0
      %v1071 = vsub.s32 0, %v864
      %v1072 = vsel %vm1070, %v1071, %v864
      %v1073 = vshrl.u32 %v1072, 4
      %v1074 = vand.u32 %v1072, 15
      %v1075 = vsub.s32 0, %v1074
      %v1076 = vsel %vm1070, %v1075, %v1074
      %vm1077 = vcmp.lt.s32.totalorder %v865, 0
      %v1078 = vsub.s32 0, %v865
      %v1079 = vsel %vm1077, %v1078, %v865
      %v1080 = vshrl.u32 %v1079, 4
      %v1081 = vand.u32 %v1079, 15
      %v1082 = vsub.s32 0, %v1081
      %v1083 = vsel %vm1077, %v1082, %v1081
      %vm1084 = vcmp.lt.s32.totalorder %v866, 0
      %v1085 = vsub.s32 0, %v866
      %v1086 = vsel %vm1084, %v1085, %v866
      %v1087 = vshrl.u32 %v1086, 4
      %v1088 = vand.u32 %v1086, 15
      %v1089 = vsub.s32 0, %v1088
      %v1090 = vsel %vm1084, %v1089, %v1088
      %vm1091 = vcmp.ne.s32.totalorder %v873, 0
      %vm1092 = vcmp.ne.s32.totalorder %v880, 0
      %vm1093 = vcmp.ne.s32.totalorder %v887, 0
      %vm1094 = vcmp.ne.s32.totalorder %v894, 0
      %vm1095 = vcmp.ne.s32.totalorder %v901, 0
      %vm1096 = vcmp.ne.s32.totalorder %v908, 0
      %vm1097 = vcmp.ne.s32.totalorder %v915, 0
      %vm1098 = vcmp.ne.s32.totalorder %v922, 0
      %vm1099 = vcmp.ne.s32.totalorder %v929, 0
      %vm1100 = vcmp.ne.s32.totalorder %v936, 0
      %vm1101 = vcmp.ne.s32.totalorder %v943, 0
      %vm1102 = vcmp.ne.s32.totalorder %v950, 0
      %vm1103 = vcmp.ne.s32.totalorder %v957, 0
      %vm1104 = vcmp.ne.s32.totalorder %v964, 0
      %vm1105 = vcmp.ne.s32.totalorder %v971, 0
      %vm1106 = vcmp.ne.s32.totalorder %v978, 0
      %vm1107 = vcmp.ne.s32.totalorder %v985, 0
      %vm1108 = vcmp.ne.s32.totalorder %v992, 0
      %vm1109 = vcmp.ne.s32.totalorder %v999, 0
      %vm1110 = vcmp.ne.s32.totalorder %v1006, 0
      %vm1111 = vcmp.ne.s32.totalorder %v1013, 0
      %vm1112 = vcmp.ne.s32.totalorder %v1020, 0
      %vm1113 = vcmp.ne.s32.totalorder %v1027, 0
      %vm1114 = vcmp.ne.s32.totalorder %v1034, 0
      %vm1115 = vcmp.ne.s32.totalorder %v1041, 0
      %vm1116 = vcmp.ne.s32.totalorder %v1048, 0
      %vm1117 = vcmp.ne.s32.totalorder %v1055, 0
      %vm1118 = vcmp.ne.s32.totalorder %v1062, 0
      %vm1119 = vcmp.ne.s32.totalorder %v1069, 0
      %vm1120 = vcmp.ne.s32.totalorder %v1076, 0
      %vm1121 = vcmp.ne.s32.totalorder %v1083, 0
      %vm1122 = vcmp.ne.s32.totalorder %v1090, 0
      %vm1123 = vcmp.lt.s32.totalorder %v873, 0
      %vm1124 = vcmp.lt.s32.totalorder %v880, 0
      %vm1125 = vcmp.lt.s32.totalorder %v887, 0
      %vm1126 = vcmp.lt.s32.totalorder %v894, 0
      %vm1127 = vcmp.lt.s32.totalorder %v901, 0
      %vm1128 = vcmp.lt.s32.totalorder %v908, 0
      %vm1129 = vcmp.lt.s32.totalorder %v915, 0
      %vm1130 = vcmp.lt.s32.totalorder %v922, 0
      %vm1131 = vcmp.lt.s32.totalorder %v929, 0
      %vm1132 = vcmp.lt.s32.totalorder %v936, 0
      %vm1133 = vcmp.lt.s32.totalorder %v943, 0
      %vm1134 = vcmp.lt.s32.totalorder %v950, 0
      %vm1135 = vcmp.lt.s32.totalorder %v957, 0
      %vm1136 = vcmp.lt.s32.totalorder %v964, 0
      %vm1137 = vcmp.lt.s32.totalorder %v971, 0
      %vm1138 = vcmp.lt.s32.totalorder %v978, 0
      %vm1139 = vcmp.lt.s32.totalorder %v985, 0
      %vm1140 = vcmp.lt.s32.totalorder %v992, 0
      %vm1141 = vcmp.lt.s32.totalorder %v999, 0
      %vm1142 = vcmp.lt.s32.totalorder %v1006, 0
      %vm1143 = vcmp.lt.s32.totalorder %v1013, 0
      %vm1144 = vcmp.lt.s32.totalorder %v1020, 0
      %vm1145 = vcmp.lt.s32.totalorder %v1027, 0
      %vm1146 = vcmp.lt.s32.totalorder %v1034, 0
      %vm1147 = vcmp.lt.s32.totalorder %v1041, 0
      %vm1148 = vcmp.lt.s32.totalorder %v1048, 0
      %vm1149 = vcmp.lt.s32.totalorder %v1055, 0
      %vm1150 = vcmp.lt.s32.totalorder %v1062, 0
      %vm1151 = vcmp.lt.s32.totalorder %v1069, 0
      %vm1152 = vcmp.lt.s32.totalorder %v1076, 0
      %vm1153 = vcmp.lt.s32.totalorder %v1083, 0
      %vm1154 = vcmp.lt.s32.totalorder %v1090, 0
      %vm1155 = vmand %vm1123, %vm1091
      %vm1156 = vmand %vm1124, %vm1092
      %vm1157 = vmand %vm1125, %vm1093
      %vm1158 = vmand %vm1126, %vm1094
      %vm1159 = vmand %vm1127, %vm1095
      %vm1160 = vmand %vm1128, %vm1096
      %vm1161 = vmand %vm1129, %vm1097
      %vm1162 = vmand %vm1130, %vm1098
      %vm1163 = vmand %vm1131, %vm1099
      %vm1164 = vmand %vm1132, %vm1100
      %vm1165 = vmand %vm1133, %vm1101
      %vm1166 = vmand %vm1134, %vm1102
      %vm1167 = vmand %vm1135, %vm1103
      %vm1168 = vmand %vm1136, %vm1104
      %vm1169 = vmand %vm1137, %vm1105
      %vm1170 = vmand %vm1138, %vm1106
      %vm1171 = vmand %vm1139, %vm1107
      %vm1172 = vmand %vm1140, %vm1108
      %vm1173 = vmand %vm1141, %vm1109
      %vm1174 = vmand %vm1142, %vm1110
      %vm1175 = vmand %vm1143, %vm1111
      %vm1176 = vmand %vm1144, %vm1112
      %vm1177 = vmand %vm1145, %vm1113
      %vm1178 = vmand %vm1146, %vm1114
      %vm1179 = vmand %vm1147, %vm1115
      %vm1180 = vmand %vm1148, %vm1116
      %vm1181 = vmand %vm1149, %vm1117
      %vm1182 = vmand %vm1150, %vm1118
      %vm1183 = vmand %vm1151, %vm1119
      %vm1184 = vmand %vm1152, %vm1120
      %vm1185 = vmand %vm1153, %vm1121
      %vm1186 = vmand %vm1154, %vm1122
      %v1187 = vadd.s32 %v873, 16
      %v1188 = vadd.s32 %v880, 16
      %v1189 = vadd.s32 %v887, 16
      %v1190 = vadd.s32 %v894, 16
      %v1191 = vadd.s32 %v901, 16
      %v1192 = vadd.s32 %v908, 16
      %v1193 = vadd.s32 %v915, 16
      %v1194 = vadd.s32 %v922, 16
      %v1195 = vadd.s32 %v929, 16
      %v1196 = vadd.s32 %v936, 16
      %v1197 = vadd.s32 %v943, 16
      %v1198 = vadd.s32 %v950, 16
      %v1199 = vadd.s32 %v957, 16
      %v1200 = vadd.s32 %v964, 16
      %v1201 = vadd.s32 %v971, 16
      %v1202 = vadd.s32 %v978, 16
      %v1203 = vadd.s32 %v985, 16
      %v1204 = vadd.s32 %v992, 16
      %v1205 = vadd.s32 %v999, 16
      %v1206 = vadd.s32 %v1006, 16
      %v1207 = vadd.s32 %v1013, 16
      %v1208 = vadd.s32 %v1020, 16
      %v1209 = vadd.s32 %v1027, 16
      %v1210 = vadd.s32 %v1034, 16
      %v1211 = vadd.s32 %v1041, 16
      %v1212 = vadd.s32 %v1048, 16
      %v1213 = vadd.s32 %v1055, 16
      %v1214 = vadd.s32 %v1062, 16
      %v1215 = vadd.s32 %v1069, 16
      %v1216 = vadd.s32 %v1076, 16
      %v1217 = vadd.s32 %v1083, 16
      %v1218 = vadd.s32 %v1090, 16
      %v1219 = vsel %vm1155, %v1187, %v873
      %v1220 = vsel %vm1156, %v1188, %v880
      %v1221 = vsel %vm1157, %v1189, %v887
      %v1222 = vsel %vm1158, %v1190, %v894
      %v1223 = vsel %vm1159, %v1191, %v901
      %v1224 = vsel %vm1160, %v1192, %v908
      %v1225 = vsel %vm1161, %v1193, %v915
      %v1226 = vsel %vm1162, %v1194, %v922
      %v1227 = vsel %vm1163, %v1195, %v929
      %v1228 = vsel %vm1164, %v1196, %v936
      %v1229 = vsel %vm1165, %v1197, %v943
      %v1230 = vsel %vm1166, %v1198, %v950
      %v1231 = vsel %vm1167, %v1199, %v957
      %v1232 = vsel %vm1168, %v1200, %v964
      %v1233 = vsel %vm1169, %v1201, %v971
      %v1234 = vsel %vm1170, %v1202, %v978
      %v1235 = vsel %vm1171, %v1203, %v985
      %v1236 = vsel %vm1172, %v1204, %v992
      %v1237 = vsel %vm1173, %v1205, %v999
      %v1238 = vsel %vm1174, %v1206, %v1006
      %v1239 = vsel %vm1175, %v1207, %v1013
      %v1240 = vsel %vm1176, %v1208, %v1020
      %v1241 = vsel %vm1177, %v1209, %v1027
      %v1242 = vsel %vm1178, %v1210, %v1034
      %v1243 = vsel %vm1179, %v1211, %v1041
      %v1244 = vsel %vm1180, %v1212, %v1048
      %v1245 = vsel %vm1181, %v1213, %v1055
      %v1246 = vsel %vm1182, %v1214, %v1062
      %v1247 = vsel %vm1183, %v1215, %v1069
      %v1248 = vsel %vm1184, %v1216, %v1076
      %v1249 = vsel %vm1185, %v1217, %v1083
      %v1250 = vsel %vm1186, %v1218, %v1090
      %vm1251 = vcmp.gt.s32.totalorder %v1219, 0
      %vm1252 = vcmp.gt.s32.totalorder %v1220, 0
      %vm1253 = vcmp.gt.s32.totalorder %v1221, 0
      %vm1254 = vcmp.gt.s32.totalorder %v1222, 0
      %vm1255 = vcmp.gt.s32.totalorder %v1223, 0
      %vm1256 = vcmp.gt.s32.totalorder %v1224, 0
      %vm1257 = vcmp.gt.s32.totalorder %v1225, 0
      %vm1258 = vcmp.gt.s32.totalorder %v1226, 0
      %vm1259 = vcmp.gt.s32.totalorder %v1227, 0
      %vm1260 = vcmp.gt.s32.totalorder %v1228, 0
      %vm1261 = vcmp.gt.s32.totalorder %v1229, 0
      %vm1262 = vcmp.gt.s32.totalorder %v1230, 0
      %vm1263 = vcmp.gt.s32.totalorder %v1231, 0
      %vm1264 = vcmp.gt.s32.totalorder %v1232, 0
      %vm1265 = vcmp.gt.s32.totalorder %v1233, 0
      %vm1266 = vcmp.gt.s32.totalorder %v1234, 0
      %vm1267 = vcmp.gt.s32.totalorder %v1235, 0
      %vm1268 = vcmp.gt.s32.totalorder %v1236, 0
      %vm1269 = vcmp.gt.s32.totalorder %v1237, 0
      %vm1270 = vcmp.gt.s32.totalorder %v1238, 0
      %vm1271 = vcmp.gt.s32.totalorder %v1239, 0
      %vm1272 = vcmp.gt.s32.totalorder %v1240, 0
      %vm1273 = vcmp.gt.s32.totalorder %v1241, 0
      %vm1274 = vcmp.gt.s32.totalorder %v1242, 0
      %vm1275 = vcmp.gt.s32.totalorder %v1243, 0
      %vm1276 = vcmp.gt.s32.totalorder %v1244, 0
      %vm1277 = vcmp.gt.s32.totalorder %v1245, 0
      %vm1278 = vcmp.gt.s32.totalorder %v1246, 0
      %vm1279 = vcmp.gt.s32.totalorder %v1247, 0
      %vm1280 = vcmp.gt.s32.totalorder %v1248, 0
      %vm1281 = vcmp.gt.s32.totalorder %v1249, 0
      %vm1282 = vcmp.gt.s32.totalorder %v1250, 0
      %v1283 = vsel %vm1251, 1, 0
      %v1284 = vsel %vm1252, 1, 0
      %v1285 = vsel %vm1253, 1, 0
      %v1286 = vsel %vm1254, 1, 0
      %v1287 = vsel %vm1255, 1, 0
      %v1288 = vsel %vm1256, 1, 0
      %v1289 = vsel %vm1257, 1, 0
      %v1290 = vsel %vm1258, 1, 0
      %v1291 = vsel %vm1259, 1, 0
      %v1292 = vsel %vm1260, 1, 0
      %v1293 = vsel %vm1261, 1, 0
      %v1294 = vsel %vm1262, 1, 0
      %v1295 = vsel %vm1263, 1, 0
      %v1296 = vsel %vm1264, 1, 0
      %v1297 = vsel %vm1265, 1, 0
      %v1298 = vsel %vm1266, 1, 0
      %v1299 = vsel %vm1267, 1, 0
      %v1300 = vsel %vm1268, 1, 0
      %v1301 = vsel %vm1269, 1, 0
      %v1302 = vsel %vm1270, 1, 0
      %v1303 = vsel %vm1271, 1, 0
      %v1304 = vsel %vm1272, 1, 0
      %v1305 = vsel %vm1273, 1, 0
      %v1306 = vsel %vm1274, 1, 0
      %v1307 = vsel %vm1275, 1, 0
      %v1308 = vsel %vm1276, 1, 0
      %v1309 = vsel %vm1277, 1, 0
      %v1310 = vsel %vm1278, 1, 0
      %v1311 = vsel %vm1279, 1, 0
      %v1312 = vsel %vm1280, 1, 0
      %v1313 = vsel %vm1281, 1, 0
      %v1314 = vsel %vm1282, 1, 0
      %v1315 = vcvt.s32.f32 %v1283
      %v1316 = vcvt.s32.f32 %v1284
      %v1317 = vcvt.s32.f32 %v1285
      %v1318 = vcvt.s32.f32 %v1286
      %v1319 = vcvt.s32.f32 %v1287
      %v1320 = vcvt.s32.f32 %v1288
      %v1321 = vcvt.s32.f32 %v1289
      %v1322 = vcvt.s32.f32 %v1290
      %v1323 = vcvt.s32.f32 %v1291
      %v1324 = vcvt.s32.f32 %v1292
      %v1325 = vcvt.s32.f32 %v1293
      %v1326 = vcvt.s32.f32 %v1294
      %v1327 = vcvt.s32.f32 %v1295
      %v1328 = vcvt.s32.f32 %v1296
      %v1329 = vcvt.s32.f32 %v1297
      %v1330 = vcvt.s32.f32 %v1298
      %v1331 = vcvt.s32.f32 %v1299
      %v1332 = vcvt.s32.f32 %v1300
      %v1333 = vcvt.s32.f32 %v1301
      %v1334 = vcvt.s32.f32 %v1302
      %v1335 = vcvt.s32.f32 %v1303
      %v1336 = vcvt.s32.f32 %v1304
      %v1337 = vcvt.s32.f32 %v1305
      %v1338 = vcvt.s32.f32 %v1306
      %v1339 = vcvt.s32.f32 %v1307
      %v1340 = vcvt.s32.f32 %v1308
      %v1341 = vcvt.s32.f32 %v1309
      %v1342 = vcvt.s32.f32 %v1310
      %v1343 = vcvt.s32.f32 %v1311
      %v1344 = vcvt.s32.f32 %v1312
      %v1345 = vcvt.s32.f32 %v1313
      %v1346 = vcvt.s32.f32 %v1314
      %vm1347 = vcmp.lt.s32.totalorder %v1219, 15
      %vm1348 = vcmp.lt.s32.totalorder %v1220, 15
      %vm1349 = vcmp.lt.s32.totalorder %v1221, 15
      %vm1350 = vcmp.lt.s32.totalorder %v1222, 15
      %vm1351 = vcmp.lt.s32.totalorder %v1223, 15
      %vm1352 = vcmp.lt.s32.totalorder %v1224, 15
      %vm1353 = vcmp.lt.s32.totalorder %v1225, 15
      %vm1354 = vcmp.lt.s32.totalorder %v1226, 15
      %vm1355 = vcmp.lt.s32.totalorder %v1227, 15
      %vm1356 = vcmp.lt.s32.totalorder %v1228, 15
      %vm1357 = vcmp.lt.s32.totalorder %v1229, 15
      %vm1358 = vcmp.lt.s32.totalorder %v1230, 15
      %vm1359 = vcmp.lt.s32.totalorder %v1231, 15
      %vm1360 = vcmp.lt.s32.totalorder %v1232, 15
      %vm1361 = vcmp.lt.s32.totalorder %v1233, 15
      %vm1362 = vcmp.lt.s32.totalorder %v1234, 15
      %vm1363 = vcmp.lt.s32.totalorder %v1235, 15
      %vm1364 = vcmp.lt.s32.totalorder %v1236, 15
      %vm1365 = vcmp.lt.s32.totalorder %v1237, 15
      %vm1366 = vcmp.lt.s32.totalorder %v1238, 15
      %vm1367 = vcmp.lt.s32.totalorder %v1239, 15
      %vm1368 = vcmp.lt.s32.totalorder %v1240, 15
      %vm1369 = vcmp.lt.s32.totalorder %v1241, 15
      %vm1370 = vcmp.lt.s32.totalorder %v1242, 15
      %vm1371 = vcmp.lt.s32.totalorder %v1243, 15
      %vm1372 = vcmp.lt.s32.totalorder %v1244, 15
      %vm1373 = vcmp.lt.s32.totalorder %v1245, 15
      %vm1374 = vcmp.lt.s32.totalorder %v1246, 15
      %vm1375 = vcmp.lt.s32.totalorder %v1247, 15
      %vm1376 = vcmp.lt.s32.totalorder %v1248, 15
      %vm1377 = vcmp.lt.s32.totalorder %v1249, 15
      %vm1378 = vcmp.lt.s32.totalorder %v1250, 15
      %v1379 = vsel %vm1347, 1, 0
      %v1380 = vsel %vm1348, 1, 0
      %v1381 = vsel %vm1349, 1, 0
      %v1382 = vsel %vm1350, 1, 0
      %v1383 = vsel %vm1351, 1, 0
      %v1384 = vsel %vm1352, 1, 0
      %v1385 = vsel %vm1353, 1, 0
      %v1386 = vsel %vm1354, 1, 0
      %v1387 = vsel %vm1355, 1, 0
      %v1388 = vsel %vm1356, 1, 0
      %v1389 = vsel %vm1357, 1, 0
      %v1390 = vsel %vm1358, 1, 0
      %v1391 = vsel %vm1359, 1, 0
      %v1392 = vsel %vm1360, 1, 0
      %v1393 = vsel %vm1361, 1, 0
      %v1394 = vsel %vm1362, 1, 0
      %v1395 = vsel %vm1363, 1, 0
      %v1396 = vsel %vm1364, 1, 0
      %v1397 = vsel %vm1365, 1, 0
      %v1398 = vsel %vm1366, 1, 0
      %v1399 = vsel %vm1367, 1, 0
      %v1400 = vsel %vm1368, 1, 0
      %v1401 = vsel %vm1369, 1, 0
      %v1402 = vsel %vm1370, 1, 0
      %v1403 = vsel %vm1371, 1, 0
      %v1404 = vsel %vm1372, 1, 0
      %v1405 = vsel %vm1373, 1, 0
      %v1406 = vsel %vm1374, 1, 0
      %v1407 = vsel %vm1375, 1, 0
      %v1408 = vsel %vm1376, 1, 0
      %v1409 = vsel %vm1377, 1, 0
      %v1410 = vsel %vm1378, 1, 0
      %v1411 = vcvt.s32.f32 %v1379
      %v1412 = vcvt.s32.f32 %v1380
      %v1413 = vcvt.s32.f32 %v1381
      %v1414 = vcvt.s32.f32 %v1382
      %v1415 = vcvt.s32.f32 %v1383
      %v1416 = vcvt.s32.f32 %v1384
      %v1417 = vcvt.s32.f32 %v1385
      %v1418 = vcvt.s32.f32 %v1386
      %v1419 = vcvt.s32.f32 %v1387
      %v1420 = vcvt.s32.f32 %v1388
      %v1421 = vcvt.s32.f32 %v1389
      %v1422 = vcvt.s32.f32 %v1390
      %v1423 = vcvt.s32.f32 %v1391
      %v1424 = vcvt.s32.f32 %v1392
      %v1425 = vcvt.s32.f32 %v1393
      %v1426 = vcvt.s32.f32 %v1394
      %v1427 = vcvt.s32.f32 %v1395
      %v1428 = vcvt.s32.f32 %v1396
      %v1429 = vcvt.s32.f32 %v1397
      %v1430 = vcvt.s32.f32 %v1398
      %v1431 = vcvt.s32.f32 %v1399
      %v1432 = vcvt.s32.f32 %v1400
      %v1433 = vcvt.s32.f32 %v1401
      %v1434 = vcvt.s32.f32 %v1402
      %v1435 = vcvt.s32.f32 %v1403
      %v1436 = vcvt.s32.f32 %v1404
      %v1437 = vcvt.s32.f32 %v1405
      %v1438 = vcvt.s32.f32 %v1406
      %v1439 = vcvt.s32.f32 %v1407
      %v1440 = vcvt.s32.f32 %v1408
      %v1441 = vcvt.s32.f32 %v1409
      %v1442 = vcvt.s32.f32 %v1410
      %v1443 = vld [vmem:[#allocation2] sm:$0xf8]
      %v1444 = vld [vmem:[#allocation2 + $0x8] sm:$0xff]
      %v1445 = vld [vmem:[#allocation2 + $0x10] sm:$0xff]
      %v1446 = vld [vmem:[#allocation2 + $0x18] sm:$0xff]
      %v1447 = vld [vmem:[#allocation2 + $0x20] sm:$0xff]
      %v1448 = vld [vmem:[#allocation2 + $0x28] sm:$0xff]
      %v1449 = vld [vmem:[#allocation2 + $0x30] sm:$0xff]
      %v1450 = vld [vmem:[#allocation2 + $0x38] sm:$0xff]
      %v1451 = vld [vmem:[#allocation2 + $0x40] sm:$0xff]
      %v1452 = vld [vmem:[#allocation2 + $0x48] sm:$0xff]
      %v1453 = vld [vmem:[#allocation2 + $0x50] sm:$0xff]
      %v1454 = vld [vmem:[#allocation2 + $0x58] sm:$0xff]
      %v1455 = vld [vmem:[#allocation2 + $0x60] sm:$0xff]
      %v1456 = vld [vmem:[#allocation2 + $0x68] sm:$0xff]
      %v1457 = vld [vmem:[#allocation2 + $0x70] sm:$0xff]
      %v1458 = vld [vmem:[#allocation2 + $0x78] sm:$0xff]
      %v1459 = vld [vmem:[#allocation2 + $0x80] sm:$0xf]
      %v1460 = vld [vmem:[%s2] sm:$0xf]
      %v1461 = vld [vmem:[%s2 + $0x4] sm:$0xf]
      %v1462 = vld [vmem:[%s2 + $0x8] sm:$0xf]
      %v1463 = vld [vmem:[%s2 + $0xc] sm:$0xf]
      %v1464 = vld [vmem:[%s2 + $0x10] sm:$0xf]
      %v1465 = vld [vmem:[%s2 + $0x14] sm:$0xf]
      %v1466 = vld [vmem:[%s2 + $0x18] sm:$0xf]
      %v1467 = vld [vmem:[%s2 + $0x1c] sm:$0xf]
      %v1468 = vld [vmem:[%s2 + $0x20] sm:$0xf]
      %v1469 = vld [vmem:[%s2 + $0x24] sm:$0xf]
      %v1470 = vld [vmem:[%s2 + $0x28] sm:$0xf]
      %v1471 = vld [vmem:[%s2 + $0x2c] sm:$0xf]
      %v1472 = vld [vmem:[%s2 + $0x30] sm:$0xf]
      %v1473 = vld [vmem:[%s2 + $0x34] sm:$0xf]
      %v1474 = vld [vmem:[%s2 + $0x38] sm:$0xf]
      %v1475 = vld [vmem:[%s2 + $0x3c] sm:$0xf]
      %vm1476 = vsmask.f32 4352
      %v1478 = vshrl.u32 %v1443, 16
      %v1480 = vrot.slane %v1478, 3
      %v1481 = vshll.u32 %v1443, 16
      %v1483 = vrot.slane %v1481, 4
      %v1484 = vor.u32 %v1480, %v1483
      %v1486 = vshrl.u32 %v1444, 16
      %v1488 = vrot.slane %v1486, 3
      %v1489 = vshll.u32 %v1444, 16
      %v1491 = vrot.slane %v1489, 4
      %v1492 = vor.u32 %v1488, %v1491
      %v1493 = vsel %vm1476, %v1484, %v1492
      %v1495 = vshrl.u32 %v1445, 16
      %v1497 = vrot.slane %v1495, 3
      %v1498 = vshll.u32 %v1445, 16
      %v1500 = vrot.slane %v1498, 4
      %v1501 = vor.u32 %v1497, %v1500
      %v1502 = vsel %vm1476, %v1492, %v1501
      %v1504 = vshrl.u32 %v1446, 16
      %v1506 = vrot.slane %v1504, 3
      %v1507 = vshll.u32 %v1446, 16
      %v1509 = vrot.slane %v1507, 4
      %v1510 = vor.u32 %v1506, %v1509
      %v1511 = vsel %vm1476, %v1501, %v1510
      %v1513 = vshrl.u32 %v1447, 16
      %v1515 = vrot.slane %v1513, 3
      %v1516 = vshll.u32 %v1447, 16
      %v1518 = vrot.slane %v1516, 4
      %v1519 = vor.u32 %v1515, %v1518
      %v1520 = vsel %vm1476, %v1510, %v1519
      %v1522 = vshrl.u32 %v1448, 16
      %v1524 = vrot.slane %v1522, 3
      %v1525 = vshll.u32 %v1448, 16
      %v1527 = vrot.slane %v1525, 4
      %v1528 = vor.u32 %v1524, %v1527
      %v1529 = vsel %vm1476, %v1519, %v1528
      %v1531 = vshrl.u32 %v1449, 16
      %v1533 = vrot.slane %v1531, 3
      %v1534 = vshll.u32 %v1449, 16
      %v1536 = vrot.slane %v1534, 4
      %v1537 = vor.u32 %v1533, %v1536
      %v1538 = vsel %vm1476, %v1528, %v1537
      %v1540 = vshrl.u32 %v1450, 16
      %v1542 = vrot.slane %v1540, 3
      %v1543 = vshll.u32 %v1450, 16
      %v1545 = vrot.slane %v1543, 4
      %v1546 = vor.u32 %v1542, %v1545
      %v1547 = vsel %vm1476, %v1537, %v1546
      %v1549 = vshrl.u32 %v1451, 16
      %v1551 = vrot.slane %v1549, 3
      %v1552 = vshll.u32 %v1451, 16
      %v1554 = vrot.slane %v1552, 4
      %v1555 = vor.u32 %v1551, %v1554
      %v1556 = vsel %vm1476, %v1546, %v1555
      %v1558 = vshrl.u32 %v1452, 16
      %v1560 = vrot.slane %v1558, 3
      %v1561 = vshll.u32 %v1452, 16
      %v1563 = vrot.slane %v1561, 4
      %v1564 = vor.u32 %v1560, %v1563
      %v1565 = vsel %vm1476, %v1555, %v1564
      %v1567 = vshrl.u32 %v1453, 16
      %v1569 = vrot.slane %v1567, 3
      %v1570 = vshll.u32 %v1453, 16
      %v1572 = vrot.slane %v1570, 4
      %v1573 = vor.u32 %v1569, %v1572
      %v1574 = vsel %vm1476, %v1564, %v1573
      %v1576 = vshrl.u32 %v1454, 16
      %v1578 = vrot.slane %v1576, 3
      %v1579 = vshll.u32 %v1454, 16
      %v1581 = vrot.slane %v1579, 4
      %v1582 = vor.u32 %v1578, %v1581
      %v1583 = vsel %vm1476, %v1573, %v1582
      %v1585 = vshrl.u32 %v1455, 16
      %v1587 = vrot.slane %v1585, 3
      %v1588 = vshll.u32 %v1455, 16
      %v1590 = vrot.slane %v1588, 4
      %v1591 = vor.u32 %v1587, %v1590
      %v1592 = vsel %vm1476, %v1582, %v1591
      %v1594 = vshrl.u32 %v1456, 16
      %v1596 = vrot.slane %v1594, 3
      %v1597 = vshll.u32 %v1456, 16
      %v1599 = vrot.slane %v1597, 4
      %v1600 = vor.u32 %v1596, %v1599
      %v1601 = vsel %vm1476, %v1591, %v1600
      %v1603 = vshrl.u32 %v1457, 16
      %v1605 = vrot.slane %v1603, 3
      %v1606 = vshll.u32 %v1457, 16
      %v1608 = vrot.slane %v1606, 4
      %v1609 = vor.u32 %v1605, %v1608
      %v1610 = vsel %vm1476, %v1600, %v1609
      %v1612 = vshrl.u32 %v1458, 16
      %v1614 = vrot.slane %v1612, 3
      %v1615 = vshll.u32 %v1458, 16
      %v1617 = vrot.slane %v1615, 4
      %v1618 = vor.u32 %v1614, %v1617
      %v1619 = vsel %vm1476, %v1609, %v1618
      %v1621 = vshrl.u32 %v1459, 16
      %v1623 = vrot.slane %v1621, 3
      %v1624 = vshll.u32 %v1459, 16
      %v1626 = vrot.slane %v1624, 4
      %v1627 = vor.u32 %v1623, %v1626
      %v1628 = vsel %vm1476, %v1618, %v1627
      %v1661 = vunpack.c.l.b16 %v1460
      %v1662 = vunpack.c.l.b16 %v1461
      %v1663 = vunpack.c.l.b16 %v1462
      %v1664 = vunpack.c.l.b16 %v1463
      %v1665 = vunpack.c.l.b16 %v1464
      %v1666 = vunpack.c.l.b16 %v1465
      %v1667 = vunpack.c.l.b16 %v1466
      %v1668 = vunpack.c.l.b16 %v1467
      %v1669 = vunpack.c.l.b16 %v1468
      %v1670 = vunpack.c.l.b16 %v1469
      %v1671 = vunpack.c.l.b16 %v1470
      %v1672 = vunpack.c.l.b16 %v1471
      %v1673 = vunpack.c.l.b16 %v1472
      %v1674 = vunpack.c.l.b16 %v1473
      %v1675 = vunpack.c.l.b16 %v1474
      %v1676 = vunpack.c.l.b16 %v1475
      %v1677 = vpack.c.b16 %v1662, %v1661
      %v1678 = vpack.c.b16 %v1664, %v1663
      %v1679 = vpack.c.b16 %v1666, %v1665
      %v1680 = vpack.c.b16 %v1668, %v1667
      %v1681 = vpack.c.b16 %v1670, %v1669
      %v1682 = vpack.c.b16 %v1672, %v1671
      %v1683 = vpack.c.b16 %v1674, %v1673
      %v1684 = vpack.c.b16 %v1676, %v1675
      %1693 = vmatprep.subr.bf16.mxu0 0
      %1694 = vmatpush1.bf16.msra.mxu0 %v1677
      %1695 = vmatprep.subr.bf16.mxu0 0
      %1696 = vmatpush1.bf16.msra.mxu0 %v1678
      %1697 = vmatprep.subr.bf16.mxu0 0
      %1698 = vmatpush1.bf16.msra.mxu0 %v1679
      %1699 = vmatprep.subr.bf16.mxu0 0
      %1700 = vmatpush1.bf16.msra.mxu0 %v1680
      %1701 = vmatprep.subr.bf16.mxu0 0
      %1702 = vmatpush1.bf16.msra.mxu0 %v1681
      %1703 = vmatprep.subr.bf16.mxu0 0
      %1704 = vmatpush1.bf16.msra.mxu0 %v1682
      %1705 = vmatprep.subr.bf16.mxu0 0
      %1706 = vmatpush1.bf16.msra.mxu0 %v1683
      %1707 = vmatprep.subr.bf16.mxu0 0
      %1708 = vmatpush1.bf16.msra.mxu0 %v1684
      %1709 = vmatprep.subr.bf16.mxu0 0
      %1710 = vmatpush1.bf16.msra.mxu0 0
      %1711 = vmatprep.subr.bf16.mxu0 0
      %1712 = vmatpush1.bf16.msra.mxu0 0
      %1713 = vmatprep.subr.bf16.mxu0 0
      %1714 = vmatpush1.bf16.msra.mxu0 0
      %1715 = vmatprep.subr.bf16.mxu0 0
      %1716 = vmatpush1.bf16.msra.mxu0 0
      %1717 = vmatprep.subr.bf16.mxu0 0
      %1718 = vmatpush1.bf16.msra.mxu0 0
      %1719 = vmatprep.subr.bf16.mxu0 0
      %1720 = vmatpush1.bf16.msra.mxu0 0
      %1721 = vmatprep.subr.bf16.mxu0 0
      %1722 = vmatpush1.bf16.msra.mxu0 0
      %1723 = vmatprep.subr.bf16.mxu0 0
      %1724 = vmatpush1.bf16.msra.mxu0 0
      %1725 = vmatprep.mubr.bf16.mxu0 0
      %1726 = vmatmul.mubr.bf16.gmra.mrb[0].mxu0 %v1493
      %v1727 = vpop.f32.mrb[0].mxu0
      %v1728 = vadd.f32 0.0, %v1727
      %v1729 = vpop.f32.mrb[0].mxu0
      %v1730 = vpop.f32.mrb[0].mxu0
      %v1731 = vadd.f32 0.0, %v1730
      %v1732 = vpop.f32.mrb[0].mxu0
      %1733 = vmatprep.mubr.bf16.mxu0 0
      %1734 = vmatmul.mubr.bf16.gmra.mrb[0].mxu0 %v1502
      %v1735 = vpop.f32.mrb[0].mxu0
      %v1736 = vadd.f32 0.0, %v1735
      %v1737 = vpop.f32.mrb[0].mxu0
      %v1738 = vpop.f32.mrb[0].mxu0
      %v1739 = vadd.f32 0.0, %v1738
      %v1740 = vpop.f32.mrb[0].mxu0
      %1741 = vmatprep.mubr.bf16.mxu0 0
      %1742 = vmatmul.mubr.bf16.gmra.mrb[0].mxu0 %v1511
      %v1743 = vpop.f32.mrb[0].mxu0
      %v1744 = vadd.f32 0.0, %v1743
      %v1745 = vpop.f32.mrb[0].mxu0
      %v1746 = vpop.f32.mrb[0].mxu0
      %v1747 = vadd.f32 0.0, %v1746
      %v1748 = vpop.f32.mrb[0].mxu0
      %1749 = vmatprep.mubr.bf16.mxu0 0
      %1750 = vmatmul.mubr.bf16.gmra.mrb[0].mxu0 %v1520
      %v1751 = vpop.f32.mrb[0].mxu0
      %v1752 = vadd.f32 0.0, %v1751
      %v1753 = vpop.f32.mrb[0].mxu0
      %v1754 = vpop.f32.mrb[0].mxu0
      %v1755 = vadd.f32 0.0, %v1754
      %v1756 = vpop.f32.mrb[0].mxu0
      %1757 = vmatprep.mubr.bf16.mxu0 0
      %1758 = vmatmul.mubr.bf16.gmra.mrb[0].mxu0 %v1529
      %v1759 = vpop.f32.mrb[0].mxu0
      %v1760 = vadd.f32 0.0, %v1759
      %v1761 = vpop.f32.mrb[0].mxu0
      %v1762 = vpop.f32.mrb[0].mxu0
      %v1763 = vadd.f32 0.0, %v1762
      %v1764 = vpop.f32.mrb[0].mxu0
      %1765 = vmatprep.mubr.bf16.mxu0 0
      %1766 = vmatmul.mubr.bf16.gmra.mrb[0].mxu0 %v1538
      %v1767 = vpop.f32.mrb[0].mxu0
      %v1768 = vadd.f32 0.0, %v1767
      %v1769 = vpop.f32.mrb[0].mxu0
      %v1770 = vpop.f32.mrb[0].mxu0
      %v1771 = vadd.f32 0.0, %v1770
      %v1772 = vpop.f32.mrb[0].mxu0
      %1773 = vmatprep.mubr.bf16.mxu0 0
      %1774 = vmatmul.mubr.bf16.gmra.mrb[0].mxu0 %v1547
      %v1775 = vpop.f32.mrb[0].mxu0
      %v1776 = vadd.f32 0.0, %v1775
      %v1777 = vpop.f32.mrb[0].mxu0
      %v1778 = vpop.f32.mrb[0].mxu0
      %v1779 = vadd.f32 0.0, %v1778
      %v1780 = vpop.f32.mrb[0].mxu0
      %1781 = vmatprep.mubr.bf16.mxu0 0
      %1782 = vmatmul.mubr.bf16.gmra.mrb[0].mxu0 %v1556
      %v1783 = vpop.f32.mrb[0].mxu0
      %v1784 = vadd.f32 0.0, %v1783
      %v1785 = vpop.f32.mrb[0].mxu0
      %v1786 = vpop.f32.mrb[0].mxu0
      %v1787 = vadd.f32 0.0, %v1786
      %v1788 = vpop.f32.mrb[0].mxu0
      %1789 = vmatprep.mubr.bf16.mxu0 0
      %1790 = vmatmul.mubr.bf16.gmra.mrb[0].mxu0 %v1565
      %v1791 = vpop.f32.mrb[0].mxu0
      %v1792 = vadd.f32 0.0, %v1791
      %v1793 = vpop.f32.mrb[0].mxu0
      %v1794 = vpop.f32.mrb[0].mxu0
      %v1795 = vadd.f32 0.0, %v1794
      %v1796 = vpop.f32.mrb[0].mxu0
      %1797 = vmatprep.mubr.bf16.mxu0 0
      %1798 = vmatmul.mubr.bf16.gmra.mrb[0].mxu0 %v1574
      %v1799 = vpop.f32.mrb[0].mxu0
      %v1800 = vadd.f32 0.0, %v1799
      %v1801 = vpop.f32.mrb[0].mxu0
      %v1802 = vpop.f32.mrb[0].mxu0
      %v1803 = vadd.f32 0.0, %v1802
      %v1804 = vpop.f32.mrb[0].mxu0
      %1805 = vmatprep.mubr.bf16.mxu0 0
      %1806 = vmatmul.mubr.bf16.gmra.mrb[0].mxu0 %v1583
      %v1807 = vpop.f32.mrb[0].mxu0
      %v1808 = vadd.f32 0.0, %v1807
      %v1809 = vpop.f32.mrb[0].mxu0
      %v1810 = vpop.f32.mrb[0].mxu0
      %v1811 = vadd.f32 0.0, %v1810
      %v1812 = vpop.f32.mrb[0].mxu0
      %1813 = vmatprep.mubr.bf16.mxu0 0
      %1814 = vmatmul.mubr.bf16.gmra.mrb[0].mxu0 %v1592
      %v1815 = vpop.f32.mrb[0].mxu0
      %v1816 = vadd.f32 0.0, %v1815
      %v1817 = vpop.f32.mrb[0].mxu0
      %v1818 = vpop.f32.mrb[0].mxu0
      %v1819 = vadd.f32 0.0, %v1818
      %v1820 = vpop.f32.mrb[0].mxu0
      %1821 = vmatprep.mubr.bf16.mxu0 0
      %1822 = vmatmul.mubr.bf16.gmra.mrb[0].mxu0 %v1601
      %v1823 = vpop.f32.mrb[0].mxu0
      %v1824 = vadd.f32 0.0, %v1823
      %v1825 = vpop.f32.mrb[0].mxu0
      %v1826 = vpop.f32.mrb[0].mxu0
      %v1827 = vadd.f32 0.0, %v1826
      %v1828 = vpop.f32.mrb[0].mxu0
      %1829 = vmatprep.mubr.bf16.mxu0 0
      %1830 = vmatmul.mubr.bf16.gmra.mrb[0].mxu0 %v1610
      %v1831 = vpop.f32.mrb[0].mxu0
      %v1832 = vadd.f32 0.0, %v1831
      %v1833 = vpop.f32.mrb[0].mxu0
      %v1834 = vpop.f32.mrb[0].mxu0
      %v1835 = vadd.f32 0.0, %v1834
      %v1836 = vpop.f32.mrb[0].mxu0
      %1837 = vmatprep.mubr.bf16.mxu0 0
      %1838 = vmatmul.mubr.bf16.gmra.mrb[0].mxu0 %v1619
      %v1839 = vpop.f32.mrb[0].mxu0
      %v1840 = vadd.f32 0.0, %v1839
      %v1841 = vpop.f32.mrb[0].mxu0
      %v1842 = vpop.f32.mrb[0].mxu0
      %v1843 = vadd.f32 0.0, %v1842
      %v1844 = vpop.f32.mrb[0].mxu0
      %1845 = vmatprep.mubr.bf16.mxu0 0
      %1846 = vmatmul.mubr.bf16.gmra.mrb[0].mxu0 %v1628
      %v1847 = vpop.f32.mrb[0].mxu0
      %v1848 = vadd.f32 0.0, %v1847
      %v1849 = vpop.f32.mrb[0].mxu0
      %v1850 = vpop.f32.mrb[0].mxu0
      %v1851 = vadd.f32 0.0, %v1850
      %v1852 = vpop.f32.mrb[0].mxu0
      %1853 = vdwg.mxu0
      %v1854 = vmul.f32 %v1728, %v1315
      %v1855 = vmul.f32 %v1731, %v1316
      %v1856 = vmul.f32 %v1736, %v1317
      %v1857 = vmul.f32 %v1739, %v1318
      %v1858 = vmul.f32 %v1744, %v1319
      %v1859 = vmul.f32 %v1747, %v1320
      %v1860 = vmul.f32 %v1752, %v1321
      %v1861 = vmul.f32 %v1755, %v1322
      %v1862 = vmul.f32 %v1760, %v1323
      %v1863 = vmul.f32 %v1763, %v1324
      %v1864 = vmul.f32 %v1768, %v1325
      %v1865 = vmul.f32 %v1771, %v1326
      %v1866 = vmul.f32 %v1776, %v1327
      %v1867 = vmul.f32 %v1779, %v1328
      %v1868 = vmul.f32 %v1784, %v1329
      %v1869 = vmul.f32 %v1787, %v1330
      %v1870 = vmul.f32 %v1792, %v1331
      %v1871 = vmul.f32 %v1795, %v1332
      %v1872 = vmul.f32 %v1800, %v1333
      %v1873 = vmul.f32 %v1803, %v1334
      %v1874 = vmul.f32 %v1808, %v1335
      %v1875 = vmul.f32 %v1811, %v1336
      %v1876 = vmul.f32 %v1816, %v1337
      %v1877 = vmul.f32 %v1819, %v1338
      %v1878 = vmul.f32 %v1824, %v1339
      %v1879 = vmul.f32 %v1827, %v1340
      %v1880 = vmul.f32 %v1832, %v1341
      %v1881 = vmul.f32 %v1835, %v1342
      %v1882 = vmul.f32 %v1840, %v1343
      %v1883 = vmul.f32 %v1843, %v1344
      %v1884 = vmul.f32 %v1848, %v1345
      %v1885 = vmul.f32 %v1851, %v1346
      %1886 = vst [vmem:[#allocation3] sm:$0xff] %v1854
      %1887 = vst [vmem:[#allocation3 + $0x8] sm:$0xff] %v1855
      %1888 = vst [vmem:[#allocation3 + $0x10] sm:$0xff] %v1856
      %1889 = vst [vmem:[#allocation3 + $0x18] sm:$0xff] %v1857
      %1890 = vst [vmem:[#allocation3 + $0x20] sm:$0xff] %v1858
      %1891 = vst [vmem:[#allocation3 + $0x28] sm:$0xff] %v1859
      %1892 = vst [vmem:[#allocation3 + $0x30] sm:$0xff] %v1860
      %1893 = vst [vmem:[#allocation3 + $0x38] sm:$0xff] %v1861
      %1894 = vst [vmem:[#allocation3 + $0x40] sm:$0xff] %v1862
      %1895 = vst [vmem:[#allocation3 + $0x48] sm:$0xff] %v1863
      %1896 = vst [vmem:[#allocation3 + $0x50] sm:$0xff] %v1864
      %1897 = vst [vmem:[#allocation3 + $0x58] sm:$0xff] %v1865
      %1898 = vst [vmem:[#allocation3 + $0x60] sm:$0xff] %v1866
      %1899 = vst [vmem:[#allocation3 + $0x68] sm:$0xff] %v1867
      %1900 = vst [vmem:[#allocation3 + $0x70] sm:$0xff] %v1868
      %1901 = vst [vmem:[#allocation3 + $0x78] sm:$0xff] %v1869
      %1902 = vst [vmem:[#allocation3 + $0x80] sm:$0xff] %v1870
      %1903 = vst [vmem:[#allocation3 + $0x88] sm:$0xff] %v1871
      %1904 = vst [vmem:[#allocation3 + $0x90] sm:$0xff] %v1872
      %1905 = vst [vmem:[#allocation3 + $0x98] sm:$0xff] %v1873
      %1906 = vst [vmem:[#allocation3 + $0xa0] sm:$0xff] %v1874
      %1907 = vst [vmem:[#allocation3 + $0xa8] sm:$0xff] %v1875
      %1908 = vst [vmem:[#allocation3 + $0xb0] sm:$0xff] %v1876
      %1909 = vst [vmem:[#allocation3 + $0xb8] sm:$0xff] %v1877
      %1910 = vst [vmem:[#allocation3 + $0xc0] sm:$0xff] %v1878
      %1911 = vst [vmem:[#allocation3 + $0xc8] sm:$0xff] %v1879
      %1912 = vst [vmem:[#allocation3 + $0xd0] sm:$0xff] %v1880
      %1913 = vst [vmem:[#allocation3 + $0xd8] sm:$0xff] %v1881
      %1914 = vst [vmem:[#allocation3 + $0xe0] sm:$0xff] %v1882
      %1915 = vst [vmem:[#allocation3 + $0xe8] sm:$0xff] %v1883
      %1916 = vst [vmem:[#allocation3 + $0xf0] sm:$0xff] %v1884
      %1917 = vst [vmem:[#allocation3 + $0xf8] sm:$0xff] %v1885
      %v1918 = vld [vmem:[#allocation2] sm:$0xf0]
      %v1919 = vld [vmem:[#allocation2 + $0x8] sm:$0xff]
      %v1920 = vld [vmem:[#allocation2 + $0x10] sm:$0xff]
      %v1921 = vld [vmem:[#allocation2 + $0x18] sm:$0xff]
      %v1922 = vld [vmem:[#allocation2 + $0x20] sm:$0xff]
      %v1923 = vld [vmem:[#allocation2 + $0x28] sm:$0xff]
      %v1924 = vld [vmem:[#allocation2 + $0x30] sm:$0xff]
      %v1925 = vld [vmem:[#allocation2 + $0x38] sm:$0xff]
      %v1926 = vld [vmem:[#allocation2 + $0x40] sm:$0xff]
      %v1927 = vld [vmem:[#allocation2 + $0x48] sm:$0xff]
      %v1928 = vld [vmem:[#allocation2 + $0x50] sm:$0xff]
      %v1929 = vld [vmem:[#allocation2 + $0x58] sm:$0xff]
      %v1930 = vld [vmem:[#allocation2 + $0x60] sm:$0xff]
      %v1931 = vld [vmem:[#allocation2 + $0x68] sm:$0xff]
      %v1932 = vld [vmem:[#allocation2 + $0x70] sm:$0xff]
      %v1933 = vld [vmem:[#allocation2 + $0x78] sm:$0xff]
      %v1934 = vld [vmem:[#allocation2 + $0x80] sm:$0xf]
      %s1935 = scalar_lea.vmem %s2, 64
      %v1936 = vld [vmem:[%s1935] sm:$0xf]
      %v1937 = vld [vmem:[%s1935 + $0x4] sm:$0xf]
      %v1938 = vld [vmem:[%s1935 + $0x8] sm:$0xf]
      %v1939 = vld [vmem:[%s1935 + $0xc] sm:$0xf]
      %v1940 = vld [vmem:[%s1935 + $0x10] sm:$0xf]
      %v1941 = vld [vmem:[%s1935 + $0x14] sm:$0xf]
      %v1942 = vld [vmem:[%s1935 + $0x18] sm:$0xf]
      %v1943 = vld [vmem:[%s1935 + $0x1c] sm:$0xf]
      %v1944 = vld [vmem:[%s1935 + $0x20] sm:$0xf]
      %v1945 = vld [vmem:[%s1935 + $0x24] sm:$0xf]
      %v1946 = vld [vmem:[%s1935 + $0x28] sm:$0xf]
      %v1947 = vld [vmem:[%s1935 + $0x2c] sm:$0xf]
      %v1948 = vld [vmem:[%s1935 + $0x30] sm:$0xf]
      %v1949 = vld [vmem:[%s1935 + $0x34] sm:$0xf]
      %v1950 = vld [vmem:[%s1935 + $0x38] sm:$0xf]
      %v1951 = vld [vmem:[%s1935 + $0x3c] sm:$0xf]
      %v1969 = vrot.slane %v1918, 4
      %v1970 = vrot.slane %v1919, 4
      %v1971 = vsel %vm768, %v1969, %v1970
      %v1972 = vrot.slane %v1920, 4
      %v1973 = vsel %vm768, %v1970, %v1972
      %v1974 = vrot.slane %v1921, 4
      %v1975 = vsel %vm768, %v1972, %v1974
      %v1976 = vrot.slane %v1922, 4
      %v1977 = vsel %vm768, %v1974, %v1976
      %v1978 = vrot.slane %v1923, 4
      %v1979 = vsel %vm768, %v1976, %v1978
      %v1980 = vrot.slane %v1924, 4
      %v1981 = vsel %vm768, %v1978, %v1980
      %v1982 = vrot.slane %v1925, 4
      %v1983 = vsel %vm768, %v1980, %v1982
      %v1984 = vrot.slane %v1926, 4
      %v1985 = vsel %vm768, %v1982, %v1984
      %v1986 = vrot.slane %v1927, 4
      %v1987 = vsel %vm768, %v1984, %v1986
      %v1988 = vrot.slane %v1928, 4
      %v1989 = vsel %vm768, %v1986, %v1988
      %v1990 = vrot.slane %v1929, 4
      %v1991 = vsel %vm768, %v1988, %v1990
      %v1992 = vrot.slane %v1930, 4
      %v1993 = vsel %vm768, %v1990, %v1992
      %v1994 = vrot.slane %v1931, 4
      %v1995 = vsel %vm768, %v1992, %v1994
      %v1996 = vrot.slane %v1932, 4
      %v1997 = vsel %vm768, %v1994, %v1996
      %v1998 = vrot.slane %v1933, 4
      %v1999 = vsel %vm768, %v1996, %v1998
      %v2000 = vrot.slane %v1934, 4
      %v2001 = vsel %vm768, %v1998, %v2000
      %v2034 = vunpack.c.l.b16 %v1936
      %v2035 = vunpack.c.l.b16 %v1937
      %v2036 = vunpack.c.l.b16 %v1938
      %v2037 = vunpack.c.l.b16 %v1939
      %v2038 = vunpack.c.l.b16 %v1940
      %v2039 = vunpack.c.l.b16 %v1941
      %v2040 = vunpack.c.l.b16 %v1942
      %v2041 = vunpack.c.l.b16 %v1943
      %v2042 = vunpack.c.l.b16 %v1944
      %v2043 = vunpack.c.l.b16 %v1945
      %v2044 = vunpack.c.l.b16 %v1946
      %v2045 = vunpack.c.l.b16 %v1947
      %v2046 = vunpack.c.l.b16 %v1948
      %v2047 = vunpack.c.l.b16 %v1949
      %v2048 = vunpack.c.l.b16 %v1950
      %v2049 = vunpack.c.l.b16 %v1951
      %v2050 = vpack.c.b16 %v2035, %v2034
      %v2051 = vpack.c.b16 %v2037, %v2036
      %v2052 = vpack.c.b16 %v2039, %v2038
      %v2053 = vpack.c.b16 %v2041, %v2040
      %v2054 = vpack.c.b16 %v2043, %v2042
      %v2055 = vpack.c.b16 %v2045, %v2044
      %v2056 = vpack.c.b16 %v2047, %v2046
      %v2057 = vpack.c.b16 %v2049, %v2048
      %2066 = vmatprep.subr.bf16.mxu0 0
      %2067 = vmatpush1.bf16.msra.mxu0 %v2050
      %2068 = vmatprep.subr.bf16.mxu0 0
      %2069 = vmatpush1.bf16.msra.mxu0 %v2051
      %2070 = vmatprep.subr.bf16.mxu0 0
      %2071 = vmatpush1.bf16.msra.mxu0 %v2052
      %2072 = vmatprep.subr.bf16.mxu0 0
      %2073 = vmatpush1.bf16.msra.mxu0 %v2053
      %2074 = vmatprep.subr.bf16.mxu0 0
      %2075 = vmatpush1.bf16.msra.mxu0 %v2054
      %2076 = vmatprep.subr.bf16.mxu0 0
      %2077 = vmatpush1.bf16.msra.mxu0 %v2055
      %2078 = vmatprep.subr.bf16.mxu0 0
      %2079 = vmatpush1.bf16.msra.mxu0 %v2056
      %2080 = vmatprep.subr.bf16.mxu0 0
      %2081 = vmatpush1.bf16.msra.mxu0 %v2057
      %2082 = vmatprep.subr.bf16.mxu0 0
      %2083 = vmatpush1.bf16.msra.mxu0 0
      %2084 = vmatprep.subr.bf16.mxu0 0
      %2085 = vmatpush1.bf16.msra.mxu0 0
      %2086 = vmatprep.subr.bf16.mxu0 0
      %2087 = vmatpush1.bf16.msra.mxu0 0
      %2088 = vmatprep.subr.bf16.mxu0 0
      %2089 = vmatpush1.bf16.msra.mxu0 0
      %2090 = vmatprep.subr.bf16.mxu0 0
      %2091 = vmatpush1.bf16.msra.mxu0 0
      %2092 = vmatprep.subr.bf16.mxu0 0
      %2093 = vmatpush1.bf16.msra.mxu0 0
      %2094 = vmatprep.subr.bf16.mxu0 0
      %2095 = vmatpush1.bf16.msra.mxu0 0
      %2096 = vmatprep.subr.bf16.mxu0 0
      %2097 = vmatpush1.bf16.msra.mxu0 0
      %2098 = vmatprep.mubr.bf16.mxu0 0
      %2099 = vmatmul.mubr.bf16.gmra.mrb[0].mxu0 %v1971
      %v2100 = vpop.f32.mrb[0].mxu0
      %v2101 = vadd.f32 0.0, %v2100
      %v2102 = vpop.f32.mrb[0].mxu0
      %v2103 = vpop.f32.mrb[0].mxu0
      %v2104 = vadd.f32 0.0, %v2103
      %v2105 = vpop.f32.mrb[0].mxu0
      %2106 = vmatprep.mubr.bf16.mxu0 0
      %2107 = vmatmul.mubr.bf16.gmra.mrb[0].mxu0 %v1973
      %v2108 = vpop.f32.mrb[0].mxu0
      %v2109 = vadd.f32 0.0, %v2108
      %v2110 = vpop.f32.mrb[0].mxu0
      %v2111 = vpop.f32.mrb[0].mxu0
      %v2112 = vadd.f32 0.0, %v2111
      %v2113 = vpop.f32.mrb[0].mxu0
      %2114 = vmatprep.mubr.bf16.mxu0 0
      %2115 = vmatmul.mubr.bf16.gmra.mrb[0].mxu0 %v1975
      %v2116 = vpop.f32.mrb[0].mxu0
      %v2117 = vadd.f32 0.0, %v2116
      %v2118 = vpop.f32.mrb[0].mxu0
      %v2119 = vpop.f32.mrb[0].mxu0
      %v2120 = vadd.f32 0.0, %v2119
      %v2121 = vpop.f32.mrb[0].mxu0
      %2122 = vmatprep.mubr.bf16.mxu0 0
      %2123 = vmatmul.mubr.bf16.gmra.mrb[0].mxu0 %v1977
      %v2124 = vpop.f32.mrb[0].mxu0
      %v2125 = vadd.f32 0.0, %v2124
      %v2126 = vpop.f32.mrb[0].mxu0
      %v2127 = vpop.f32.mrb[0].mxu0
      %v2128 = vadd.f32 0.0, %v2127
      %v2129 = vpop.f32.mrb[0].mxu0
      %2130 = vmatprep.mubr.bf16.mxu0 0
      %2131 = vmatmul.mubr.bf16.gmra.mrb[0].mxu0 %v1979
      %v2132 = vpop.f32.mrb[0].mxu0
      %v2133 = vadd.f32 0.0, %v2132
      %v2134 = vpop.f32.mrb[0].mxu0
      %v2135 = vpop.f32.mrb[0].mxu0
      %v2136 = vadd.f32 0.0, %v2135
      %v2137 = vpop.f32.mrb[0].mxu0
      %2138 = vmatprep.mubr.bf16.mxu0 0
      %2139 = vmatmul.mubr.bf16.gmra.mrb[0].mxu0 %v1981
      %v2140 = vpop.f32.mrb[0].mxu0
      %v2141 = vadd.f32 0.0, %v2140
      %v2142 = vpop.f32.mrb[0].mxu0
      %v2143 = vpop.f32.mrb[0].mxu0
      %v2144 = vadd.f32 0.0, %v2143
      %v2145 = vpop.f32.mrb[0].mxu0
      %2146 = vmatprep.mubr.bf16.mxu0 0
      %2147 = vmatmul.mubr.bf16.gmra.mrb[0].mxu0 %v1983
      %v2148 = vpop.f32.mrb[0].mxu0
      %v2149 = vadd.f32 0.0, %v2148
      %v2150 = vpop.f32.mrb[0].mxu0
      %v2151 = vpop.f32.mrb[0].mxu0
      %v2152 = vadd.f32 0.0, %v2151
      %v2153 = vpop.f32.mrb[0].mxu0
      %2154 = vmatprep.mubr.bf16.mxu0 0
      %2155 = vmatmul.mubr.bf16.gmra.mrb[0].mxu0 %v1985
      %v2156 = vpop.f32.mrb[0].mxu0
      %v2157 = vadd.f32 0.0, %v2156
      %v2158 = vpop.f32.mrb[0].mxu0
      %v2159 = vpop.f32.mrb[0].mxu0
      %v2160 = vadd.f32 0.0, %v2159
      %v2161 = vpop.f32.mrb[0].mxu0
      %2162 = vmatprep.mubr.bf16.mxu0 0
      %2163 = vmatmul.mubr.bf16.gmra.mrb[0].mxu0 %v1987
      %v2164 = vpop.f32.mrb[0].mxu0
      %v2165 = vadd.f32 0.0, %v2164
      %v2166 = vpop.f32.mrb[0].mxu0
      %v2167 = vpop.f32.mrb[0].mxu0
      %v2168 = vadd.f32 0.0, %v2167
      %v2169 = vpop.f32.mrb[0].mxu0
      %2170 = vmatprep.mubr.bf16.mxu0 0
      %2171 = vmatmul.mubr.bf16.gmra.mrb[0].mxu0 %v1989
      %v2172 = vpop.f32.mrb[0].mxu0
      %v2173 = vadd.f32 0.0, %v2172
      %v2174 = vpop.f32.mrb[0].mxu0
      %v2175 = vpop.f32.mrb[0].mxu0
      %v2176 = vadd.f32 0.0, %v2175
      %v2177 = vpop.f32.mrb[0].mxu0
      %2178 = vmatprep.mubr.bf16.mxu0 0
      %2179 = vmatmul.mubr.bf16.gmra.mrb[0].mxu0 %v1991
      %v2180 = vpop.f32.mrb[0].mxu0
      %v2181 = vadd.f32 0.0, %v2180
      %v2182 = vpop.f32.mrb[0].mxu0
      %v2183 = vpop.f32.mrb[0].mxu0
      %v2184 = vadd.f32 0.0, %v2183
      %v2185 = vpop.f32.mrb[0].mxu0
      %2186 = vmatprep.mubr.bf16.mxu0 0
      %2187 = vmatmul.mubr.bf16.gmra.mrb[0].mxu0 %v1993
      %v2188 = vpop.f32.mrb[0].mxu0
      %v2189 = vadd.f32 0.0, %v2188
      %v2190 = vpop.f32.mrb[0].mxu0
      %v2191 = vpop.f32.mrb[0].mxu0
      %v2192 = vadd.f32 0.0, %v2191
      %v2193 = vpop.f32.mrb[0].mxu0
      %2194 = vmatprep.mubr.bf16.mxu0 0
      %2195 = vmatmul.mubr.bf16.gmra.mrb[0].mxu0 %v1995
      %v2196 = vpop.f32.mrb[0].mxu0
      %v2197 = vadd.f32 0.0, %v2196
      %v2198 = vpop.f32.mrb[0].mxu0
      %v2199 = vpop.f32.mrb[0].mxu0
      %v2200 = vadd.f32 0.0, %v2199
      %v2201 = vpop.f32.mrb[0].mxu0
      %2202 = vmatprep.mubr.bf16.mxu0 0
      %2203 = vmatmul.mubr.bf16.gmra.mrb[0].mxu0 %v1997
      %v2204 = vpop.f32.mrb[0].mxu0
      %v2205 = vadd.f32 0.0, %v2204
      %v2206 = vpop.f32.mrb[0].mxu0
      %v2207 = vpop.f32.mrb[0].mxu0
      %v2208 = vadd.f32 0.0, %v2207
      %v2209 = vpop.f32.mrb[0].mxu0
      %2210 = vmatprep.mubr.bf16.mxu0 0
      %2211 = vmatmul.mubr.bf16.gmra.mrb[0].mxu0 %v1999
      %v2212 = vpop.f32.mrb[0].mxu0
      %v2213 = vadd.f32 0.0, %v2212
      %v2214 = vpop.f32.mrb[0].mxu0
      %v2215 = vpop.f32.mrb[0].mxu0
      %v2216 = vadd.f32 0.0, %v2215
      %v2217 = vpop.f32.mrb[0].mxu0
      %2218 = vmatprep.mubr.bf16.mxu0 0
      %2219 = vmatmul.mubr.bf16.gmra.mrb[0].mxu0 %v2001
      %v2220 = vpop.f32.mrb[0].mxu0
      %v2221 = vadd.f32 0.0, %v2220
      %v2222 = vpop.f32.mrb[0].mxu0
      %v2223 = vpop.f32.mrb[0].mxu0
      %v2224 = vadd.f32 0.0, %v2223
      %v2225 = vpop.f32.mrb[0].mxu0
      %2226 = vdwg.mxu0
      %v2227 = vld [vmem:[#allocation3] sm:$0xff]
      %v2228 = vld [vmem:[#allocation3 + $0x8] sm:$0xff]
      %v2229 = vld [vmem:[#allocation3 + $0x10] sm:$0xff]
      %v2230 = vld [vmem:[#allocation3 + $0x18] sm:$0xff]
      %v2231 = vld [vmem:[#allocation3 + $0x20] sm:$0xff]
      %v2232 = vld [vmem:[#allocation3 + $0x28] sm:$0xff]
      %v2233 = vld [vmem:[#allocation3 + $0x30] sm:$0xff]
      %v2234 = vld [vmem:[#allocation3 + $0x38] sm:$0xff]
      %v2235 = vld [vmem:[#allocation3 + $0x40] sm:$0xff]
      %v2236 = vld [vmem:[#allocation3 + $0x48] sm:$0xff]
      %v2237 = vld [vmem:[#allocation3 + $0x50] sm:$0xff]
      %v2238 = vld [vmem:[#allocation3 + $0x58] sm:$0xff]
      %v2239 = vld [vmem:[#allocation3 + $0x60] sm:$0xff]
      %v2240 = vld [vmem:[#allocation3 + $0x68] sm:$0xff]
      %v2241 = vld [vmem:[#allocation3 + $0x70] sm:$0xff]
      %v2242 = vld [vmem:[#allocation3 + $0x78] sm:$0xff]
      %v2243 = vld [vmem:[#allocation3 + $0x80] sm:$0xff]
      %v2244 = vld [vmem:[#allocation3 + $0x88] sm:$0xff]
      %v2245 = vld [vmem:[#allocation3 + $0x90] sm:$0xff]
      %v2246 = vld [vmem:[#allocation3 + $0x98] sm:$0xff]
      %v2247 = vld [vmem:[#allocation3 + $0xa0] sm:$0xff]
      %v2248 = vld [vmem:[#allocation3 + $0xa8] sm:$0xff]
      %v2249 = vld [vmem:[#allocation3 + $0xb0] sm:$0xff]
      %v2250 = vld [vmem:[#allocation3 + $0xb8] sm:$0xff]
      %v2251 = vld [vmem:[#allocation3 + $0xc0] sm:$0xff]
      %v2252 = vld [vmem:[#allocation3 + $0xc8] sm:$0xff]
      %v2253 = vld [vmem:[#allocation3 + $0xd0] sm:$0xff]
      %v2254 = vld [vmem:[#allocation3 + $0xd8] sm:$0xff]
      %v2255 = vld [vmem:[#allocation3 + $0xe0] sm:$0xff]
      %v2256 = vld [vmem:[#allocation3 + $0xe8] sm:$0xff]
      %v2257 = vld [vmem:[#allocation3 + $0xf0] sm:$0xff]
      %v2258 = vld [vmem:[#allocation3 + $0xf8] sm:$0xff]
      %v2259 = vadd.f32 %v2227, %v2101
      %v2260 = vadd.f32 %v2228, %v2104
      %v2261 = vadd.f32 %v2229, %v2109
      %v2262 = vadd.f32 %v2230, %v2112
      %v2263 = vadd.f32 %v2231, %v2117
      %v2264 = vadd.f32 %v2232, %v2120
      %v2265 = vadd.f32 %v2233, %v2125
      %v2266 = vadd.f32 %v2234, %v2128
      %v2267 = vadd.f32 %v2235, %v2133
      %v2268 = vadd.f32 %v2236, %v2136
      %v2269 = vadd.f32 %v2237, %v2141
      %v2270 = vadd.f32 %v2238, %v2144
      %v2271 = vadd.f32 %v2239, %v2149
      %v2272 = vadd.f32 %v2240, %v2152
      %v2273 = vadd.f32 %v2241, %v2157
      %v2274 = vadd.f32 %v2242, %v2160
      %v2275 = vadd.f32 %v2243, %v2165
      %v2276 = vadd.f32 %v2244, %v2168
      %v2277 = vadd.f32 %v2245, %v2173
      %v2278 = vadd.f32 %v2246, %v2176
      %v2279 = vadd.f32 %v2247, %v2181
      %v2280 = vadd.f32 %v2248, %v2184
      %v2281 = vadd.f32 %v2249, %v2189
      %v2282 = vadd.f32 %v2250, %v2192
      %v2283 = vadd.f32 %v2251, %v2197
      %v2284 = vadd.f32 %v2252, %v2200
      %v2285 = vadd.f32 %v2253, %v2205
      %v2286 = vadd.f32 %v2254, %v2208
      %v2287 = vadd.f32 %v2255, %v2213
      %v2288 = vadd.f32 %v2256, %v2216
      %v2289 = vadd.f32 %v2257, %v2221
      %v2290 = vadd.f32 %v2258, %v2224
      %2291 = vst [vmem:[#allocation3] sm:$0xff] %v2259
      %2292 = vst [vmem:[#allocation3 + $0x8] sm:$0xff] %v2260
      %2293 = vst [vmem:[#allocation3 + $0x10] sm:$0xff] %v2261
      %2294 = vst [vmem:[#allocation3 + $0x18] sm:$0xff] %v2262
      %2295 = vst [vmem:[#allocation3 + $0x20] sm:$0xff] %v2263
      %2296 = vst [vmem:[#allocation3 + $0x28] sm:$0xff] %v2264
      %2297 = vst [vmem:[#allocation3 + $0x30] sm:$0xff] %v2265
      %2298 = vst [vmem:[#allocation3 + $0x38] sm:$0xff] %v2266
      %2299 = vst [vmem:[#allocation3 + $0x40] sm:$0xff] %v2267
      %2300 = vst [vmem:[#allocation3 + $0x48] sm:$0xff] %v2268
      %2301 = vst [vmem:[#allocation3 + $0x50] sm:$0xff] %v2269
      %2302 = vst [vmem:[#allocation3 + $0x58] sm:$0xff] %v2270
      %2303 = vst [vmem:[#allocation3 + $0x60] sm:$0xff] %v2271
      %2304 = vst [vmem:[#allocation3 + $0x68] sm:$0xff] %v2272
      %2305 = vst [vmem:[#allocation3 + $0x70] sm:$0xff] %v2273
      %2306 = vst [vmem:[#allocation3 + $0x78] sm:$0xff] %v2274
      %2307 = vst [vmem:[#allocation3 + $0x80] sm:$0xff] %v2275
      %2308 = vst [vmem:[#allocation3 + $0x88] sm:$0xff] %v2276
      %2309 = vst [vmem:[#allocation3 + $0x90] sm:$0xff] %v2277
      %2310 = vst [vmem:[#allocation3 + $0x98] sm:$0xff] %v2278
      %2311 = vst [vmem:[#allocation3 + $0xa0] sm:$0xff] %v2279
      %2312 = vst [vmem:[#allocation3 + $0xa8] sm:$0xff] %v2280
      %2313 = vst [vmem:[#allocation3 + $0xb0] sm:$0xff] %v2281
      %2314 = vst [vmem:[#allocation3 + $0xb8] sm:$0xff] %v2282
      %2315 = vst [vmem:[#allocation3 + $0xc0] sm:$0xff] %v2283
      %2316 = vst [vmem:[#allocation3 + $0xc8] sm:$0xff] %v2284
      %2317 = vst [vmem:[#allocation3 + $0xd0] sm:$0xff] %v2285
      %2318 = vst [vmem:[#allocation3 + $0xd8] sm:$0xff] %v2286
      %2319 = vst [vmem:[#allocation3 + $0xe0] sm:$0xff] %v2287
      %2320 = vst [vmem:[#allocation3 + $0xe8] sm:$0xff] %v2288
      %2321 = vst [vmem:[#allocation3 + $0xf0] sm:$0xff] %v2289
      %2322 = vst [vmem:[#allocation3 + $0xf8] sm:$0xff] %v2290
      %v2323 = vld [vmem:[#allocation2] sm:$0xf0]
      %v2324 = vld [vmem:[#allocation2 + $0x8] sm:$0xff]
      %v2325 = vld [vmem:[#allocation2 + $0x10] sm:$0xff]
      %v2326 = vld [vmem:[#allocation2 + $0x18] sm:$0xff]
      %v2327 = vld [vmem:[#allocation2 + $0x20] sm:$0xff]
      %v2328 = vld [vmem:[#allocation2 + $0x28] sm:$0xff]
      %v2329 = vld [vmem:[#allocation2 + $0x30] sm:$0xff]
      %v2330 = vld [vmem:[#allocation2 + $0x38] sm:$0xff]
      %v2331 = vld [vmem:[#allocation2 + $0x40] sm:$0xff]
      %v2332 = vld [vmem:[#allocation2 + $0x48] sm:$0xff]
      %v2333 = vld [vmem:[#allocation2 + $0x50] sm:$0xff]
      %v2334 = vld [vmem:[#allocation2 + $0x58] sm:$0xff]
      %v2335 = vld [vmem:[#allocation2 + $0x60] sm:$0xff]
      %v2336 = vld [vmem:[#allocation2 + $0x68] sm:$0xff]
      %v2337 = vld [vmem:[#allocation2 + $0x70] sm:$0xff]
      %v2338 = vld [vmem:[#allocation2 + $0x78] sm:$0xff]
      %v2339 = vld [vmem:[#allocation2 + $0x80] sm:$0x1f]
      %s2340 = scalar_lea.vmem %s2, 128
      %v2341 = vld [vmem:[%s2340] sm:$0xf]
      %v2342 = vld [vmem:[%s2340 + $0x4] sm:$0xf]
      %v2343 = vld [vmem:[%s2340 + $0x8] sm:$0xf]
      %v2344 = vld [vmem:[%s2340 + $0xc] sm:$0xf]
      %v2345 = vld [vmem:[%s2340 + $0x10] sm:$0xf]
      %v2346 = vld [vmem:[%s2340 + $0x14] sm:$0xf]
      %v2347 = vld [vmem:[%s2340 + $0x18] sm:$0xf]
      %v2348 = vld [vmem:[%s2340 + $0x1c] sm:$0xf]
      %v2349 = vld [vmem:[%s2340 + $0x20] sm:$0xf]
      %v2350 = vld [vmem:[%s2340 + $0x24] sm:$0xf]
      %v2351 = vld [vmem:[%s2340 + $0x28] sm:$0xf]
      %v2352 = vld [vmem:[%s2340 + $0x2c] sm:$0xf]
      %v2353 = vld [vmem:[%s2340 + $0x30] sm:$0xf]
      %v2354 = vld [vmem:[%s2340 + $0x34] sm:$0xf]
      %v2355 = vld [vmem:[%s2340 + $0x38] sm:$0xf]
      %v2356 = vld [vmem:[%s2340 + $0x3c] sm:$0xf]
      %vm2357 = vsmask.f32 3328
      %v2359 = vshrl.u32 %v2323, 16
      %v2361 = vrot.slane %v2359, 4
      %v2362 = vshll.u32 %v2323, 16
      %v2364 = vrot.slane %v2362, 5
      %v2365 = vor.u32 %v2361, %v2364
      %v2367 = vshrl.u32 %v2324, 16
      %v2369 = vrot.slane %v2367, 4
      %v2370 = vshll.u32 %v2324, 16
      %v2372 = vrot.slane %v2370, 5
      %v2373 = vor.u32 %v2369, %v2372
      %v2374 = vsel %vm2357, %v2365, %v2373
      %v2376 = vshrl.u32 %v2325, 16
      %v2378 = vrot.slane %v2376, 4
      %v2379 = vshll.u32 %v2325, 16
      %v2381 = vrot.slane %v2379, 5
      %v2382 = vor.u32 %v2378, %v2381
      %v2383 = vsel %vm2357, %v2373, %v2382
      %v2385 = vshrl.u32 %v2326, 16
      %v2387 = vrot.slane %v2385, 4
      %v2388 = vshll.u32 %v2326, 16
      %v2390 = vrot.slane %v2388, 5
      %v2391 = vor.u32 %v2387, %v2390
      %v2392 = vsel %vm2357, %v2382, %v2391
      %v2394 = vshrl.u32 %v2327, 16
      %v2396 = vrot.slane %v2394, 4
      %v2397 = vshll.u32 %v2327, 16
      %v2399 = vrot.slane %v2397, 5
      %v2400 = vor.u32 %v2396, %v2399
      %v2401 = vsel %vm2357, %v2391, %v2400
      %v2403 = vshrl.u32 %v2328, 16
      %v2405 = vrot.slane %v2403, 4
      %v2406 = vshll.u32 %v2328, 16
      %v2408 = vrot.slane %v2406, 5
      %v2409 = vor.u32 %v2405, %v2408
      %v2410 = vsel %vm2357, %v2400, %v2409
      %v2412 = vshrl.u32 %v2329, 16
      %v2414 = vrot.slane %v2412, 4
      %v2415 = vshll.u32 %v2329, 16
      %v2417 = vrot.slane %v2415, 5
      %v2418 = vor.u32 %v2414, %v2417
      %v2419 = vsel %vm2357, %v2409, %v2418
      %v2421 = vshrl.u32 %v2330, 16
      %v2423 = vrot.slane %v2421, 4
      %v2424 = vshll.u32 %v2330, 16
      %v2426 = vrot.slane %v2424, 5
      %v2427 = vor.u32 %v2423, %v2426
      %v2428 = vsel %vm2357, %v2418, %v2427
      %v2430 = vshrl.u32 %v2331, 16
      %v2432 = vrot.slane %v2430, 4
      %v2433 = vshll.u32 %v2331, 16
      %v2435 = vrot.slane %v2433, 5
      %v2436 = vor.u32 %v2432, %v2435
      %v2437 = vsel %vm2357, %v2427, %v2436
      %v2439 = vshrl.u32 %v2332, 16
      %v2441 = vrot.slane %v2439, 4
      %v2442 = vshll.u32 %v2332, 16
      %v2444 = vrot.slane %v2442, 5
      %v2445 = vor.u32 %v2441, %v2444
      %v2446 = vsel %vm2357, %v2436, %v2445
      %v2448 = vshrl.u32 %v2333, 16
      %v2450 = vrot.slane %v2448, 4
      %v2451 = vshll.u32 %v2333, 16
      %v2453 = vrot.slane %v2451, 5
      %v2454 = vor.u32 %v2450, %v2453
      %v2455 = vsel %vm2357, %v2445, %v2454
      %v2457 = vshrl.u32 %v2334, 16
      %v2459 = vrot.slane %v2457, 4
      %v2460 = vshll.u32 %v2334, 16
      %v2462 = vrot.slane %v2460, 5
      %v2463 = vor.u32 %v2459, %v2462
      %v2464 = vsel %vm2357, %v2454, %v2463
      %v2466 = vshrl.u32 %v2335, 16
      %v2468 = vrot.slane %v2466, 4
      %v2469 = vshll.u32 %v2335, 16
      %v2471 = vrot.slane %v2469, 5
      %v2472 = vor.u32 %v2468, %v2471
      %v2473 = vsel %vm2357, %v2463, %v2472
      %v2475 = vshrl.u32 %v2336, 16
      %v2477 = vrot.slane %v2475, 4
      %v2478 = vshll.u32 %v2336, 16
      %v2480 = vrot.slane %v2478, 5
      %v2481 = vor.u32 %v2477, %v2480
      %v2482 = vsel %vm2357, %v2472, %v2481
      %v2484 = vshrl.u32 %v2337, 16
      %v2486 = vrot.slane %v2484, 4
      %v2487 = vshll.u32 %v2337, 16
      %v2489 = vrot.slane %v2487, 5
      %v2490 = vor.u32 %v2486, %v2489
      %v2491 = vsel %vm2357, %v2481, %v2490
      %v2493 = vshrl.u32 %v2338, 16
      %v2495 = vrot.slane %v2493, 4
      %v2496 = vshll.u32 %v2338, 16
      %v2498 = vrot.slane %v2496, 5
      %v2499 = vor.u32 %v2495, %v2498
      %v2500 = vsel %vm2357, %v2490, %v2499
      %v2502 = vshrl.u32 %v2339, 16
      %v2504 = vrot.slane %v2502, 4
      %v2505 = vshll.u32 %v2339, 16
      %v2507 = vrot.slane %v2505, 5
      %v2508 = vor.u32 %v2504, %v2507
      %v2509 = vsel %vm2357, %v2499, %v2508
      %v2542 = vunpack.c.l.b16 %v2341
      %v2543 = vunpack.c.l.b16 %v2342
      %v2544 = vunpack.c.l.b16 %v2343
      %v2545 = vunpack.c.l.b16 %v2344
      %v2546 = vunpack.c.l.b16 %v2345
      %v2547 = vunpack.c.l.b16 %v2346
      %v2548 = vunpack.c.l.b16 %v2347
      %v2549 = vunpack.c.l.b16 %v2348
      %v2550 = vunpack.c.l.b16 %v2349
      %v2551 = vunpack.c.l.b16 %v2350
      %v2552 = vunpack.c.l.b16 %v2351
      %v2553 = vunpack.c.l.b16 %v2352
      %v2554 = vunpack.c.l.b16 %v2353
      %v2555 = vunpack.c.l.b16 %v2354
      %v2556 = vunpack.c.l.b16 %v2355
      %v2557 = vunpack.c.l.b16 %v2356
      %v2558 = vpack.c.b16 %v2543, %v2542
      %v2559 = vpack.c.b16 %v2545, %v2544
      %v2560 = vpack.c.b16 %v2547, %v2546
      %v2561 = vpack.c.b16 %v2549, %v2548
      %v2562 = vpack.c.b16 %v2551, %v2550
      %v2563 = vpack.c.b16 %v2553, %v2552
      %v2564 = vpack.c.b16 %v2555, %v2554
      %v2565 = vpack.c.b16 %v2557, %v2556
      %2574 = vmatprep.subr.bf16.mxu0 0
      %2575 = vmatpush1.bf16.msra.mxu0 %v2558
      %2576 = vmatprep.subr.bf16.mxu0 0
      %2577 = vmatpush1.bf16.msra.mxu0 %v2559
      %2578 = vmatprep.subr.bf16.mxu0 0
      %2579 = vmatpush1.bf16.msra.mxu0 %v2560
      %2580 = vmatprep.subr.bf16.mxu0 0
      %2581 = vmatpush1.bf16.msra.mxu0 %v2561
      %2582 = vmatprep.subr.bf16.mxu0 0
      %2583 = vmatpush1.bf16.msra.mxu0 %v2562
      %2584 = vmatprep.subr.bf16.mxu0 0
      %2585 = vmatpush1.bf16.msra.mxu0 %v2563
      %2586 = vmatprep.subr.bf16.mxu0 0
      %2587 = vmatpush1.bf16.msra.mxu0 %v2564
      %2588 = vmatprep.subr.bf16.mxu0 0
      %2589 = vmatpush1.bf16.msra.mxu0 %v2565
      %2590 = vmatprep.subr.bf16.mxu0 0
      %2591 = vmatpush1.bf16.msra.mxu0 0
      %2592 = vmatprep.subr.bf16.mxu0 0
      %2593 = vmatpush1.bf16.msra.mxu0 0
      %2594 = vmatprep.subr.bf16.mxu0 0
      %2595 = vmatpush1.bf16.msra.mxu0 0
      %2596 = vmatprep.subr.bf16.mxu0 0
      %2597 = vmatpush1.bf16.msra.mxu0 0
      %2598 = vmatprep.subr.bf16.mxu0 0
      %2599 = vmatpush1.bf16.msra.mxu0 0
      %2600 = vmatprep.subr.bf16.mxu0 0
      %2601 = vmatpush1.bf16.msra.mxu0 0
      %2602 = vmatprep.subr.bf16.mxu0 0
      %2603 = vmatpush1.bf16.msra.mxu0 0
      %2604 = vmatprep.subr.bf16.mxu0 0
      %2605 = vmatpush1.bf16.msra.mxu0 0
      %2606 = vmatprep.mubr.bf16.mxu0 0
      %2607 = vmatmul.mubr.bf16.gmra.mrb[0].mxu0 %v2374
      %v2608 = vpop.f32.mrb[0].mxu0
      %v2609 = vadd.f32 0.0, %v2608
      %v2610 = vpop.f32.mrb[0].mxu0
      %v2611 = vpop.f32.mrb[0].mxu0
      %v2612 = vadd.f32 0.0, %v2611
      %v2613 = vpop.f32.mrb[0].mxu0
      %2614 = vmatprep.mubr.bf16.mxu0 0
      %2615 = vmatmul.mubr.bf16.gmra.mrb[0].mxu0 %v2383
      %v2616 = vpop.f32.mrb[0].mxu0
      %v2617 = vadd.f32 0.0, %v2616
      %v2618 = vpop.f32.mrb[0].mxu0
      %v2619 = vpop.f32.mrb[0].mxu0
      %v2620 = vadd.f32 0.0, %v2619
      %v2621 = vpop.f32.mrb[0].mxu0
      %2622 = vmatprep.mubr.bf16.mxu0 0
      %2623 = vmatmul.mubr.bf16.gmra.mrb[0].mxu0 %v2392
      %v2624 = vpop.f32.mrb[0].mxu0
      %v2625 = vadd.f32 0.0, %v2624
      %v2626 = vpop.f32.mrb[0].mxu0
      %v2627 = vpop.f32.mrb[0].mxu0
      %v2628 = vadd.f32 0.0, %v2627
      %v2629 = vpop.f32.mrb[0].mxu0
      %2630 = vmatprep.mubr.bf16.mxu0 0
      %2631 = vmatmul.mubr.bf16.gmra.mrb[0].mxu0 %v2401
      %v2632 = vpop.f32.mrb[0].mxu0
      %v2633 = vadd.f32 0.0, %v2632
      %v2634 = vpop.f32.mrb[0].mxu0
      %v2635 = vpop.f32.mrb[0].mxu0
      %v2636 = vadd.f32 0.0, %v2635
      %v2637 = vpop.f32.mrb[0].mxu0
      %2638 = vmatprep.mubr.bf16.mxu0 0
      %2639 = vmatmul.mubr.bf16.gmra.mrb[0].mxu0 %v2410
      %v2640 = vpop.f32.mrb[0].mxu0
      %v2641 = vadd.f32 0.0, %v2640
      %v2642 = vpop.f32.mrb[0].mxu0
      %v2643 = vpop.f32.mrb[0].mxu0
      %v2644 = vadd.f32 0.0, %v2643
      %v2645 = vpop.f32.mrb[0].mxu0
      %2646 = vmatprep.mubr.bf16.mxu0 0
      %2647 = vmatmul.mubr.bf16.gmra.mrb[0].mxu0 %v2419
      %v2648 = vpop.f32.mrb[0].mxu0
      %v2649 = vadd.f32 0.0, %v2648
      %v2650 = vpop.f32.mrb[0].mxu0
      %v2651 = vpop.f32.mrb[0].mxu0
      %v2652 = vadd.f32 0.0, %v2651
      %v2653 = vpop.f32.mrb[0].mxu0
      %2654 = vmatprep.mubr.bf16.mxu0 0
      %2655 = vmatmul.mubr.bf16.gmra.mrb[0].mxu0 %v2428
      %v2656 = vpop.f32.mrb[0].mxu0
      %v2657 = vadd.f32 0.0, %v2656
      %v2658 = vpop.f32.mrb[0].mxu0
      %v2659 = vpop.f32.mrb[0].mxu0
      %v2660 = vadd.f32 0.0, %v2659
      %v2661 = vpop.f32.mrb[0].mxu0
      %2662 = vmatprep.mubr.bf16.mxu0 0
      %2663 = vmatmul.mubr.bf16.gmra.mrb[0].mxu0 %v2437
      %v2664 = vpop.f32.mrb[0].mxu0
      %v2665 = vadd.f32 0.0, %v2664
      %v2666 = vpop.f32.mrb[0].mxu0
      %v2667 = vpop.f32.mrb[0].mxu0
      %v2668 = vadd.f32 0.0, %v2667
      %v2669 = vpop.f32.mrb[0].mxu0
      %2670 = vmatprep.mubr.bf16.mxu0 0
      %2671 = vmatmul.mubr.bf16.gmra.mrb[0].mxu0 %v2446
      %v2672 = vpop.f32.mrb[0].mxu0
      %v2673 = vadd.f32 0.0, %v2672
      %v2674 = vpop.f32.mrb[0].mxu0
      %v2675 = vpop.f32.mrb[0].mxu0
      %v2676 = vadd.f32 0.0, %v2675
      %v2677 = vpop.f32.mrb[0].mxu0
      %2678 = vmatprep.mubr.bf16.mxu0 0
      %2679 = vmatmul.mubr.bf16.gmra.mrb[0].mxu0 %v2455
      %v2680 = vpop.f32.mrb[0].mxu0
      %v2681 = vadd.f32 0.0, %v2680
      %v2682 = vpop.f32.mrb[0].mxu0
      %v2683 = vpop.f32.mrb[0].mxu0
      %v2684 = vadd.f32 0.0, %v2683
      %v2685 = vpop.f32.mrb[0].mxu0
      %2686 = vmatprep.mubr.bf16.mxu0 0
      %2687 = vmatmul.mubr.bf16.gmra.mrb[0].mxu0 %v2464
      %v2688 = vpop.f32.mrb[0].mxu0
      %v2689 = vadd.f32 0.0, %v2688
      %v2690 = vpop.f32.mrb[0].mxu0
      %v2691 = vpop.f32.mrb[0].mxu0
      %v2692 = vadd.f32 0.0, %v2691
      %v2693 = vpop.f32.mrb[0].mxu0
      %2694 = vmatprep.mubr.bf16.mxu0 0
      %2695 = vmatmul.mubr.bf16.gmra.mrb[0].mxu0 %v2473
      %v2696 = vpop.f32.mrb[0].mxu0
      %v2697 = vadd.f32 0.0, %v2696
      %v2698 = vpop.f32.mrb[0].mxu0
      %v2699 = vpop.f32.mrb[0].mxu0
      %v2700 = vadd.f32 0.0, %v2699
      %v2701 = vpop.f32.mrb[0].mxu0
      %2702 = vmatprep.mubr.bf16.mxu0 0
      %2703 = vmatmul.mubr.bf16.gmra.mrb[0].mxu0 %v2482
      %v2704 = vpop.f32.mrb[0].mxu0
      %v2705 = vadd.f32 0.0, %v2704
      %v2706 = vpop.f32.mrb[0].mxu0
      %v2707 = vpop.f32.mrb[0].mxu0
      %v2708 = vadd.f32 0.0, %v2707
      %v2709 = vpop.f32.mrb[0].mxu0
      %2710 = vmatprep.mubr.bf16.mxu0 0
      %2711 = vmatmul.mubr.bf16.gmra.mrb[0].mxu0 %v2491
      %v2712 = vpop.f32.mrb[0].mxu0
      %v2713 = vadd.f32 0.0, %v2712
      %v2714 = vpop.f32.mrb[0].mxu0
      %v2715 = vpop.f32.mrb[0].mxu0
      %v2716 = vadd.f32 0.0, %v2715
      %v2717 = vpop.f32.mrb[0].mxu0
      %2718 = vmatprep.mubr.bf16.mxu0 0
      %2719 = vmatmul.mubr.bf16.gmra.mrb[0].mxu0 %v2500
      %v2720 = vpop.f32.mrb[0].mxu0
      %v2721 = vadd.f32 0.0, %v2720
      %v2722 = vpop.f32.mrb[0].mxu0
      %v2723 = vpop.f32.mrb[0].mxu0
      %v2724 = vadd.f32 0.0, %v2723
      %v2725 = vpop.f32.mrb[0].mxu0
      %2726 = vmatprep.mubr.bf16.mxu0 0
      %2727 = vmatmul.mubr.bf16.gmra.mrb[0].mxu0 %v2509
      %v2728 = vpop.f32.mrb[0].mxu0
      %v2729 = vadd.f32 0.0, %v2728
      %v2730 = vpop.f32.mrb[0].mxu0
      %v2731 = vpop.f32.mrb[0].mxu0
      %v2732 = vadd.f32 0.0, %v2731
      %v2733 = vpop.f32.mrb[0].mxu0
      %2734 = vdwg.mxu0
      %v2735 = vmul.f32 %v2609, %v1411
      %v2736 = vmul.f32 %v2612, %v1412
      %v2737 = vmul.f32 %v2617, %v1413
      %v2738 = vmul.f32 %v2620, %v1414
      %v2739 = vmul.f32 %v2625, %v1415
      %v2740 = vmul.f32 %v2628, %v1416
      %v2741 = vmul.f32 %v2633, %v1417
      %v2742 = vmul.f32 %v2636, %v1418
      %v2743 = vmul.f32 %v2641, %v1419
      %v2744 = vmul.f32 %v2644, %v1420
      %v2745 = vmul.f32 %v2649, %v1421
      %v2746 = vmul.f32 %v2652, %v1422
      %v2747 = vmul.f32 %v2657, %v1423
      %v2748 = vmul.f32 %v2660, %v1424
      %v2749 = vmul.f32 %v2665, %v1425
      %v2750 = vmul.f32 %v2668, %v1426
      %v2751 = vmul.f32 %v2673, %v1427
      %v2752 = vmul.f32 %v2676, %v1428
      %v2753 = vmul.f32 %v2681, %v1429
      %v2754 = vmul.f32 %v2684, %v1430
      %v2755 = vmul.f32 %v2689, %v1431
      %v2756 = vmul.f32 %v2692, %v1432
      %v2757 = vmul.f32 %v2697, %v1433
      %v2758 = vmul.f32 %v2700, %v1434
      %v2759 = vmul.f32 %v2705, %v1435
      %v2760 = vmul.f32 %v2708, %v1436
      %v2761 = vmul.f32 %v2713, %v1437
      %v2762 = vmul.f32 %v2716, %v1438
      %v2763 = vmul.f32 %v2721, %v1439
      %v2764 = vmul.f32 %v2724, %v1440
      %v2765 = vmul.f32 %v2729, %v1441
      %v2766 = vmul.f32 %v2732, %v1442
      %v2767 = vld [vmem:[#allocation3] sm:$0xff]
      %v2768 = vld [vmem:[#allocation3 + $0x8] sm:$0xff]
      %v2769 = vld [vmem:[#allocation3 + $0x10] sm:$0xff]
      %v2770 = vld [vmem:[#allocation3 + $0x18] sm:$0xff]
      %v2771 = vld [vmem:[#allocation3 + $0x20] sm:$0xff]
      %v2772 = vld [vmem:[#allocation3 + $0x28] sm:$0xff]
      %v2773 = vld [vmem:[#allocation3 + $0x30] sm:$0xff]
      %v2774 = vld [vmem:[#allocation3 + $0x38] sm:$0xff]
      %v2775 = vld [vmem:[#allocation3 + $0x40] sm:$0xff]
      %v2776 = vld [vmem:[#allocation3 + $0x48] sm:$0xff]
      %v2777 = vld [vmem:[#allocation3 + $0x50] sm:$0xff]
      %v2778 = vld [vmem:[#allocation3 + $0x58] sm:$0xff]
      %v2779 = vld [vmem:[#allocation3 + $0x60] sm:$0xff]
      %v2780 = vld [vmem:[#allocation3 + $0x68] sm:$0xff]
      %v2781 = vld [vmem:[#allocation3 + $0x70] sm:$0xff]
      %v2782 = vld [vmem:[#allocation3 + $0x78] sm:$0xff]
      %v2783 = vld [vmem:[#allocation3 + $0x80] sm:$0xff]
      %v2784 = vld [vmem:[#allocation3 + $0x88] sm:$0xff]
      %v2785 = vld [vmem:[#allocation3 + $0x90] sm:$0xff]
      %v2786 = vld [vmem:[#allocation3 + $0x98] sm:$0xff]
      %v2787 = vld [vmem:[#allocation3 + $0xa0] sm:$0xff]
      %v2788 = vld [vmem:[#allocation3 + $0xa8] sm:$0xff]
      %v2789 = vld [vmem:[#allocation3 + $0xb0] sm:$0xff]
      %v2790 = vld [vmem:[#allocation3 + $0xb8] sm:$0xff]
      %v2791 = vld [vmem:[#allocation3 + $0xc0] sm:$0xff]
      %v2792 = vld [vmem:[#allocation3 + $0xc8] sm:$0xff]
      %v2793 = vld [vmem:[#allocation3 + $0xd0] sm:$0xff]
      %v2794 = vld [vmem:[#allocation3 + $0xd8] sm:$0xff]
      %v2795 = vld [vmem:[#allocation3 + $0xe0] sm:$0xff]
      %v2796 = vld [vmem:[#allocation3 + $0xe8] sm:$0xff]
      %v2797 = vld [vmem:[#allocation3 + $0xf0] sm:$0xff]
      %v2798 = vld [vmem:[#allocation3 + $0xf8] sm:$0xff]
      %v2799 = vadd.f32 %v2767, %v2735
      %v2800 = vadd.f32 %v2768, %v2736
      %v2801 = vadd.f32 %v2769, %v2737
      %v2802 = vadd.f32 %v2770, %v2738
      %v2803 = vadd.f32 %v2771, %v2739
      %v2804 = vadd.f32 %v2772, %v2740
      %v2805 = vadd.f32 %v2773, %v2741
      %v2806 = vadd.f32 %v2774, %v2742
      %v2807 = vadd.f32 %v2775, %v2743
      %v2808 = vadd.f32 %v2776, %v2744
      %v2809 = vadd.f32 %v2777, %v2745
      %v2810 = vadd.f32 %v2778, %v2746
      %v2811 = vadd.f32 %v2779, %v2747
      %v2812 = vadd.f32 %v2780, %v2748
      %v2813 = vadd.f32 %v2781, %v2749
      %v2814 = vadd.f32 %v2782, %v2750
      %v2815 = vadd.f32 %v2783, %v2751
      %v2816 = vadd.f32 %v2784, %v2752
      %v2817 = vadd.f32 %v2785, %v2753
      %v2818 = vadd.f32 %v2786, %v2754
      %v2819 = vadd.f32 %v2787, %v2755
      %v2820 = vadd.f32 %v2788, %v2756
      %v2821 = vadd.f32 %v2789, %v2757
      %v2822 = vadd.f32 %v2790, %v2758
      %v2823 = vadd.f32 %v2791, %v2759
      %v2824 = vadd.f32 %v2792, %v2760
      %v2825 = vadd.f32 %v2793, %v2761
      %v2826 = vadd.f32 %v2794, %v2762
      %v2827 = vadd.f32 %v2795, %v2763
      %v2828 = vadd.f32 %v2796, %v2764
      %v2829 = vadd.f32 %v2797, %v2765
      %v2830 = vadd.f32 %v2798, %v2766
      %2831 = vst [vmem:[#allocation3] sm:$0xff] %v2799
      %2832 = vst [vmem:[#allocation3 + $0x8] sm:$0xff] %v2800
      %2833 = vst [vmem:[#allocation3 + $0x10] sm:$0xff] %v2801
      %2834 = vst [vmem:[#allocation3 + $0x18] sm:$0xff] %v2802
      %2835 = vst [vmem:[#allocation3 + $0x20] sm:$0xff] %v2803
      %2836 = vst [vmem:[#allocation3 + $0x28] sm:$0xff] %v2804
      %2837 = vst [vmem:[#allocation3 + $0x30] sm:$0xff] %v2805
      %2838 = vst [vmem:[#allocation3 + $0x38] sm:$0xff] %v2806
      %2839 = vst [vmem:[#allocation3 + $0x40] sm:$0xff] %v2807
      %2840 = vst [vmem:[#allocation3 + $0x48] sm:$0xff] %v2808
      %2841 = vst [vmem:[#allocation3 + $0x50] sm:$0xff] %v2809
      %2842 = vst [vmem:[#allocation3 + $0x58] sm:$0xff] %v2810
      %2843 = vst [vmem:[#allocation3 + $0x60] sm:$0xff] %v2811
      %2844 = vst [vmem:[#allocation3 + $0x68] sm:$0xff] %v2812
      %2845 = vst [vmem:[#allocation3 + $0x70] sm:$0xff] %v2813
      %2846 = vst [vmem:[#allocation3 + $0x78] sm:$0xff] %v2814
      %2847 = vst [vmem:[#allocation3 + $0x80] sm:$0xff] %v2815
      %2848 = vst [vmem:[#allocation3 + $0x88] sm:$0xff] %v2816
      %2849 = vst [vmem:[#allocation3 + $0x90] sm:$0xff] %v2817
      %2850 = vst [vmem:[#allocation3 + $0x98] sm:$0xff] %v2818
      %2851 = vst [vmem:[#allocation3 + $0xa0] sm:$0xff] %v2819
      %2852 = vst [vmem:[#allocation3 + $0xa8] sm:$0xff] %v2820
      %2853 = vst [vmem:[#allocation3 + $0xb0] sm:$0xff] %v2821
      %2854 = vst [vmem:[#allocation3 + $0xb8] sm:$0xff] %v2822
      %2855 = vst [vmem:[#allocation3 + $0xc0] sm:$0xff] %v2823
      %2856 = vst [vmem:[#allocation3 + $0xc8] sm:$0xff] %v2824
      %2857 = vst [vmem:[#allocation3 + $0xd0] sm:$0xff] %v2825
      %2858 = vst [vmem:[#allocation3 + $0xd8] sm:$0xff] %v2826
      %2859 = vst [vmem:[#allocation3 + $0xe0] sm:$0xff] %v2827
      %2860 = vst [vmem:[#allocation3 + $0xe8] sm:$0xff] %v2828
      %2861 = vst [vmem:[#allocation3 + $0xf0] sm:$0xff] %v2829
      %2862 = vst [vmem:[#allocation3 + $0xf8] sm:$0xff] %v2830
      %v2863 = vld [vmem:[#allocation2 + $0x8] sm:$0xf8]
      %v2864 = vld [vmem:[#allocation2 + $0x10] sm:$0xff]
      %v2865 = vld [vmem:[#allocation2 + $0x18] sm:$0xff]
      %v2866 = vld [vmem:[#allocation2 + $0x20] sm:$0xff]
      %v2867 = vld [vmem:[#allocation2 + $0x28] sm:$0xff]
      %v2868 = vld [vmem:[#allocation2 + $0x30] sm:$0xff]
      %v2869 = vld [vmem:[#allocation2 + $0x38] sm:$0xff]
      %v2870 = vld [vmem:[#allocation2 + $0x40] sm:$0xff]
      %v2871 = vld [vmem:[#allocation2 + $0x48] sm:$0xff]
      %v2872 = vld [vmem:[#allocation2 + $0x50] sm:$0xff]
      %v2873 = vld [vmem:[#allocation2 + $0x58] sm:$0xff]
      %v2874 = vld [vmem:[#allocation2 + $0x60] sm:$0xff]
      %v2875 = vld [vmem:[#allocation2 + $0x68] sm:$0xff]
      %v2876 = vld [vmem:[#allocation2 + $0x70] sm:$0xff]
      %v2877 = vld [vmem:[#allocation2 + $0x78] sm:$0xff]
      %v2878 = vld [vmem:[#allocation2 + $0x80] sm:$0xff]
      %v2879 = vld [vmem:[#allocation2 + $0x88] sm:$0xf]
      %s2880 = scalar_lea.vmem %s2, 192
      %v2881 = vld [vmem:[%s2880] sm:$0xf]
      %v2882 = vld [vmem:[%s2880 + $0x4] sm:$0xf]
      %v2883 = vld [vmem:[%s2880 + $0x8] sm:$0xf]
      %v2884 = vld [vmem:[%s2880 + $0xc] sm:$0xf]
      %v2885 = vld [vmem:[%s2880 + $0x10] sm:$0xf]
      %v2886 = vld [vmem:[%s2880 + $0x14] sm:$0xf]
      %v2887 = vld [vmem:[%s2880 + $0x18] sm:$0xf]
      %v2888 = vld [vmem:[%s2880 + $0x1c] sm:$0xf]
      %v2889 = vld [vmem:[%s2880 + $0x20] sm:$0xf]
      %v2890 = vld [vmem:[%s2880 + $0x24] sm:$0xf]
      %v2891 = vld [vmem:[%s2880 + $0x28] sm:$0xf]
      %v2892 = vld [vmem:[%s2880 + $0x2c] sm:$0xf]
      %v2893 = vld [vmem:[%s2880 + $0x30] sm:$0xf]
      %v2894 = vld [vmem:[%s2880 + $0x34] sm:$0xf]
      %v2895 = vld [vmem:[%s2880 + $0x38] sm:$0xf]
      %v2896 = vld [vmem:[%s2880 + $0x3c] sm:$0xf]
      %v2898 = vshrl.u32 %v2863, 16
      %v2900 = vrot.slane %v2898, 3
      %v2901 = vshll.u32 %v2863, 16
      %v2903 = vrot.slane %v2901, 4
      %v2904 = vor.u32 %v2900, %v2903
      %v2906 = vshrl.u32 %v2864, 16
      %v2908 = vrot.slane %v2906, 3
      %v2909 = vshll.u32 %v2864, 16
      %v2911 = vrot.slane %v2909, 4
      %v2912 = vor.u32 %v2908, %v2911
      %v2913 = vsel %vm1476, %v2904, %v2912
      %v2915 = vshrl.u32 %v2865, 16
      %v2917 = vrot.slane %v2915, 3
      %v2918 = vshll.u32 %v2865, 16
      %v2920 = vrot.slane %v2918, 4
      %v2921 = vor.u32 %v2917, %v2920
      %v2922 = vsel %vm1476, %v2912, %v2921
      %v2924 = vshrl.u32 %v2866, 16
      %v2926 = vrot.slane %v2924, 3
      %v2927 = vshll.u32 %v2866, 16
      %v2929 = vrot.slane %v2927, 4
      %v2930 = vor.u32 %v2926, %v2929
      %v2931 = vsel %vm1476, %v2921, %v2930
      %v2933 = vshrl.u32 %v2867, 16
      %v2935 = vrot.slane %v2933, 3
      %v2936 = vshll.u32 %v2867, 16
      %v2938 = vrot.slane %v2936, 4
      %v2939 = vor.u32 %v2935, %v2938
      %v2940 = vsel %vm1476, %v2930, %v2939
      %v2942 = vshrl.u32 %v2868, 16
      %v2944 = vrot.slane %v2942, 3
      %v2945 = vshll.u32 %v2868, 16
      %v2947 = vrot.slane %v2945, 4
      %v2948 = vor.u32 %v2944, %v2947
      %v2949 = vsel %vm1476, %v2939, %v2948
      %v2951 = vshrl.u32 %v2869, 16
      %v2953 = vrot.slane %v2951, 3
      %v2954 = vshll.u32 %v2869, 16
      %v2956 = vrot.slane %v2954, 4
      %v2957 = vor.u32 %v2953, %v2956
      %v2958 = vsel %vm1476, %v2948, %v2957
      %v2960 = vshrl.u32 %v2870, 16
      %v2962 = vrot.slane %v2960, 3
      %v2963 = vshll.u32 %v2870, 16
      %v2965 = vrot.slane %v2963, 4
      %v2966 = vor.u32 %v2962, %v2965
      %v2967 = vsel %vm1476, %v2957, %v2966
      %v2969 = vshrl.u32 %v2871, 16
      %v2971 = vrot.slane %v2969, 3
      %v2972 = vshll.u32 %v2871, 16
      %v2974 = vrot.slane %v2972, 4
      %v2975 = vor.u32 %v2971, %v2974
      %v2976 = vsel %vm1476, %v2966, %v2975
      %v2978 = vshrl.u32 %v2872, 16
      %v2980 = vrot.slane %v2978, 3
      %v2981 = vshll.u32 %v2872, 16
      %v2983 = vrot.slane %v2981, 4
      %v2984 = vor.u32 %v2980, %v2983
      %v2985 = vsel %vm1476, %v2975, %v2984
      %v2987 = vshrl.u32 %v2873, 16
      %v2989 = vrot.slane %v2987, 3
      %v2990 = vshll.u32 %v2873, 16
      %v2992 = vrot.slane %v2990, 4
      %v2993 = vor.u32 %v2989, %v2992
      %v2994 = vsel %vm1476, %v2984, %v2993
      %v2996 = vshrl.u32 %v2874, 16
      %v2998 = vrot.slane %v2996, 3
      %v2999 = vshll.u32 %v2874, 16
      %v3001 = vrot.slane %v2999, 4
      %v3002 = vor.u32 %v2998, %v3001
      %v3003 = vsel %vm1476, %v2993, %v3002
      %v3005 = vshrl.u32 %v2875, 16
      %v3007 = vrot.slane %v3005, 3
      %v3008 = vshll.u32 %v2875, 16
      %v3010 = vrot.slane %v3008, 4
      %v3011 = vor.u32 %v3007, %v3010
      %v3012 = vsel %vm1476, %v3002, %v3011
      %v3014 = vshrl.u32 %v2876, 16
      %v3016 = vrot.slane %v3014, 3
      %v3017 = vshll.u32 %v2876, 16
      %v3019 = vrot.slane %v3017, 4
      %v3020 = vor.u32 %v3016, %v3019
      %v3021 = vsel %vm1476, %v3011, %v3020
      %v3023 = vshrl.u32 %v2877, 16
      %v3025 = vrot.slane %v3023, 3
      %v3026 = vshll.u32 %v2877, 16
      %v3028 = vrot.slane %v3026, 4
      %v3029 = vor.u32 %v3025, %v3028
      %v3030 = vsel %vm1476, %v3020, %v3029
      %v3032 = vshrl.u32 %v2878, 16
      %v3034 = vrot.slane %v3032, 3
      %v3035 = vshll.u32 %v2878, 16
      %v3037 = vrot.slane %v3035, 4
      %v3038 = vor.u32 %v3034, %v3037
      %v3039 = vsel %vm1476, %v3029, %v3038
      %v3041 = vshrl.u32 %v2879, 16
      %v3043 = vrot.slane %v3041, 3
      %v3044 = vshll.u32 %v2879, 16
      %v3046 = vrot.slane %v3044, 4
      %v3047 = vor.u32 %v3043, %v3046
      %v3048 = vsel %vm1476, %v3038, %v3047
      %v3081 = vunpack.c.l.b16 %v2881
      %v3082 = vunpack.c.l.b16 %v2882
      %v3083 = vunpack.c.l.b16 %v2883
      %v3084 = vunpack.c.l.b16 %v2884
      %v3085 = vunpack.c.l.b16 %v2885
      %v3086 = vunpack.c.l.b16 %v2886
      %v3087 = vunpack.c.l.b16 %v2887
      %v3088 = vunpack.c.l.b16 %v2888
      %v3089 = vunpack.c.l.b16 %v2889
      %v3090 = vunpack.c.l.b16 %v2890
      %v3091 = vunpack.c.l.b16 %v2891
      %v3092 = vunpack.c.l.b16 %v2892
      %v3093 = vunpack.c.l.b16 %v2893
      %v3094 = vunpack.c.l.b16 %v2894
      %v3095 = vunpack.c.l.b16 %v2895
      %v3096 = vunpack.c.l.b16 %v2896
      %v3097 = vpack.c.b16 %v3082, %v3081
      %v3098 = vpack.c.b16 %v3084, %v3083
      %v3099 = vpack.c.b16 %v3086, %v3085
      %v3100 = vpack.c.b16 %v3088, %v3087
      %v3101 = vpack.c.b16 %v3090, %v3089
      %v3102 = vpack.c.b16 %v3092, %v3091
      %v3103 = vpack.c.b16 %v3094, %v3093
      %v3104 = vpack.c.b16 %v3096, %v3095
      %3113 = vmatprep.subr.bf16.mxu0 0
      %3114 = vmatpush1.bf16.msra.mxu0 %v3097
      %3115 = vmatprep.subr.bf16.mxu0 0
      %3116 = vmatpush1.bf16.msra.mxu0 %v3098
      %3117 = vmatprep.subr.bf16.mxu0 0
      %3118 = vmatpush1.bf16.msra.mxu0 %v3099
      %3119 = vmatprep.subr.bf16.mxu0 0
      %3120 = vmatpush1.bf16.msra.mxu0 %v3100
      %3121 = vmatprep.subr.bf16.mxu0 0
      %3122 = vmatpush1.bf16.msra.mxu0 %v3101
      %3123 = vmatprep.subr.bf16.mxu0 0
      %3124 = vmatpush1.bf16.msra.mxu0 %v3102
      %3125 = vmatprep.subr.bf16.mxu0 0
      %3126 = vmatpush1.bf16.msra.mxu0 %v3103
      %3127 = vmatprep.subr.bf16.mxu0 0
      %3128 = vmatpush1.bf16.msra.mxu0 %v3104
      %3129 = vmatprep.subr.bf16.mxu0 0
      %3130 = vmatpush1.bf16.msra.mxu0 0
      %3131 = vmatprep.subr.bf16.mxu0 0
      %3132 = vmatpush1.bf16.msra.mxu0 0
      %3133 = vmatprep.subr.bf16.mxu0 0
      %3134 = vmatpush1.bf16.msra.mxu0 0
      %3135 = vmatprep.subr.bf16.mxu0 0
      %3136 = vmatpush1.bf16.msra.mxu0 0
      %3137 = vmatprep.subr.bf16.mxu0 0
      %3138 = vmatpush1.bf16.msra.mxu0 0
      %3139 = vmatprep.subr.bf16.mxu0 0
      %3140 = vmatpush1.bf16.msra.mxu0 0
      %3141 = vmatprep.subr.bf16.mxu0 0
      %3142 = vmatpush1.bf16.msra.mxu0 0
      %3143 = vmatprep.subr.bf16.mxu0 0
      %3144 = vmatpush1.bf16.msra.mxu0 0
      %3145 = vmatprep.mubr.bf16.mxu0 0
      %3146 = vmatmul.mubr.bf16.gmra.mrb[0].mxu0 %v2913
      %v3147 = vpop.f32.mrb[0].mxu0
      %v3148 = vadd.f32 0.0, %v3147
      %v3149 = vpop.f32.mrb[0].mxu0
      %v3150 = vpop.f32.mrb[0].mxu0
      %v3151 = vadd.f32 0.0, %v3150
      %v3152 = vpop.f32.mrb[0].mxu0
      %3153 = vmatprep.mubr.bf16.mxu0 0
      %3154 = vmatmul.mubr.bf16.gmra.mrb[0].mxu0 %v2922
      %v3155 = vpop.f32.mrb[0].mxu0
      %v3156 = vadd.f32 0.0, %v3155
      %v3157 = vpop.f32.mrb[0].mxu0
      %v3158 = vpop.f32.mrb[0].mxu0
      %v3159 = vadd.f32 0.0, %v3158
      %v3160 = vpop.f32.mrb[0].mxu0
      %3161 = vmatprep.mubr.bf16.mxu0 0
      %3162 = vmatmul.mubr.bf16.gmra.mrb[0].mxu0 %v2931
      %v3163 = vpop.f32.mrb[0].mxu0
      %v3164 = vadd.f32 0.0, %v3163
      %v3165 = vpop.f32.mrb[0].mxu0
      %v3166 = vpop.f32.mrb[0].mxu0
      %v3167 = vadd.f32 0.0, %v3166
      %v3168 = vpop.f32.mrb[0].mxu0
      %3169 = vmatprep.mubr.bf16.mxu0 0
      %3170 = vmatmul.mubr.bf16.gmra.mrb[0].mxu0 %v2940
      %v3171 = vpop.f32.mrb[0].mxu0
      %v3172 = vadd.f32 0.0, %v3171
      %v3173 = vpop.f32.mrb[0].mxu0
      %v3174 = vpop.f32.mrb[0].mxu0
      %v3175 = vadd.f32 0.0, %v3174
      %v3176 = vpop.f32.mrb[0].mxu0
      %3177 = vmatprep.mubr.bf16.mxu0 0
      %3178 = vmatmul.mubr.bf16.gmra.mrb[0].mxu0 %v2949
      %v3179 = vpop.f32.mrb[0].mxu0
      %v3180 = vadd.f32 0.0, %v3179
      %v3181 = vpop.f32.mrb[0].mxu0
      %v3182 = vpop.f32.mrb[0].mxu0
      %v3183 = vadd.f32 0.0, %v3182
      %v3184 = vpop.f32.mrb[0].mxu0
      %3185 = vmatprep.mubr.bf16.mxu0 0
      %3186 = vmatmul.mubr.bf16.gmra.mrb[0].mxu0 %v2958
      %v3187 = vpop.f32.mrb[0].mxu0
      %v3188 = vadd.f32 0.0, %v3187
      %v3189 = vpop.f32.mrb[0].mxu0
      %v3190 = vpop.f32.mrb[0].mxu0
      %v3191 = vadd.f32 0.0, %v3190
      %v3192 = vpop.f32.mrb[0].mxu0
      %3193 = vmatprep.mubr.bf16.mxu0 0
      %3194 = vmatmul.mubr.bf16.gmra.mrb[0].mxu0 %v2967
      %v3195 = vpop.f32.mrb[0].mxu0
      %v3196 = vadd.f32 0.0, %v3195
      %v3197 = vpop.f32.mrb[0].mxu0
      %v3198 = vpop.f32.mrb[0].mxu0
      %v3199 = vadd.f32 0.0, %v3198
      %v3200 = vpop.f32.mrb[0].mxu0
      %3201 = vmatprep.mubr.bf16.mxu0 0
      %3202 = vmatmul.mubr.bf16.gmra.mrb[0].mxu0 %v2976
      %v3203 = vpop.f32.mrb[0].mxu0
      %v3204 = vadd.f32 0.0, %v3203
      %v3205 = vpop.f32.mrb[0].mxu0
      %v3206 = vpop.f32.mrb[0].mxu0
      %v3207 = vadd.f32 0.0, %v3206
      %v3208 = vpop.f32.mrb[0].mxu0
      %3209 = vmatprep.mubr.bf16.mxu0 0
      %3210 = vmatmul.mubr.bf16.gmra.mrb[0].mxu0 %v2985
      %v3211 = vpop.f32.mrb[0].mxu0
      %v3212 = vadd.f32 0.0, %v3211
      %v3213 = vpop.f32.mrb[0].mxu0
      %v3214 = vpop.f32.mrb[0].mxu0
      %v3215 = vadd.f32 0.0, %v3214
      %v3216 = vpop.f32.mrb[0].mxu0
      %3217 = vmatprep.mubr.bf16.mxu0 0
      %3218 = vmatmul.mubr.bf16.gmra.mrb[0].mxu0 %v2994
      %v3219 = vpop.f32.mrb[0].mxu0
      %v3220 = vadd.f32 0.0, %v3219
      %v3221 = vpop.f32.mrb[0].mxu0
      %v3222 = vpop.f32.mrb[0].mxu0
      %v3223 = vadd.f32 0.0, %v3222
      %v3224 = vpop.f32.mrb[0].mxu0
      %3225 = vmatprep.mubr.bf16.mxu0 0
      %3226 = vmatmul.mubr.bf16.gmra.mrb[0].mxu0 %v3003
      %v3227 = vpop.f32.mrb[0].mxu0
      %v3228 = vadd.f32 0.0, %v3227
      %v3229 = vpop.f32.mrb[0].mxu0
      %v3230 = vpop.f32.mrb[0].mxu0
      %v3231 = vadd.f32 0.0, %v3230
      %v3232 = vpop.f32.mrb[0].mxu0
      %3233 = vmatprep.mubr.bf16.mxu0 0
      %3234 = vmatmul.mubr.bf16.gmra.mrb[0].mxu0 %v3012
      %v3235 = vpop.f32.mrb[0].mxu0
      %v3236 = vadd.f32 0.0, %v3235
      %v3237 = vpop.f32.mrb[0].mxu0
      %v3238 = vpop.f32.mrb[0].mxu0
      %v3239 = vadd.f32 0.0, %v3238
      %v3240 = vpop.f32.mrb[0].mxu0
      %3241 = vmatprep.mubr.bf16.mxu0 0
      %3242 = vmatmul.mubr.bf16.gmra.mrb[0].mxu0 %v3021
      %v3243 = vpop.f32.mrb[0].mxu0
      %v3244 = vadd.f32 0.0, %v3243
      %v3245 = vpop.f32.mrb[0].mxu0
      %v3246 = vpop.f32.mrb[0].mxu0
      %v3247 = vadd.f32 0.0, %v3246
      %v3248 = vpop.f32.mrb[0].mxu0
      %3249 = vmatprep.mubr.bf16.mxu0 0
      %3250 = vmatmul.mubr.bf16.gmra.mrb[0].mxu0 %v3030
      %v3251 = vpop.f32.mrb[0].mxu0
      %v3252 = vadd.f32 0.0, %v3251
      %v3253 = vpop.f32.mrb[0].mxu0
      %v3254 = vpop.f32.mrb[0].mxu0
      %v3255 = vadd.f32 0.0, %v3254
      %v3256 = vpop.f32.mrb[0].mxu0
      %3257 = vmatprep.mubr.bf16.mxu0 0
      %3258 = vmatmul.mubr.bf16.gmra.mrb[0].mxu0 %v3039
      %v3259 = vpop.f32.mrb[0].mxu0
      %v3260 = vadd.f32 0.0, %v3259
      %v3261 = vpop.f32.mrb[0].mxu0
      %v3262 = vpop.f32.mrb[0].mxu0
      %v3263 = vadd.f32 0.0, %v3262
      %v3264 = vpop.f32.mrb[0].mxu0
      %3265 = vmatprep.mubr.bf16.mxu0 0
      %3266 = vmatmul.mubr.bf16.gmra.mrb[0].mxu0 %v3048
      %v3267 = vpop.f32.mrb[0].mxu0
      %v3268 = vadd.f32 0.0, %v3267
      %v3269 = vpop.f32.mrb[0].mxu0
      %v3270 = vpop.f32.mrb[0].mxu0
      %v3271 = vadd.f32 0.0, %v3270
      %v3272 = vpop.f32.mrb[0].mxu0
      %3273 = vdwg.mxu0
      %v3274 = vmul.f32 %v3148, %v1315
      %v3275 = vmul.f32 %v3151, %v1316
      %v3276 = vmul.f32 %v3156, %v1317
      %v3277 = vmul.f32 %v3159, %v1318
      %v3278 = vmul.f32 %v3164, %v1319
      %v3279 = vmul.f32 %v3167, %v1320
      %v3280 = vmul.f32 %v3172, %v1321
      %v3281 = vmul.f32 %v3175, %v1322
      %v3282 = vmul.f32 %v3180, %v1323
      %v3283 = vmul.f32 %v3183, %v1324
      %v3284 = vmul.f32 %v3188, %v1325
      %v3285 = vmul.f32 %v3191, %v1326
      %v3286 = vmul.f32 %v3196, %v1327
      %v3287 = vmul.f32 %v3199, %v1328
      %v3288 = vmul.f32 %v3204, %v1329
      %v3289 = vmul.f32 %v3207, %v1330
      %v3290 = vmul.f32 %v3212, %v1331
      %v3291 = vmul.f32 %v3215, %v1332
      %v3292 = vmul.f32 %v3220, %v1333
      %v3293 = vmul.f32 %v3223, %v1334
      %v3294 = vmul.f32 %v3228, %v1335
      %v3295 = vmul.f32 %v3231, %v1336
      %v3296 = vmul.f32 %v3236, %v1337
      %v3297 = vmul.f32 %v3239, %v1338
      %v3298 = vmul.f32 %v3244, %v1339
      %v3299 = vmul.f32 %v3247, %v1340
      %v3300 = vmul.f32 %v3252, %v1341
      %v3301 = vmul.f32 %v3255, %v1342
      %v3302 = vmul.f32 %v3260, %v1343
      %v3303 = vmul.f32 %v3263, %v1344
      %v3304 = vmul.f32 %v3268, %v1345
      %v3305 = vmul.f32 %v3271, %v1346
      %v3306 = vld [vmem:[#allocation3] sm:$0xff]
      %v3307 = vld [vmem:[#allocation3 + $0x8] sm:$0xff]
      %v3308 = vld [vmem:[#allocation3 + $0x10] sm:$0xff]
      %v3309 = vld [vmem:[#allocation3 + $0x18] sm:$0xff]
      %v3310 = vld [vmem:[#allocation3 + $0x20] sm:$0xff]
      %v3311 = vld [vmem:[#allocation3 + $0x28] sm:$0xff]
      %v3312 = vld [vmem:[#allocation3 + $0x30] sm:$0xff]
      %v3313 = vld [vmem:[#allocation3 + $0x38] sm:$0xff]
      %v3314 = vld [vmem:[#allocation3 + $0x40] sm:$0xff]
      %v3315 = vld [vmem:[#allocation3 + $0x48] sm:$0xff]
      %v3316 = vld [vmem:[#allocation3 + $0x50] sm:$0xff]
      %v3317 = vld [vmem:[#allocation3 + $0x58] sm:$0xff]
      %v3318 = vld [vmem:[#allocation3 + $0x60] sm:$0xff]
      %v3319 = vld [vmem:[#allocation3 + $0x68] sm:$0xff]
      %v3320 = vld [vmem:[#allocation3 + $0x70] sm:$0xff]
      %v3321 = vld [vmem:[#allocation3 + $0x78] sm:$0xff]
      %v3322 = vld [vmem:[#allocation3 + $0x80] sm:$0xff]
      %v3323 = vld [vmem:[#allocation3 + $0x88] sm:$0xff]
      %v3324 = vld [vmem:[#allocation3 + $0x90] sm:$0xff]
      %v3325 = vld [vmem:[#allocation3 + $0x98] sm:$0xff]
      %v3326 = vld [vmem:[#allocation3 + $0xa0] sm:$0xff]
      %v3327 = vld [vmem:[#allocation3 + $0xa8] sm:$0xff]
      %v3328 = vld [vmem:[#allocation3 + $0xb0] sm:$0xff]
      %v3329 = vld [vmem:[#allocation3 + $0xb8] sm:$0xff]
      %v3330 = vld [vmem:[#allocation3 + $0xc0] sm:$0xff]
      %v3331 = vld [vmem:[#allocation3 + $0xc8] sm:$0xff]
      %v3332 = vld [vmem:[#allocation3 + $0xd0] sm:$0xff]
      %v3333 = vld [vmem:[#allocation3 + $0xd8] sm:$0xff]
      %v3334 = vld [vmem:[#allocation3 + $0xe0] sm:$0xff]
      %v3335 = vld [vmem:[#allocation3 + $0xe8] sm:$0xff]
      %v3336 = vld [vmem:[#allocation3 + $0xf0] sm:$0xff]
      %v3337 = vld [vmem:[#allocation3 + $0xf8] sm:$0xff]
      %v3338 = vadd.f32 %v3306, %v3274
      %v3339 = vadd.f32 %v3307, %v3275
      %v3340 = vadd.f32 %v3308, %v3276
      %v3341 = vadd.f32 %v3309, %v3277
      %v3342 = vadd.f32 %v3310, %v3278
      %v3343 = vadd.f32 %v3311, %v3279
      %v3344 = vadd.f32 %v3312, %v3280
      %v3345 = vadd.f32 %v3313, %v3281
      %v3346 = vadd.f32 %v3314, %v3282
      %v3347 = vadd.f32 %v3315, %v3283
      %v3348 = vadd.f32 %v3316, %v3284
      %v3349 = vadd.f32 %v3317, %v3285
      %v3350 = vadd.f32 %v3318, %v3286
      %v3351 = vadd.f32 %v3319, %v3287
      %v3352 = vadd.f32 %v3320, %v3288
      %v3353 = vadd.f32 %v3321, %v3289
      %v3354 = vadd.f32 %v3322, %v3290
      %v3355 = vadd.f32 %v3323, %v3291
      %v3356 = vadd.f32 %v3324, %v3292
      %v3357 = vadd.f32 %v3325, %v3293
      %v3358 = vadd.f32 %v3326, %v3294
      %v3359 = vadd.f32 %v3327, %v3295
      %v3360 = vadd.f32 %v3328, %v3296
      %v3361 = vadd.f32 %v3329, %v3297
      %v3362 = vadd.f32 %v3330, %v3298
      %v3363 = vadd.f32 %v3331, %v3299
      %v3364 = vadd.f32 %v3332, %v3300
      %v3365 = vadd.f32 %v3333, %v3301
      %v3366 = vadd.f32 %v3334, %v3302
      %v3367 = vadd.f32 %v3335, %v3303
      %v3368 = vadd.f32 %v3336, %v3304
      %v3369 = vadd.f32 %v3337, %v3305
      %3370 = vst [vmem:[#allocation3] sm:$0xff] %v3338
      %3371 = vst [vmem:[#allocation3 + $0x8] sm:$0xff] %v3339
      %3372 = vst [vmem:[#allocation3 + $0x10] sm:$0xff] %v3340
      %3373 = vst [vmem:[#allocation3 + $0x18] sm:$0xff] %v3341
      %3374 = vst [vmem:[#allocation3 + $0x20] sm:$0xff] %v3342
      %3375 = vst [vmem:[#allocation3 + $0x28] sm:$0xff] %v3343
      %3376 = vst [vmem:[#allocation3 + $0x30] sm:$0xff] %v3344
      %3377 = vst [vmem:[#allocation3 + $0x38] sm:$0xff] %v3345
      %3378 = vst [vmem:[#allocation3 + $0x40] sm:$0xff] %v3346
      %3379 = vst [vmem:[#allocation3 + $0x48] sm:$0xff] %v3347
      %3380 = vst [vmem:[#allocation3 + $0x50] sm:$0xff] %v3348
      %3381 = vst [vmem:[#allocation3 + $0x58] sm:$0xff] %v3349
      %3382 = vst [vmem:[#allocation3 + $0x60] sm:$0xff] %v3350
      %3383 = vst [vmem:[#allocation3 + $0x68] sm:$0xff] %v3351
      %3384 = vst [vmem:[#allocation3 + $0x70] sm:$0xff] %v3352
      %3385 = vst [vmem:[#allocation3 + $0x78] sm:$0xff] %v3353
      %3386 = vst [vmem:[#allocation3 + $0x80] sm:$0xff] %v3354
      %3387 = vst [vmem:[#allocation3 + $0x88] sm:$0xff] %v3355
      %3388 = vst [vmem:[#allocation3 + $0x90] sm:$0xff] %v3356
      %3389 = vst [vmem:[#allocation3 + $0x98] sm:$0xff] %v3357
      %3390 = vst [vmem:[#allocation3 + $0xa0] sm:$0xff] %v3358
      %3391 = vst [vmem:[#allocation3 + $0xa8] sm:$0xff] %v3359
      %3392 = vst [vmem:[#allocation3 + $0xb0] sm:$0xff] %v3360
      %3393 = vst [vmem:[#allocation3 + $0xb8] sm:$0xff] %v3361
      %3394 = vst [vmem:[#allocation3 + $0xc0] sm:$0xff] %v3362
      %3395 = vst [vmem:[#allocation3 + $0xc8] sm:$0xff] %v3363
      %3396 = vst [vmem:[#allocation3 + $0xd0] sm:$0xff] %v3364
      %3397 = vst [vmem:[#allocation3 + $0xd8] sm:$0xff] %v3365
      %3398 = vst [vmem:[#allocation3 + $0xe0] sm:$0xff] %v3366
      %3399 = vst [vmem:[#allocation3 + $0xe8] sm:$0xff] %v3367
      %3400 = vst [vmem:[#allocation3 + $0xf0] sm:$0xff] %v3368
      %3401 = vst [vmem:[#allocation3 + $0xf8] sm:$0xff] %v3369
      %v3402 = vld [vmem:[#allocation2 + $0x8] sm:$0xf0]
      %v3403 = vld [vmem:[#allocation2 + $0x10] sm:$0xff]
      %v3404 = vld [vmem:[#allocation2 + $0x18] sm:$0xff]
      %v3405 = vld [vmem:[#allocation2 + $0x20] sm:$0xff]
      %v3406 = vld [vmem:[#allocation2 + $0x28] sm:$0xff]
      %v3407 = vld [vmem:[#allocation2 + $0x30] sm:$0xff]
      %v3408 = vld [vmem:[#allocation2 + $0x38] sm:$0xff]
      %v3409 = vld [vmem:[#allocation2 + $0x40] sm:$0xff]
      %v3410 = vld [vmem:[#allocation2 + $0x48] sm:$0xff]
      %v3411 = vld [vmem:[#allocation2 + $0x50] sm:$0xff]
      %v3412 = vld [vmem:[#allocation2 + $0x58] sm:$0xff]
      %v3413 = vld [vmem:[#allocation2 + $0x60] sm:$0xff]
      %v3414 = vld [vmem:[#allocation2 + $0x68] sm:$0xff]
      %v3415 = vld [vmem:[#allocation2 + $0x70] sm:$0xff]
      %v3416 = vld [vmem:[#allocation2 + $0x78] sm:$0xff]
      %v3417 = vld [vmem:[#allocation2 + $0x80] sm:$0xff]
      %v3418 = vld [vmem:[#allocation2 + $0x88] sm:$0xf]
      %s3419 = scalar_lea.vmem %s2, 256
      %v3420 = vld [vmem:[%s3419] sm:$0xf]
      %v3421 = vld [vmem:[%s3419 + $0x4] sm:$0xf]
      %v3422 = vld [vmem:[%s3419 + $0x8] sm:$0xf]
      %v3423 = vld [vmem:[%s3419 + $0xc] sm:$0xf]
      %v3424 = vld [vmem:[%s3419 + $0x10] sm:$0xf]
      %v3425 = vld [vmem:[%s3419 + $0x14] sm:$0xf]
      %v3426 = vld [vmem:[%s3419 + $0x18] sm:$0xf]
      %v3427 = vld [vmem:[%s3419 + $0x1c] sm:$0xf]
      %v3428 = vld [vmem:[%s3419 + $0x20] sm:$0xf]
      %v3429 = vld [vmem:[%s3419 + $0x24] sm:$0xf]
      %v3430 = vld [vmem:[%s3419 + $0x28] sm:$0xf]
      %v3431 = vld [vmem:[%s3419 + $0x2c] sm:$0xf]
      %v3432 = vld [vmem:[%s3419 + $0x30] sm:$0xf]
      %v3433 = vld [vmem:[%s3419 + $0x34] sm:$0xf]
      %v3434 = vld [vmem:[%s3419 + $0x38] sm:$0xf]
      %v3435 = vld [vmem:[%s3419 + $0x3c] sm:$0xf]
      %v3453 = vrot.slane %v3402, 4
      %v3454 = vrot.slane %v3403, 4
      %v3455 = vsel %vm768, %v3453, %v3454
      %v3456 = vrot.slane %v3404, 4
      %v3457 = vsel %vm768, %v3454, %v3456
      %v3458 = vrot.slane %v3405, 4
      %v3459 = vsel %vm768, %v3456, %v3458
      %v3460 = vrot.slane %v3406, 4
      %v3461 = vsel %vm768, %v3458, %v3460
      %v3462 = vrot.slane %v3407, 4
      %v3463 = vsel %vm768, %v3460, %v3462
      %v3464 = vrot.slane %v3408, 4
      %v3465 = vsel %vm768, %v3462, %v3464
      %v3466 = vrot.slane %v3409, 4
      %v3467 = vsel %vm768, %v3464, %v3466
      %v3468 = vrot.slane %v3410, 4
      %v3469 = vsel %vm768, %v3466, %v3468
      %v3470 = vrot.slane %v3411, 4
      %v3471 = vsel %vm768, %v3468, %v3470
      %v3472 = vrot.slane %v3412, 4
      %v3473 = vsel %vm768, %v3470, %v3472
      %v3474 = vrot.slane %v3413, 4
      %v3475 = vsel %vm768, %v3472, %v3474
      %v3476 = vrot.slane %v3414, 4
      %v3477 = vsel %vm768, %v3474, %v3476
      %v3478 = vrot.slane %v3415, 4
      %v3479 = vsel %vm768, %v3476, %v3478
      %v3480 = vrot.slane %v3416, 4
      %v3481 = vsel %vm768, %v3478, %v3480
      %v3482 = vrot.slane %v3417, 4
      %v3483 = vsel %vm768, %v3480, %v3482
      %v3484 = vrot.slane %v3418, 4
      %v3485 = vsel %vm768, %v3482, %v3484
      %v3518 = vunpack.c.l.b16 %v3420
      %v3519 = vunpack.c.l.b16 %v3421
      %v3520 = vunpack.c.l.b16 %v3422
      %v3521 = vunpack.c.l.b16 %v3423
      %v3522 = vunpack.c.l.b16 %v3424
      %v3523 = vunpack.c.l.b16 %v3425
      %v3524 = vunpack.c.l.b16 %v3426
      %v3525 = vunpack.c.l.b16 %v3427
      %v3526 = vunpack.c.l.b16 %v3428
      %v3527 = vunpack.c.l.b16 %v3429
      %v3528 = vunpack.c.l.b16 %v3430
      %v3529 = vunpack.c.l.b16 %v3431
      %v3530 = vunpack.c.l.b16 %v3432
      %v3531 = vunpack.c.l.b16 %v3433
      %v3532 = vunpack.c.l.b16 %v3434
      %v3533 = vunpack.c.l.b16 %v3435
      %v3534 = vpack.c.b16 %v3519, %v3518
      %v3535 = vpack.c.b16 %v3521, %v3520
      %v3536 = vpack.c.b16 %v3523, %v3522
      %v3537 = vpack.c.b16 %v3525, %v3524
      %v3538 = vpack.c.b16 %v3527, %v3526
      %v3539 = vpack.c.b16 %v3529, %v3528
      %v3540 = vpack.c.b16 %v3531, %v3530
      %v3541 = vpack.c.b16 %v3533, %v3532
      %3550 = vmatprep.subr.bf16.mxu0 0
      %3551 = vmatpush1.bf16.msra.mxu0 %v3534
      %3552 = vmatprep.subr.bf16.mxu0 0
      %3553 = vmatpush1.bf16.msra.mxu0 %v3535
      %3554 = vmatprep.subr.bf16.mxu0 0
      %3555 = vmatpush1.bf16.msra.mxu0 %v3536
      %3556 = vmatprep.subr.bf16.mxu0 0
      %3557 = vmatpush1.bf16.msra.mxu0 %v3537
      %3558 = vmatprep.subr.bf16.mxu0 0
      %3559 = vmatpush1.bf16.msra.mxu0 %v3538
      %3560 = vmatprep.subr.bf16.mxu0 0
      %3561 = vmatpush1.bf16.msra.mxu0 %v3539
      %3562 = vmatprep.subr.bf16.mxu0 0
      %3563 = vmatpush1.bf16.msra.mxu0 %v3540
      %3564 = vmatprep.subr.bf16.mxu0 0
      %3565 = vmatpush1.bf16.msra.mxu0 %v3541
      %3566 = vmatprep.subr.bf16.mxu0 0
      %3567 = vmatpush1.bf16.msra.mxu0 0
      %3568 = vmatprep.subr.bf16.mxu0 0
      %3569 = vmatpush1.bf16.msra.mxu0 0
      %3570 = vmatprep.subr.bf16.mxu0 0
      %3571 = vmatpush1.bf16.msra.mxu0 0
      %3572 = vmatprep.subr.bf16.mxu0 0
      %3573 = vmatpush1.bf16.msra.mxu0 0
      %3574 = vmatprep.subr.bf16.mxu0 0
      %3575 = vmatpush1.bf16.msra.mxu0 0
      %3576 = vmatprep.subr.bf16.mxu0 0
      %3577 = vmatpush1.bf16.msra.mxu0 0
      %3578 = vmatprep.subr.bf16.mxu0 0
      %3579 = vmatpush1.bf16.msra.mxu0 0
      %3580 = vmatprep.subr.bf16.mxu0 0
      %3581 = vmatpush1.bf16.msra.mxu0 0
      %3582 = vmatprep.mubr.bf16.mxu0 0
      %3583 = vmatmul.mubr.bf16.gmra.mrb[0].mxu0 %v3455
      %v3584 = vpop.f32.mrb[0].mxu0
      %v3585 = vadd.f32 0.0, %v3584
      %v3586 = vpop.f32.mrb[0].mxu0
      %v3587 = vpop.f32.mrb[0].mxu0
      %v3588 = vadd.f32 0.0, %v3587
      %v3589 = vpop.f32.mrb[0].mxu0
      %3590 = vmatprep.mubr.bf16.mxu0 0
      %3591 = vmatmul.mubr.bf16.gmra.mrb[0].mxu0 %v3457
      %v3592 = vpop.f32.mrb[0].mxu0
      %v3593 = vadd.f32 0.0, %v3592
      %v3594 = vpop.f32.mrb[0].mxu0
      %v3595 = vpop.f32.mrb[0].mxu0
      %v3596 = vadd.f32 0.0, %v3595
      %v3597 = vpop.f32.mrb[0].mxu0
      %3598 = vmatprep.mubr.bf16.mxu0 0
      %3599 = vmatmul.mubr.bf16.gmra.mrb[0].mxu0 %v3459
      %v3600 = vpop.f32.mrb[0].mxu0
      %v3601 = vadd.f32 0.0, %v3600
      %v3602 = vpop.f32.mrb[0].mxu0
      %v3603 = vpop.f32.mrb[0].mxu0
      %v3604 = vadd.f32 0.0, %v3603
      %v3605 = vpop.f32.mrb[0].mxu0
      %3606 = vmatprep.mubr.bf16.mxu0 0
      %3607 = vmatmul.mubr.bf16.gmra.mrb[0].mxu0 %v3461
      %v3608 = vpop.f32.mrb[0].mxu0
      %v3609 = vadd.f32 0.0, %v3608
      %v3610 = vpop.f32.mrb[0].mxu0
      %v3611 = vpop.f32.mrb[0].mxu0
      %v3612 = vadd.f32 0.0, %v3611
      %v3613 = vpop.f32.mrb[0].mxu0
      %3614 = vmatprep.mubr.bf16.mxu0 0
      %3615 = vmatmul.mubr.bf16.gmra.mrb[0].mxu0 %v3463
      %v3616 = vpop.f32.mrb[0].mxu0
      %v3617 = vadd.f32 0.0, %v3616
      %v3618 = vpop.f32.mrb[0].mxu0
      %v3619 = vpop.f32.mrb[0].mxu0
      %v3620 = vadd.f32 0.0, %v3619
      %v3621 = vpop.f32.mrb[0].mxu0
      %3622 = vmatprep.mubr.bf16.mxu0 0
      %3623 = vmatmul.mubr.bf16.gmra.mrb[0].mxu0 %v3465
      %v3624 = vpop.f32.mrb[0].mxu0
      %v3625 = vadd.f32 0.0, %v3624
      %v3626 = vpop.f32.mrb[0].mxu0
      %v3627 = vpop.f32.mrb[0].mxu0
      %v3628 = vadd.f32 0.0, %v3627
      %v3629 = vpop.f32.mrb[0].mxu0
      %3630 = vmatprep.mubr.bf16.mxu0 0
      %3631 = vmatmul.mubr.bf16.gmra.mrb[0].mxu0 %v3467
      %v3632 = vpop.f32.mrb[0].mxu0
      %v3633 = vadd.f32 0.0, %v3632
      %v3634 = vpop.f32.mrb[0].mxu0
      %v3635 = vpop.f32.mrb[0].mxu0
      %v3636 = vadd.f32 0.0, %v3635
      %v3637 = vpop.f32.mrb[0].mxu0
      %3638 = vmatprep.mubr.bf16.mxu0 0
      %3639 = vmatmul.mubr.bf16.gmra.mrb[0].mxu0 %v3469
      %v3640 = vpop.f32.mrb[0].mxu0
      %v3641 = vadd.f32 0.0, %v3640
      %v3642 = vpop.f32.mrb[0].mxu0
      %v3643 = vpop.f32.mrb[0].mxu0
      %v3644 = vadd.f32 0.0, %v3643
      %v3645 = vpop.f32.mrb[0].mxu0
      %3646 = vmatprep.mubr.bf16.mxu0 0
      %3647 = vmatmul.mubr.bf16.gmra.mrb[0].mxu0 %v3471
      %v3648 = vpop.f32.mrb[0].mxu0
      %v3649 = vadd.f32 0.0, %v3648
      %v3650 = vpop.f32.mrb[0].mxu0
      %v3651 = vpop.f32.mrb[0].mxu0
      %v3652 = vadd.f32 0.0, %v3651
      %v3653 = vpop.f32.mrb[0].mxu0
      %3654 = vmatprep.mubr.bf16.mxu0 0
      %3655 = vmatmul.mubr.bf16.gmra.mrb[0].mxu0 %v3473
      %v3656 = vpop.f32.mrb[0].mxu0
      %v3657 = vadd.f32 0.0, %v3656
      %v3658 = vpop.f32.mrb[0].mxu0
      %v3659 = vpop.f32.mrb[0].mxu0
      %v3660 = vadd.f32 0.0, %v3659
      %v3661 = vpop.f32.mrb[0].mxu0
      %3662 = vmatprep.mubr.bf16.mxu0 0
      %3663 = vmatmul.mubr.bf16.gmra.mrb[0].mxu0 %v3475
      %v3664 = vpop.f32.mrb[0].mxu0
      %v3665 = vadd.f32 0.0, %v3664
      %v3666 = vpop.f32.mrb[0].mxu0
      %v3667 = vpop.f32.mrb[0].mxu0
      %v3668 = vadd.f32 0.0, %v3667
      %v3669 = vpop.f32.mrb[0].mxu0
      %3670 = vmatprep.mubr.bf16.mxu0 0
      %3671 = vmatmul.mubr.bf16.gmra.mrb[0].mxu0 %v3477
      %v3672 = vpop.f32.mrb[0].mxu0
      %v3673 = vadd.f32 0.0, %v3672
      %v3674 = vpop.f32.mrb[0].mxu0
      %v3675 = vpop.f32.mrb[0].mxu0
      %v3676 = vadd.f32 0.0, %v3675
      %v3677 = vpop.f32.mrb[0].mxu0
      %3678 = vmatprep.mubr.bf16.mxu0 0
      %3679 = vmatmul.mubr.bf16.gmra.mrb[0].mxu0 %v3479
      %v3680 = vpop.f32.mrb[0].mxu0
      %v3681 = vadd.f32 0.0, %v3680
      %v3682 = vpop.f32.mrb[0].mxu0
      %v3683 = vpop.f32.mrb[0].mxu0
      %v3684 = vadd.f32 0.0, %v3683
      %v3685 = vpop.f32.mrb[0].mxu0
      %3686 = vmatprep.mubr.bf16.mxu0 0
      %3687 = vmatmul.mubr.bf16.gmra.mrb[0].mxu0 %v3481
      %v3688 = vpop.f32.mrb[0].mxu0
      %v3689 = vadd.f32 0.0, %v3688
      %v3690 = vpop.f32.mrb[0].mxu0
      %v3691 = vpop.f32.mrb[0].mxu0
      %v3692 = vadd.f32 0.0, %v3691
      %v3693 = vpop.f32.mrb[0].mxu0
      %3694 = vmatprep.mubr.bf16.mxu0 0
      %3695 = vmatmul.mubr.bf16.gmra.mrb[0].mxu0 %v3483
      %v3696 = vpop.f32.mrb[0].mxu0
      %v3697 = vadd.f32 0.0, %v3696
      %v3698 = vpop.f32.mrb[0].mxu0
      %v3699 = vpop.f32.mrb[0].mxu0
      %v3700 = vadd.f32 0.0, %v3699
      %v3701 = vpop.f32.mrb[0].mxu0
      %3702 = vmatprep.mubr.bf16.mxu0 0
      %3703 = vmatmul.mubr.bf16.gmra.mrb[0].mxu0 %v3485
      %v3704 = vpop.f32.mrb[0].mxu0
      %v3705 = vadd.f32 0.0, %v3704
      %v3706 = vpop.f32.mrb[0].mxu0
      %v3707 = vpop.f32.mrb[0].mxu0
      %v3708 = vadd.f32 0.0, %v3707
      %v3709 = vpop.f32.mrb[0].mxu0
      %3710 = vdwg.mxu0
      %v3711 = vld [vmem:[#allocation3] sm:$0xff]
      %v3712 = vld [vmem:[#allocation3 + $0x8] sm:$0xff]
      %v3713 = vld [vmem:[#allocation3 + $0x10] sm:$0xff]
      %v3714 = vld [vmem:[#allocation3 + $0x18] sm:$0xff]
      %v3715 = vld [vmem:[#allocation3 + $0x20] sm:$0xff]
      %v3716 = vld [vmem:[#allocation3 + $0x28] sm:$0xff]
      %v3717 = vld [vmem:[#allocation3 + $0x30] sm:$0xff]
      %v3718 = vld [vmem:[#allocation3 + $0x38] sm:$0xff]
      %v3719 = vld [vmem:[#allocation3 + $0x40] sm:$0xff]
      %v3720 = vld [vmem:[#allocation3 + $0x48] sm:$0xff]
      %v3721 = vld [vmem:[#allocation3 + $0x50] sm:$0xff]
      %v3722 = vld [vmem:[#allocation3 + $0x58] sm:$0xff]
      %v3723 = vld [vmem:[#allocation3 + $0x60] sm:$0xff]
      %v3724 = vld [vmem:[#allocation3 + $0x68] sm:$0xff]
      %v3725 = vld [vmem:[#allocation3 + $0x70] sm:$0xff]
      %v3726 = vld [vmem:[#allocation3 + $0x78] sm:$0xff]
      %v3727 = vld [vmem:[#allocation3 + $0x80] sm:$0xff]
      %v3728 = vld [vmem:[#allocation3 + $0x88] sm:$0xff]
      %v3729 = vld [vmem:[#allocation3 + $0x90] sm:$0xff]
      %v3730 = vld [vmem:[#allocation3 + $0x98] sm:$0xff]
      %v3731 = vld [vmem:[#allocation3 + $0xa0] sm:$0xff]
      %v3732 = vld [vmem:[#allocation3 + $0xa8] sm:$0xff]
      %v3733 = vld [vmem:[#allocation3 + $0xb0] sm:$0xff]
      %v3734 = vld [vmem:[#allocation3 + $0xb8] sm:$0xff]
      %v3735 = vld [vmem:[#allocation3 + $0xc0] sm:$0xff]
      %v3736 = vld [vmem:[#allocation3 + $0xc8] sm:$0xff]
      %v3737 = vld [vmem:[#allocation3 + $0xd0] sm:$0xff]
      %v3738 = vld [vmem:[#allocation3 + $0xd8] sm:$0xff]
      %v3739 = vld [vmem:[#allocation3 + $0xe0] sm:$0xff]
      %v3740 = vld [vmem:[#allocation3 + $0xe8] sm:$0xff]
      %v3741 = vld [vmem:[#allocation3 + $0xf0] sm:$0xff]
      %v3742 = vld [vmem:[#allocation3 + $0xf8] sm:$0xff]
      %v3743 = vadd.f32 %v3711, %v3585
      %v3744 = vadd.f32 %v3712, %v3588
      %v3745 = vadd.f32 %v3713, %v3593
      %v3746 = vadd.f32 %v3714, %v3596
      %v3747 = vadd.f32 %v3715, %v3601
      %v3748 = vadd.f32 %v3716, %v3604
      %v3749 = vadd.f32 %v3717, %v3609
      %v3750 = vadd.f32 %v3718, %v3612
      %v3751 = vadd.f32 %v3719, %v3617
      %v3752 = vadd.f32 %v3720, %v3620
      %v3753 = vadd.f32 %v3721, %v3625
      %v3754 = vadd.f32 %v3722, %v3628
      %v3755 = vadd.f32 %v3723, %v3633
      %v3756 = vadd.f32 %v3724, %v3636
      %v3757 = vadd.f32 %v3725, %v3641
      %v3758 = vadd.f32 %v3726, %v3644
      %v3759 = vadd.f32 %v3727, %v3649
      %v3760 = vadd.f32 %v3728, %v3652
      %v3761 = vadd.f32 %v3729, %v3657
      %v3762 = vadd.f32 %v3730, %v3660
      %v3763 = vadd.f32 %v3731, %v3665
      %v3764 = vadd.f32 %v3732, %v3668
      %v3765 = vadd.f32 %v3733, %v3673
      %v3766 = vadd.f32 %v3734, %v3676
      %v3767 = vadd.f32 %v3735, %v3681
      %v3768 = vadd.f32 %v3736, %v3684
      %v3769 = vadd.f32 %v3737, %v3689
      %v3770 = vadd.f32 %v3738, %v3692
      %v3771 = vadd.f32 %v3739, %v3697
      %v3772 = vadd.f32 %v3740, %v3700
      %v3773 = vadd.f32 %v3741, %v3705
      %v3774 = vadd.f32 %v3742, %v3708
      %3775 = vst [vmem:[#allocation3] sm:$0xff] %v3743
      %3776 = vst [vmem:[#allocation3 + $0x8] sm:$0xff] %v3744
      %3777 = vst [vmem:[#allocation3 + $0x10] sm:$0xff] %v3745
      %3778 = vst [vmem:[#allocation3 + $0x18] sm:$0xff] %v3746
      %3779 = vst [vmem:[#allocation3 + $0x20] sm:$0xff] %v3747
      %3780 = vst [vmem:[#allocation3 + $0x28] sm:$0xff] %v3748
      %3781 = vst [vmem:[#allocation3 + $0x30] sm:$0xff] %v3749
      %3782 = vst [vmem:[#allocation3 + $0x38] sm:$0xff] %v3750
      %3783 = vst [vmem:[#allocation3 + $0x40] sm:$0xff] %v3751
      %3784 = vst [vmem:[#allocation3 + $0x48] sm:$0xff] %v3752
      %3785 = vst [vmem:[#allocation3 + $0x50] sm:$0xff] %v3753
      %3786 = vst [vmem:[#allocation3 + $0x58] sm:$0xff] %v3754
      %3787 = vst [vmem:[#allocation3 + $0x60] sm:$0xff] %v3755
      %3788 = vst [vmem:[#allocation3 + $0x68] sm:$0xff] %v3756
      %3789 = vst [vmem:[#allocation3 + $0x70] sm:$0xff] %v3757
      %3790 = vst [vmem:[#allocation3 + $0x78] sm:$0xff] %v3758
      %3791 = vst [vmem:[#allocation3 + $0x80] sm:$0xff] %v3759
      %3792 = vst [vmem:[#allocation3 + $0x88] sm:$0xff] %v3760
      %3793 = vst [vmem:[#allocation3 + $0x90] sm:$0xff] %v3761
      %3794 = vst [vmem:[#allocation3 + $0x98] sm:$0xff] %v3762
      %3795 = vst [vmem:[#allocation3 + $0xa0] sm:$0xff] %v3763
      %3796 = vst [vmem:[#allocation3 + $0xa8] sm:$0xff] %v3764
      %3797 = vst [vmem:[#allocation3 + $0xb0] sm:$0xff] %v3765
      %3798 = vst [vmem:[#allocation3 + $0xb8] sm:$0xff] %v3766
      %3799 = vst [vmem:[#allocation3 + $0xc0] sm:$0xff] %v3767
      %3800 = vst [vmem:[#allocation3 + $0xc8] sm:$0xff] %v3768
      %3801 = vst [vmem:[#allocation3 + $0xd0] sm:$0xff] %v3769
      %3802 = vst [vmem:[#allocation3 + $0xd8] sm:$0xff] %v3770
      %3803 = vst [vmem:[#allocation3 + $0xe0] sm:$0xff] %v3771
      %3804 = vst [vmem:[#allocation3 + $0xe8] sm:$0xff] %v3772
      %3805 = vst [vmem:[#allocation3 + $0xf0] sm:$0xff] %v3773
      %3806 = vst [vmem:[#allocation3 + $0xf8] sm:$0xff] %v3774
      %v3807 = vld [vmem:[#allocation2 + $0x8] sm:$0xf0]
      %v3808 = vld [vmem:[#allocation2 + $0x10] sm:$0xff]
      %v3809 = vld [vmem:[#allocation2 + $0x18] sm:$0xff]
      %v3810 = vld [vmem:[#allocation2 + $0x20] sm:$0xff]
      %v3811 = vld [vmem:[#allocation2 + $0x28] sm:$0xff]
      %v3812 = vld [vmem:[#allocation2 + $0x30] sm:$0xff]
      %v3813 = vld [vmem:[#allocation2 + $0x38] sm:$0xff]
      %v3814 = vld [vmem:[#allocation2 + $0x40] sm:$0xff]
      %v3815 = vld [vmem:[#allocation2 + $0x48] sm:$0xff]
      %v3816 = vld [vmem:[#allocation2 + $0x50] sm:$0xff]
      %v3817 = vld [vmem:[#allocation2 + $0x58] sm:$0xff]
      %v3818 = vld [vmem:[#allocation2 + $0x60] sm:$0xff]
      %v3819 = vld [vmem:[#allocation2 + $0x68] sm:$0xff]
      %v3820 = vld [vmem:[#allocation2 + $0x70] sm:$0xff]
      %v3821 = vld [vmem:[#allocation2 + $0x78] sm:$0xff]
      %v3822 = vld [vmem:[#allocation2 + $0x80] sm:$0xff]
      %v3823 = vld [vmem:[#allocation2 + $0x88] sm:$0x1f]
      %s3824 = scalar_lea.vmem %s2, 320
      %v3825 = vld [vmem:[%s3824] sm:$0xf]
      %v3826 = vld [vmem:[%s3824 + $0x4] sm:$0xf]
      %v3827 = vld [vmem:[%s3824 + $0x8] sm:$0xf]
      %v3828 = vld [vmem:[%s3824 + $0xc] sm:$0xf]
      %v3829 = vld [vmem:[%s3824 + $0x10] sm:$0xf]
      %v3830 = vld [vmem:[%s3824 + $0x14] sm:$0xf]
      %v3831 = vld [vmem:[%s3824 + $0x18] sm:$0xf]
      %v3832 = vld [vmem:[%s3824 + $0x1c] sm:$0xf]
      %v3833 = vld [vmem:[%s3824 + $0x20] sm:$0xf]
      %v3834 = vld [vmem:[%s3824 + $0x24] sm:$0xf]
      %v3835 = vld [vmem:[%s3824 + $0x28] sm:$0xf]
      %v3836 = vld [vmem:[%s3824 + $0x2c] sm:$0xf]
      %v3837 = vld [vmem:[%s3824 + $0x30] sm:$0xf]
      %v3838 = vld [vmem:[%s3824 + $0x34] sm:$0xf]
      %v3839 = vld [vmem:[%s3824 + $0x38] sm:$0xf]
      %v3840 = vld [vmem:[%s3824 + $0x3c] sm:$0xf]
      %v3842 = vshrl.u32 %v3807, 16
      %v3844 = vrot.slane %v3842, 4
      %v3845 = vshll.u32 %v3807, 16
      %v3847 = vrot.slane %v3845, 5
      %v3848 = vor.u32 %v3844, %v3847
      %v3850 = vshrl.u32 %v3808, 16
      %v3852 = vrot.slane %v3850, 4
      %v3853 = vshll.u32 %v3808, 16
      %v3855 = vrot.slane %v3853, 5
      %v3856 = vor.u32 %v3852, %v3855
      %v3857 = vsel %vm2357, %v3848, %v3856
      %v3859 = vshrl.u32 %v3809, 16
      %v3861 = vrot.slane %v3859, 4
      %v3862 = vshll.u32 %v3809, 16
      %v3864 = vrot.slane %v3862, 5
      %v3865 = vor.u32 %v3861, %v3864
      %v3866 = vsel %vm2357, %v3856, %v3865
      %v3868 = vshrl.u32 %v3810, 16
      %v3870 = vrot.slane %v3868, 4
      %v3871 = vshll.u32 %v3810, 16
      %v3873 = vrot.slane %v3871, 5
      %v3874 = vor.u32 %v3870, %v3873
      %v3875 = vsel %vm2357, %v3865, %v3874
      %v3877 = vshrl.u32 %v3811, 16
      %v3879 = vrot.slane %v3877, 4
      %v3880 = vshll.u32 %v3811, 16
      %v3882 = vrot.slane %v3880, 5
      %v3883 = vor.u32 %v3879, %v3882
      %v3884 = vsel %vm2357, %v3874, %v3883
      %v3886 = vshrl.u32 %v3812, 16
      %v3888 = vrot.slane %v3886, 4
      %v3889 = vshll.u32 %v3812, 16
      %v3891 = vrot.slane %v3889, 5
      %v3892 = vor.u32 %v3888, %v3891
      %v3893 = vsel %vm2357, %v3883, %v3892
      %v3895 = vshrl.u32 %v3813, 16
      %v3897 = vrot.slane %v3895, 4
      %v3898 = vshll.u32 %v3813, 16
      %v3900 = vrot.slane %v3898, 5
      %v3901 = vor.u32 %v3897, %v3900
      %v3902 = vsel %vm2357, %v3892, %v3901
      %v3904 = vshrl.u32 %v3814, 16
      %v3906 = vrot.slane %v3904, 4
      %v3907 = vshll.u32 %v3814, 16
      %v3909 = vrot.slane %v3907, 5
      %v3910 = vor.u32 %v3906, %v3909
      %v3911 = vsel %vm2357, %v3901, %v3910
      %v3913 = vshrl.u32 %v3815, 16
      %v3915 = vrot.slane %v3913, 4
      %v3916 = vshll.u32 %v3815, 16
      %v3918 = vrot.slane %v3916, 5
      %v3919 = vor.u32 %v3915, %v3918
      %v3920 = vsel %vm2357, %v3910, %v3919
      %v3922 = vshrl.u32 %v3816, 16
      %v3924 = vrot.slane %v3922, 4
      %v3925 = vshll.u32 %v3816, 16
      %v3927 = vrot.slane %v3925, 5
      %v3928 = vor.u32 %v3924, %v3927
      %v3929 = vsel %vm2357, %v3919, %v3928
      %v3931 = vshrl.u32 %v3817, 16
      %v3933 = vrot.slane %v3931, 4
      %v3934 = vshll.u32 %v3817, 16
      %v3936 = vrot.slane %v3934, 5
      %v3937 = vor.u32 %v3933, %v3936
      %v3938 = vsel %vm2357, %v3928, %v3937
      %v3940 = vshrl.u32 %v3818, 16
      %v3942 = vrot.slane %v3940, 4
      %v3943 = vshll.u32 %v3818, 16
      %v3945 = vrot.slane %v3943, 5
      %v3946 = vor.u32 %v3942, %v3945
      %v3947 = vsel %vm2357, %v3937, %v3946
      %v3949 = vshrl.u32 %v3819, 16
      %v3951 = vrot.slane %v3949, 4
      %v3952 = vshll.u32 %v3819, 16
      %v3954 = vrot.slane %v3952, 5
      %v3955 = vor.u32 %v3951, %v3954
      %v3956 = vsel %vm2357, %v3946, %v3955
      %v3958 = vshrl.u32 %v3820, 16
      %v3960 = vrot.slane %v3958, 4
      %v3961 = vshll.u32 %v3820, 16
      %v3963 = vrot.slane %v3961, 5
      %v3964 = vor.u32 %v3960, %v3963
      %v3965 = vsel %vm2357, %v3955, %v3964
      %v3967 = vshrl.u32 %v3821, 16
      %v3969 = vrot.slane %v3967, 4
      %v3970 = vshll.u32 %v3821, 16
      %v3972 = vrot.slane %v3970, 5
      %v3973 = vor.u32 %v3969, %v3972
      %v3974 = vsel %vm2357, %v3964, %v3973
      %v3976 = vshrl.u32 %v3822, 16
      %v3978 = vrot.slane %v3976, 4
      %v3979 = vshll.u32 %v3822, 16
      %v3981 = vrot.slane %v3979, 5
      %v3982 = vor.u32 %v3978, %v3981
      %v3983 = vsel %vm2357, %v3973, %v3982
      %v3985 = vshrl.u32 %v3823, 16
      %v3987 = vrot.slane %v3985, 4
      %v3988 = vshll.u32 %v3823, 16
      %v3990 = vrot.slane %v3988, 5
      %v3991 = vor.u32 %v3987, %v3990
      %v3992 = vsel %vm2357, %v3982, %v3991
      %v4025 = vunpack.c.l.b16 %v3825
      %v4026 = vunpack.c.l.b16 %v3826
      %v4027 = vunpack.c.l.b16 %v3827
      %v4028 = vunpack.c.l.b16 %v3828
      %v4029 = vunpack.c.l.b16 %v3829
      %v4030 = vunpack.c.l.b16 %v3830
      %v4031 = vunpack.c.l.b16 %v3831
      %v4032 = vunpack.c.l.b16 %v3832
      %v4033 = vunpack.c.l.b16 %v3833
      %v4034 = vunpack.c.l.b16 %v3834
      %v4035 = vunpack.c.l.b16 %v3835
      %v4036 = vunpack.c.l.b16 %v3836
      %v4037 = vunpack.c.l.b16 %v3837
      %v4038 = vunpack.c.l.b16 %v3838
      %v4039 = vunpack.c.l.b16 %v3839
      %v4040 = vunpack.c.l.b16 %v3840
      %v4041 = vpack.c.b16 %v4026, %v4025
      %v4042 = vpack.c.b16 %v4028, %v4027
      %v4043 = vpack.c.b16 %v4030, %v4029
      %v4044 = vpack.c.b16 %v4032, %v4031
      %v4045 = vpack.c.b16 %v4034, %v4033
      %v4046 = vpack.c.b16 %v4036, %v4035
      %v4047 = vpack.c.b16 %v4038, %v4037
      %v4048 = vpack.c.b16 %v4040, %v4039
      %4057 = vmatprep.subr.bf16.mxu0 0
      %4058 = vmatpush1.bf16.msra.mxu0 %v4041
      %4059 = vmatprep.subr.bf16.mxu0 0
      %4060 = vmatpush1.bf16.msra.mxu0 %v4042
      %4061 = vmatprep.subr.bf16.mxu0 0
      %4062 = vmatpush1.bf16.msra.mxu0 %v4043
      %4063 = vmatprep.subr.bf16.mxu0 0
      %4064 = vmatpush1.bf16.msra.mxu0 %v4044
      %4065 = vmatprep.subr.bf16.mxu0 0
      %4066 = vmatpush1.bf16.msra.mxu0 %v4045
      %4067 = vmatprep.subr.bf16.mxu0 0
      %4068 = vmatpush1.bf16.msra.mxu0 %v4046
      %4069 = vmatprep.subr.bf16.mxu0 0
      %4070 = vmatpush1.bf16.msra.mxu0 %v4047
      %4071 = vmatprep.subr.bf16.mxu0 0
      %4072 = vmatpush1.bf16.msra.mxu0 %v4048
      %4073 = vmatprep.subr.bf16.mxu0 0
      %4074 = vmatpush1.bf16.msra.mxu0 0
      %4075 = vmatprep.subr.bf16.mxu0 0
      %4076 = vmatpush1.bf16.msra.mxu0 0
      %4077 = vmatprep.subr.bf16.mxu0 0
      %4078 = vmatpush1.bf16.msra.mxu0 0
      %4079 = vmatprep.subr.bf16.mxu0 0
      %4080 = vmatpush1.bf16.msra.mxu0 0
      %4081 = vmatprep.subr.bf16.mxu0 0
      %4082 = vmatpush1.bf16.msra.mxu0 0
      %4083 = vmatprep.subr.bf16.mxu0 0
      %4084 = vmatpush1.bf16.msra.mxu0 0
      %4085 = vmatprep.subr.bf16.mxu0 0
      %4086 = vmatpush1.bf16.msra.mxu0 0
      %4087 = vmatprep.subr.bf16.mxu0 0
      %4088 = vmatpush1.bf16.msra.mxu0 0
      %4089 = vmatprep.mubr.bf16.mxu0 0
      %4090 = vmatmul.mubr.bf16.gmra.mrb[0].mxu0 %v3857
      %v4091 = vpop.f32.mrb[0].mxu0
      %v4092 = vadd.f32 0.0, %v4091
      %v4093 = vpop.f32.mrb[0].mxu0
      %v4094 = vpop.f32.mrb[0].mxu0
      %v4095 = vadd.f32 0.0, %v4094
      %v4096 = vpop.f32.mrb[0].mxu0
      %4097 = vmatprep.mubr.bf16.mxu0 0
      %4098 = vmatmul.mubr.bf16.gmra.mrb[0].mxu0 %v3866
      %v4099 = vpop.f32.mrb[0].mxu0
      %v4100 = vadd.f32 0.0, %v4099
      %v4101 = vpop.f32.mrb[0].mxu0
      %v4102 = vpop.f32.mrb[0].mxu0
      %v4103 = vadd.f32 0.0, %v4102
      %v4104 = vpop.f32.mrb[0].mxu0
      %4105 = vmatprep.mubr.bf16.mxu0 0
      %4106 = vmatmul.mubr.bf16.gmra.mrb[0].mxu0 %v3875
      %v4107 = vpop.f32.mrb[0].mxu0
      %v4108 = vadd.f32 0.0, %v4107
      %v4109 = vpop.f32.mrb[0].mxu0
      %v4110 = vpop.f32.mrb[0].mxu0
      %v4111 = vadd.f32 0.0, %v4110
      %v4112 = vpop.f32.mrb[0].mxu0
      %4113 = vmatprep.mubr.bf16.mxu0 0
      %4114 = vmatmul.mubr.bf16.gmra.mrb[0].mxu0 %v3884
      %v4115 = vpop.f32.mrb[0].mxu0
      %v4116 = vadd.f32 0.0, %v4115
      %v4117 = vpop.f32.mrb[0].mxu0
      %v4118 = vpop.f32.mrb[0].mxu0
      %v4119 = vadd.f32 0.0, %v4118
      %v4120 = vpop.f32.mrb[0].mxu0
      %4121 = vmatprep.mubr.bf16.mxu0 0
      %4122 = vmatmul.mubr.bf16.gmra.mrb[0].mxu0 %v3893
      %v4123 = vpop.f32.mrb[0].mxu0
      %v4124 = vadd.f32 0.0, %v4123
      %v4125 = vpop.f32.mrb[0].mxu0
      %v4126 = vpop.f32.mrb[0].mxu0
      %v4127 = vadd.f32 0.0, %v4126
      %v4128 = vpop.f32.mrb[0].mxu0
      %4129 = vmatprep.mubr.bf16.mxu0 0
      %4130 = vmatmul.mubr.bf16.gmra.mrb[0].mxu0 %v3902
      %v4131 = vpop.f32.mrb[0].mxu0
      %v4132 = vadd.f32 0.0, %v4131
      %v4133 = vpop.f32.mrb[0].mxu0
      %v4134 = vpop.f32.mrb[0].mxu0
      %v4135 = vadd.f32 0.0, %v4134
      %v4136 = vpop.f32.mrb[0].mxu0
      %4137 = vmatprep.mubr.bf16.mxu0 0
      %4138 = vmatmul.mubr.bf16.gmra.mrb[0].mxu0 %v3911
      %v4139 = vpop.f32.mrb[0].mxu0
      %v4140 = vadd.f32 0.0, %v4139
      %v4141 = vpop.f32.mrb[0].mxu0
      %v4142 = vpop.f32.mrb[0].mxu0
      %v4143 = vadd.f32 0.0, %v4142
      %v4144 = vpop.f32.mrb[0].mxu0
      %4145 = vmatprep.mubr.bf16.mxu0 0
      %4146 = vmatmul.mubr.bf16.gmra.mrb[0].mxu0 %v3920
      %v4147 = vpop.f32.mrb[0].mxu0
      %v4148 = vadd.f32 0.0, %v4147
      %v4149 = vpop.f32.mrb[0].mxu0
      %v4150 = vpop.f32.mrb[0].mxu0
      %v4151 = vadd.f32 0.0, %v4150
      %v4152 = vpop.f32.mrb[0].mxu0
      %4153 = vmatprep.mubr.bf16.mxu0 0
      %4154 = vmatmul.mubr.bf16.gmra.mrb[0].mxu0 %v3929
      %v4155 = vpop.f32.mrb[0].mxu0
      %v4156 = vadd.f32 0.0, %v4155
      %v4157 = vpop.f32.mrb[0].mxu0
      %v4158 = vpop.f32.mrb[0].mxu0
      %v4159 = vadd.f32 0.0, %v4158
      %v4160 = vpop.f32.mrb[0].mxu0
      %4161 = vmatprep.mubr.bf16.mxu0 0
      %4162 = vmatmul.mubr.bf16.gmra.mrb[0].mxu0 %v3938
      %v4163 = vpop.f32.mrb[0].mxu0
      %v4164 = vadd.f32 0.0, %v4163
      %v4165 = vpop.f32.mrb[0].mxu0
      %v4166 = vpop.f32.mrb[0].mxu0
      %v4167 = vadd.f32 0.0, %v4166
      %v4168 = vpop.f32.mrb[0].mxu0
      %4169 = vmatprep.mubr.bf16.mxu0 0
      %4170 = vmatmul.mubr.bf16.gmra.mrb[0].mxu0 %v3947
      %v4171 = vpop.f32.mrb[0].mxu0
      %v4172 = vadd.f32 0.0, %v4171
      %v4173 = vpop.f32.mrb[0].mxu0
      %v4174 = vpop.f32.mrb[0].mxu0
      %v4175 = vadd.f32 0.0, %v4174
      %v4176 = vpop.f32.mrb[0].mxu0
      %4177 = vmatprep.mubr.bf16.mxu0 0
      %4178 = vmatmul.mubr.bf16.gmra.mrb[0].mxu0 %v3956
      %v4179 = vpop.f32.mrb[0].mxu0
      %v4180 = vadd.f32 0.0, %v4179
      %v4181 = vpop.f32.mrb[0].mxu0
      %v4182 = vpop.f32.mrb[0].mxu0
      %v4183 = vadd.f32 0.0, %v4182
      %v4184 = vpop.f32.mrb[0].mxu0
      %4185 = vmatprep.mubr.bf16.mxu0 0
      %4186 = vmatmul.mubr.bf16.gmra.mrb[0].mxu0 %v3965
      %v4187 = vpop.f32.mrb[0].mxu0
      %v4188 = vadd.f32 0.0, %v4187
      %v4189 = vpop.f32.mrb[0].mxu0
      %v4190 = vpop.f32.mrb[0].mxu0
      %v4191 = vadd.f32 0.0, %v4190
      %v4192 = vpop.f32.mrb[0].mxu0
      %4193 = vmatprep.mubr.bf16.mxu0 0
      %4194 = vmatmul.mubr.bf16.gmra.mrb[0].mxu0 %v3974
      %v4195 = vpop.f32.mrb[0].mxu0
      %v4196 = vadd.f32 0.0, %v4195
      %v4197 = vpop.f32.mrb[0].mxu0
      %v4198 = vpop.f32.mrb[0].mxu0
      %v4199 = vadd.f32 0.0, %v4198
      %v4200 = vpop.f32.mrb[0].mxu0
      %4201 = vmatprep.mubr.bf16.mxu0 0
      %4202 = vmatmul.mubr.bf16.gmra.mrb[0].mxu0 %v3983
      %v4203 = vpop.f32.mrb[0].mxu0
      %v4204 = vadd.f32 0.0, %v4203
      %v4205 = vpop.f32.mrb[0].mxu0
      %v4206 = vpop.f32.mrb[0].mxu0
      %v4207 = vadd.f32 0.0, %v4206
      %v4208 = vpop.f32.mrb[0].mxu0
      %4209 = vmatprep.mubr.bf16.mxu0 0
      %4210 = vmatmul.mubr.bf16.gmra.mrb[0].mxu0 %v3992
      %v4211 = vpop.f32.mrb[0].mxu0
      %v4212 = vadd.f32 0.0, %v4211
      %v4213 = vpop.f32.mrb[0].mxu0
      %v4214 = vpop.f32.mrb[0].mxu0
      %v4215 = vadd.f32 0.0, %v4214
      %v4216 = vpop.f32.mrb[0].mxu0
      %4217 = vdwg.mxu0
      %v4218 = vmul.f32 %v4092, %v1411
      %v4219 = vmul.f32 %v4095, %v1412
      %v4220 = vmul.f32 %v4100, %v1413
      %v4221 = vmul.f32 %v4103, %v1414
      %v4222 = vmul.f32 %v4108, %v1415
      %v4223 = vmul.f32 %v4111, %v1416
      %v4224 = vmul.f32 %v4116, %v1417
      %v4225 = vmul.f32 %v4119, %v1418
      %v4226 = vmul.f32 %v4124, %v1419
      %v4227 = vmul.f32 %v4127, %v1420
      %v4228 = vmul.f32 %v4132, %v1421
      %v4229 = vmul.f32 %v4135, %v1422
      %v4230 = vmul.f32 %v4140, %v1423
      %v4231 = vmul.f32 %v4143, %v1424
      %v4232 = vmul.f32 %v4148, %v1425
      %v4233 = vmul.f32 %v4151, %v1426
      %v4234 = vmul.f32 %v4156, %v1427
      %v4235 = vmul.f32 %v4159, %v1428
      %v4236 = vmul.f32 %v4164, %v1429
      %v4237 = vmul.f32 %v4167, %v1430
      %v4238 = vmul.f32 %v4172, %v1431
      %v4239 = vmul.f32 %v4175, %v1432
      %v4240 = vmul.f32 %v4180, %v1433
      %v4241 = vmul.f32 %v4183, %v1434
      %v4242 = vmul.f32 %v4188, %v1435
      %v4243 = vmul.f32 %v4191, %v1436
      %v4244 = vmul.f32 %v4196, %v1437
      %v4245 = vmul.f32 %v4199, %v1438
      %v4246 = vmul.f32 %v4204, %v1439
      %v4247 = vmul.f32 %v4207, %v1440
      %v4248 = vmul.f32 %v4212, %v1441
      %v4249 = vmul.f32 %v4215, %v1442
      %v4250 = vld [vmem:[#allocation3] sm:$0xff]
      %v4251 = vld [vmem:[#allocation3 + $0x8] sm:$0xff]
      %v4252 = vld [vmem:[#allocation3 + $0x10] sm:$0xff]
      %v4253 = vld [vmem:[#allocation3 + $0x18] sm:$0xff]
      %v4254 = vld [vmem:[#allocation3 + $0x20] sm:$0xff]
      %v4255 = vld [vmem:[#allocation3 + $0x28] sm:$0xff]
      %v4256 = vld [vmem:[#allocation3 + $0x30] sm:$0xff]
      %v4257 = vld [vmem:[#allocation3 + $0x38] sm:$0xff]
      %v4258 = vld [vmem:[#allocation3 + $0x40] sm:$0xff]
      %v4259 = vld [vmem:[#allocation3 + $0x48] sm:$0xff]
      %v4260 = vld [vmem:[#allocation3 + $0x50] sm:$0xff]
      %v4261 = vld [vmem:[#allocation3 + $0x58] sm:$0xff]
      %v4262 = vld [vmem:[#allocation3 + $0x60] sm:$0xff]
      %v4263 = vld [vmem:[#allocation3 + $0x68] sm:$0xff]
      %v4264 = vld [vmem:[#allocation3 + $0x70] sm:$0xff]
      %v4265 = vld [vmem:[#allocation3 + $0x78] sm:$0xff]
      %v4266 = vld [vmem:[#allocation3 + $0x80] sm:$0xff]
      %v4267 = vld [vmem:[#allocation3 + $0x88] sm:$0xff]
      %v4268 = vld [vmem:[#allocation3 + $0x90] sm:$0xff]
      %v4269 = vld [vmem:[#allocation3 + $0x98] sm:$0xff]
      %v4270 = vld [vmem:[#allocation3 + $0xa0] sm:$0xff]
      %v4271 = vld [vmem:[#allocation3 + $0xa8] sm:$0xff]
      %v4272 = vld [vmem:[#allocation3 + $0xb0] sm:$0xff]
      %v4273 = vld [vmem:[#allocation3 + $0xb8] sm:$0xff]
      %v4274 = vld [vmem:[#allocation3 + $0xc0] sm:$0xff]
      %v4275 = vld [vmem:[#allocation3 + $0xc8] sm:$0xff]
      %v4276 = vld [vmem:[#allocation3 + $0xd0] sm:$0xff]
      %v4277 = vld [vmem:[#allocation3 + $0xd8] sm:$0xff]
      %v4278 = vld [vmem:[#allocation3 + $0xe0] sm:$0xff]
      %v4279 = vld [vmem:[#allocation3 + $0xe8] sm:$0xff]
      %v4280 = vld [vmem:[#allocation3 + $0xf0] sm:$0xff]
      %v4281 = vld [vmem:[#allocation3 + $0xf8] sm:$0xff]
      %v4282 = vadd.f32 %v4250, %v4218
      %v4283 = vadd.f32 %v4251, %v4219
      %v4284 = vadd.f32 %v4252, %v4220
      %v4285 = vadd.f32 %v4253, %v4221
      %v4286 = vadd.f32 %v4254, %v4222
      %v4287 = vadd.f32 %v4255, %v4223
      %v4288 = vadd.f32 %v4256, %v4224
      %v4289 = vadd.f32 %v4257, %v4225
      %v4290 = vadd.f32 %v4258, %v4226
      %v4291 = vadd.f32 %v4259, %v4227
      %v4292 = vadd.f32 %v4260, %v4228
      %v4293 = vadd.f32 %v4261, %v4229
      %v4294 = vadd.f32 %v4262, %v4230
      %v4295 = vadd.f32 %v4263, %v4231
      %v4296 = vadd.f32 %v4264, %v4232
      %v4297 = vadd.f32 %v4265, %v4233
      %v4298 = vadd.f32 %v4266, %v4234
      %v4299 = vadd.f32 %v4267, %v4235
      %v4300 = vadd.f32 %v4268, %v4236
      %v4301 = vadd.f32 %v4269, %v4237
      %v4302 = vadd.f32 %v4270, %v4238
      %v4303 = vadd.f32 %v4271, %v4239
      %v4304 = vadd.f32 %v4272, %v4240
      %v4305 = vadd.f32 %v4273, %v4241
      %v4306 = vadd.f32 %v4274, %v4242
      %v4307 = vadd.f32 %v4275, %v4243
      %v4308 = vadd.f32 %v4276, %v4244
      %v4309 = vadd.f32 %v4277, %v4245
      %v4310 = vadd.f32 %v4278, %v4246
      %v4311 = vadd.f32 %v4279, %v4247
      %v4312 = vadd.f32 %v4280, %v4248
      %v4313 = vadd.f32 %v4281, %v4249
      %4314 = vst [vmem:[#allocation3] sm:$0xff] %v4282
      %4315 = vst [vmem:[#allocation3 + $0x8] sm:$0xff] %v4283
      %4316 = vst [vmem:[#allocation3 + $0x10] sm:$0xff] %v4284
      %4317 = vst [vmem:[#allocation3 + $0x18] sm:$0xff] %v4285
      %4318 = vst [vmem:[#allocation3 + $0x20] sm:$0xff] %v4286
      %4319 = vst [vmem:[#allocation3 + $0x28] sm:$0xff] %v4287
      %4320 = vst [vmem:[#allocation3 + $0x30] sm:$0xff] %v4288
      %4321 = vst [vmem:[#allocation3 + $0x38] sm:$0xff] %v4289
      %4322 = vst [vmem:[#allocation3 + $0x40] sm:$0xff] %v4290
      %4323 = vst [vmem:[#allocation3 + $0x48] sm:$0xff] %v4291
      %4324 = vst [vmem:[#allocation3 + $0x50] sm:$0xff] %v4292
      %4325 = vst [vmem:[#allocation3 + $0x58] sm:$0xff] %v4293
      %4326 = vst [vmem:[#allocation3 + $0x60] sm:$0xff] %v4294
      %4327 = vst [vmem:[#allocation3 + $0x68] sm:$0xff] %v4295
      %4328 = vst [vmem:[#allocation3 + $0x70] sm:$0xff] %v4296
      %4329 = vst [vmem:[#allocation3 + $0x78] sm:$0xff] %v4297
      %4330 = vst [vmem:[#allocation3 + $0x80] sm:$0xff] %v4298
      %4331 = vst [vmem:[#allocation3 + $0x88] sm:$0xff] %v4299
      %4332 = vst [vmem:[#allocation3 + $0x90] sm:$0xff] %v4300
      %4333 = vst [vmem:[#allocation3 + $0x98] sm:$0xff] %v4301
      %4334 = vst [vmem:[#allocation3 + $0xa0] sm:$0xff] %v4302
      %4335 = vst [vmem:[#allocation3 + $0xa8] sm:$0xff] %v4303
      %4336 = vst [vmem:[#allocation3 + $0xb0] sm:$0xff] %v4304
      %4337 = vst [vmem:[#allocation3 + $0xb8] sm:$0xff] %v4305
      %4338 = vst [vmem:[#allocation3 + $0xc0] sm:$0xff] %v4306
      %4339 = vst [vmem:[#allocation3 + $0xc8] sm:$0xff] %v4307
      %4340 = vst [vmem:[#allocation3 + $0xd0] sm:$0xff] %v4308
      %4341 = vst [vmem:[#allocation3 + $0xd8] sm:$0xff] %v4309
      %4342 = vst [vmem:[#allocation3 + $0xe0] sm:$0xff] %v4310
      %4343 = vst [vmem:[#allocation3 + $0xe8] sm:$0xff] %v4311
      %4344 = vst [vmem:[#allocation3 + $0xf0] sm:$0xff] %v4312
      %4345 = vst [vmem:[#allocation3 + $0xf8] sm:$0xff] %v4313
      %v4346 = vld [vmem:[#allocation2 + $0x10] sm:$0xf8]
      %v4347 = vld [vmem:[#allocation2 + $0x18] sm:$0xff]
      %v4348 = vld [vmem:[#allocation2 + $0x20] sm:$0xff]
      %v4349 = vld [vmem:[#allocation2 + $0x28] sm:$0xff]
      %v4350 = vld [vmem:[#allocation2 + $0x30] sm:$0xff]
      %v4351 = vld [vmem:[#allocation2 + $0x38] sm:$0xff]
      %v4352 = vld [vmem:[#allocation2 + $0x40] sm:$0xff]
      %v4353 = vld [vmem:[#allocation2 + $0x48] sm:$0xff]
      %v4354 = vld [vmem:[#allocation2 + $0x50] sm:$0xff]
      %v4355 = vld [vmem:[#allocation2 + $0x58] sm:$0xff]
      %v4356 = vld [vmem:[#allocation2 + $0x60] sm:$0xff]
      %v4357 = vld [vmem:[#allocation2 + $0x68] sm:$0xff]
      %v4358 = vld [vmem:[#allocation2 + $0x70] sm:$0xff]
      %v4359 = vld [vmem:[#allocation2 + $0x78] sm:$0xff]
      %v4360 = vld [vmem:[#allocation2 + $0x80] sm:$0xff]
      %v4361 = vld [vmem:[#allocation2 + $0x88] sm:$0xff]
      %v4362 = vld [vmem:[#allocation2 + $0x90] sm:$0xf]
      %s4363 = scalar_lea.vmem %s2, 384
      %v4364 = vld [vmem:[%s4363] sm:$0xf]
      %v4365 = vld [vmem:[%s4363 + $0x4] sm:$0xf]
      %v4366 = vld [vmem:[%s4363 + $0x8] sm:$0xf]
      %v4367 = vld [vmem:[%s4363 + $0xc] sm:$0xf]
      %v4368 = vld [vmem:[%s4363 + $0x10] sm:$0xf]
      %v4369 = vld [vmem:[%s4363 + $0x14] sm:$0xf]
      %v4370 = vld [vmem:[%s4363 + $0x18] sm:$0xf]
      %v4371 = vld [vmem:[%s4363 + $0x1c] sm:$0xf]
      %v4372 = vld [vmem:[%s4363 + $0x20] sm:$0xf]
      %v4373 = vld [vmem:[%s4363 + $0x24] sm:$0xf]
      %v4374 = vld [vmem:[%s4363 + $0x28] sm:$0xf]
      %v4375 = vld [vmem:[%s4363 + $0x2c] sm:$0xf]
      %v4376 = vld [vmem:[%s4363 + $0x30] sm:$0xf]
      %v4377 = vld [vmem:[%s4363 + $0x34] sm:$0xf]
      %v4378 = vld [vmem:[%s4363 + $0x38] sm:$0xf]
      %v4379 = vld [vmem:[%s4363 + $0x3c] sm:$0xf]
      %v4381 = vshrl.u32 %v4346, 16
      %v4383 = vrot.slane %v4381, 3
      %v4384 = vshll.u32 %v4346, 16
      %v4386 = vrot.slane %v4384, 4
      %v4387 = vor.u32 %v4383, %v4386
      %v4389 = vshrl.u32 %v4347, 16
      %v4391 = vrot.slane %v4389, 3
      %v4392 = vshll.u32 %v4347, 16
      %v4394 = vrot.slane %v4392, 4
      %v4395 = vor.u32 %v4391, %v4394
      %v4396 = vsel %vm1476, %v4387, %v4395
      %v4398 = vshrl.u32 %v4348, 16
      %v4400 = vrot.slane %v4398, 3
      %v4401 = vshll.u32 %v4348, 16
      %v4403 = vrot.slane %v4401, 4
      %v4404 = vor.u32 %v4400, %v4403
      %v4405 = vsel %vm1476, %v4395, %v4404
      %v4407 = vshrl.u32 %v4349, 16
      %v4409 = vrot.slane %v4407, 3
      %v4410 = vshll.u32 %v4349, 16
      %v4412 = vrot.slane %v4410, 4
      %v4413 = vor.u32 %v4409, %v4412
      %v4414 = vsel %vm1476, %v4404, %v4413
      %v4416 = vshrl.u32 %v4350, 16
      %v4418 = vrot.slane %v4416, 3
      %v4419 = vshll.u32 %v4350, 16
      %v4421 = vrot.slane %v4419, 4
      %v4422 = vor.u32 %v4418, %v4421
      %v4423 = vsel %vm1476, %v4413, %v4422
      %v4425 = vshrl.u32 %v4351, 16
      %v4427 = vrot.slane %v4425, 3
      %v4428 = vshll.u32 %v4351, 16
      %v4430 = vrot.slane %v4428, 4
      %v4431 = vor.u32 %v4427, %v4430
      %v4432 = vsel %vm1476, %v4422, %v4431
      %v4434 = vshrl.u32 %v4352, 16
      %v4436 = vrot.slane %v4434, 3
      %v4437 = vshll.u32 %v4352, 16
      %v4439 = vrot.slane %v4437, 4
      %v4440 = vor.u32 %v4436, %v4439
      %v4441 = vsel %vm1476, %v4431, %v4440
      %v4443 = vshrl.u32 %v4353, 16
      %v4445 = vrot.slane %v4443, 3
      %v4446 = vshll.u32 %v4353, 16
      %v4448 = vrot.slane %v4446, 4
      %v4449 = vor.u32 %v4445, %v4448
      %v4450 = vsel %vm1476, %v4440, %v4449
      %v4452 = vshrl.u32 %v4354, 16
      %v4454 = vrot.slane %v4452, 3
      %v4455 = vshll.u32 %v4354, 16
      %v4457 = vrot.slane %v4455, 4
      %v4458 = vor.u32 %v4454, %v4457
      %v4459 = vsel %vm1476, %v4449, %v4458
      %v4461 = vshrl.u32 %v4355, 16
      %v4463 = vrot.slane %v4461, 3
      %v4464 = vshll.u32 %v4355, 16
      %v4466 = vrot.slane %v4464, 4
      %v4467 = vor.u32 %v4463, %v4466
      %v4468 = vsel %vm1476, %v4458, %v4467
      %v4470 = vshrl.u32 %v4356, 16
      %v4472 = vrot.slane %v4470, 3
      %v4473 = vshll.u32 %v4356, 16
      %v4475 = vrot.slane %v4473, 4
      %v4476 = vor.u32 %v4472, %v4475
      %v4477 = vsel %vm1476, %v4467, %v4476
      %v4479 = vshrl.u32 %v4357, 16
      %v4481 = vrot.slane %v4479, 3
      %v4482 = vshll.u32 %v4357, 16
      %v4484 = vrot.slane %v4482, 4
      %v4485 = vor.u32 %v4481, %v4484
      %v4486 = vsel %vm1476, %v4476, %v4485
      %v4488 = vshrl.u32 %v4358, 16
      %v4490 = vrot.slane %v4488, 3
      %v4491 = vshll.u32 %v4358, 16
      %v4493 = vrot.slane %v4491, 4
      %v4494 = vor.u32 %v4490, %v4493
      %v4495 = vsel %vm1476, %v4485, %v4494
      %v4497 = vshrl.u32 %v4359, 16
      %v4499 = vrot.slane %v4497, 3
      %v4500 = vshll.u32 %v4359, 16
      %v4502 = vrot.slane %v4500, 4
      %v4503 = vor.u32 %v4499, %v4502
      %v4504 = vsel %vm1476, %v4494, %v4503
      %v4506 = vshrl.u32 %v4360, 16
      %v4508 = vrot.slane %v4506, 3
      %v4509 = vshll.u32 %v4360, 16
      %v4511 = vrot.slane %v4509, 4
      %v4512 = vor.u32 %v4508, %v4511
      %v4513 = vsel %vm1476, %v4503, %v4512
      %v4515 = vshrl.u32 %v4361, 16
      %v4517 = vrot.slane %v4515, 3
      %v4518 = vshll.u32 %v4361, 16
      %v4520 = vrot.slane %v4518, 4
      %v4521 = vor.u32 %v4517, %v4520
      %v4522 = vsel %vm1476, %v4512, %v4521
      %v4524 = vshrl.u32 %v4362, 16
      %v4526 = vrot.slane %v4524, 3
      %v4527 = vshll.u32 %v4362, 16
      %v4529 = vrot.slane %v4527, 4
      %v4530 = vor.u32 %v4526, %v4529
      %v4531 = vsel %vm1476, %v4521, %v4530
      %v4564 = vunpack.c.l.b16 %v4364
      %v4565 = vunpack.c.l.b16 %v4365
      %v4566 = vunpack.c.l.b16 %v4366
      %v4567 = vunpack.c.l.b16 %v4367
      %v4568 = vunpack.c.l.b16 %v4368
      %v4569 = vunpack.c.l.b16 %v4369
      %v4570 = vunpack.c.l.b16 %v4370
      %v4571 = vunpack.c.l.b16 %v4371
      %v4572 = vunpack.c.l.b16 %v4372
      %v4573 = vunpack.c.l.b16 %v4373
      %v4574 = vunpack.c.l.b16 %v4374
      %v4575 = vunpack.c.l.b16 %v4375
      %v4576 = vunpack.c.l.b16 %v4376
      %v4577 = vunpack.c.l.b16 %v4377
      %v4578 = vunpack.c.l.b16 %v4378
      %v4579 = vunpack.c.l.b16 %v4379
      %v4580 = vpack.c.b16 %v4565, %v4564
      %v4581 = vpack.c.b16 %v4567, %v4566
      %v4582 = vpack.c.b16 %v4569, %v4568
      %v4583 = vpack.c.b16 %v4571, %v4570
      %v4584 = vpack.c.b16 %v4573, %v4572
      %v4585 = vpack.c.b16 %v4575, %v4574
      %v4586 = vpack.c.b16 %v4577, %v4576
      %v4587 = vpack.c.b16 %v4579, %v4578
      %4596 = vmatprep.subr.bf16.mxu0 0
      %4597 = vmatpush1.bf16.msra.mxu0 %v4580
      %4598 = vmatprep.subr.bf16.mxu0 0
      %4599 = vmatpush1.bf16.msra.mxu0 %v4581
      %4600 = vmatprep.subr.bf16.mxu0 0
      %4601 = vmatpush1.bf16.msra.mxu0 %v4582
      %4602 = vmatprep.subr.bf16.mxu0 0
      %4603 = vmatpush1.bf16.msra.mxu0 %v4583
      %4604 = vmatprep.subr.bf16.mxu0 0
      %4605 = vmatpush1.bf16.msra.mxu0 %v4584
      %4606 = vmatprep.subr.bf16.mxu0 0
      %4607 = vmatpush1.bf16.msra.mxu0 %v4585
      %4608 = vmatprep.subr.bf16.mxu0 0
      %4609 = vmatpush1.bf16.msra.mxu0 %v4586
      %4610 = vmatprep.subr.bf16.mxu0 0
      %4611 = vmatpush1.bf16.msra.mxu0 %v4587
      %4612 = vmatprep.subr.bf16.mxu0 0
      %4613 = vmatpush1.bf16.msra.mxu0 0
      %4614 = vmatprep.subr.bf16.mxu0 0
      %4615 = vmatpush1.bf16.msra.mxu0 0
      %4616 = vmatprep.subr.bf16.mxu0 0
      %4617 = vmatpush1.bf16.msra.mxu0 0
      %4618 = vmatprep.subr.bf16.mxu0 0
      %4619 = vmatpush1.bf16.msra.mxu0 0
      %4620 = vmatprep.subr.bf16.mxu0 0
      %4621 = vmatpush1.bf16.msra.mxu0 0
      %4622 = vmatprep.subr.bf16.mxu0 0
      %4623 = vmatpush1.bf16.msra.mxu0 0
      %4624 = vmatprep.subr.bf16.mxu0 0
      %4625 = vmatpush1.bf16.msra.mxu0 0
      %4626 = vmatprep.subr.bf16.mxu0 0
      %4627 = vmatpush1.bf16.msra.mxu0 0
      %4628 = vmatprep.mubr.bf16.mxu0 0
      %4629 = vmatmul.mubr.bf16.gmra.mrb[0].mxu0 %v4396
      %v4630 = vpop.f32.mrb[0].mxu0
      %v4631 = vadd.f32 0.0, %v4630
      %v4632 = vpop.f32.mrb[0].mxu0
      %v4633 = vpop.f32.mrb[0].mxu0
      %v4634 = vadd.f32 0.0, %v4633
      %v4635 = vpop.f32.mrb[0].mxu0
      %4636 = vmatprep.mubr.bf16.mxu0 0
      %4637 = vmatmul.mubr.bf16.gmra.mrb[0].mxu0 %v4405
      %v4638 = vpop.f32.mrb[0].mxu0
      %v4639 = vadd.f32 0.0, %v4638
      %v4640 = vpop.f32.mrb[0].mxu0
      %v4641 = vpop.f32.mrb[0].mxu0
      %v4642 = vadd.f32 0.0, %v4641
      %v4643 = vpop.f32.mrb[0].mxu0
      %4644 = vmatprep.mubr.bf16.mxu0 0
      %4645 = vmatmul.mubr.bf16.gmra.mrb[0].mxu0 %v4414
      %v4646 = vpop.f32.mrb[0].mxu0
      %v4647 = vadd.f32 0.0, %v4646
      %v4648 = vpop.f32.mrb[0].mxu0
      %v4649 = vpop.f32.mrb[0].mxu0
      %v4650 = vadd.f32 0.0, %v4649
      %v4651 = vpop.f32.mrb[0].mxu0
      %4652 = vmatprep.mubr.bf16.mxu0 0
      %4653 = vmatmul.mubr.bf16.gmra.mrb[0].mxu0 %v4423
      %v4654 = vpop.f32.mrb[0].mxu0
      %v4655 = vadd.f32 0.0, %v4654
      %v4656 = vpop.f32.mrb[0].mxu0
      %v4657 = vpop.f32.mrb[0].mxu0
      %v4658 = vadd.f32 0.0, %v4657
      %v4659 = vpop.f32.mrb[0].mxu0
      %4660 = vmatprep.mubr.bf16.mxu0 0
      %4661 = vmatmul.mubr.bf16.gmra.mrb[0].mxu0 %v4432
      %v4662 = vpop.f32.mrb[0].mxu0
      %v4663 = vadd.f32 0.0, %v4662
      %v4664 = vpop.f32.mrb[0].mxu0
      %v4665 = vpop.f32.mrb[0].mxu0
      %v4666 = vadd.f32 0.0, %v4665
      %v4667 = vpop.f32.mrb[0].mxu0
      %4668 = vmatprep.mubr.bf16.mxu0 0
      %4669 = vmatmul.mubr.bf16.gmra.mrb[0].mxu0 %v4441
      %v4670 = vpop.f32.mrb[0].mxu0
      %v4671 = vadd.f32 0.0, %v4670
      %v4672 = vpop.f32.mrb[0].mxu0
      %v4673 = vpop.f32.mrb[0].mxu0
      %v4674 = vadd.f32 0.0, %v4673
      %v4675 = vpop.f32.mrb[0].mxu0
      %4676 = vmatprep.mubr.bf16.mxu0 0
      %4677 = vmatmul.mubr.bf16.gmra.mrb[0].mxu0 %v4450
      %v4678 = vpop.f32.mrb[0].mxu0
      %v4679 = vadd.f32 0.0, %v4678
      %v4680 = vpop.f32.mrb[0].mxu0
      %v4681 = vpop.f32.mrb[0].mxu0
      %v4682 = vadd.f32 0.0, %v4681
      %v4683 = vpop.f32.mrb[0].mxu0
      %4684 = vmatprep.mubr.bf16.mxu0 0
      %4685 = vmatmul.mubr.bf16.gmra.mrb[0].mxu0 %v4459
      %v4686 = vpop.f32.mrb[0].mxu0
      %v4687 = vadd.f32 0.0, %v4686
      %v4688 = vpop.f32.mrb[0].mxu0
      %v4689 = vpop.f32.mrb[0].mxu0
      %v4690 = vadd.f32 0.0, %v4689
      %v4691 = vpop.f32.mrb[0].mxu0
      %4692 = vmatprep.mubr.bf16.mxu0 0
      %4693 = vmatmul.mubr.bf16.gmra.mrb[0].mxu0 %v4468
      %v4694 = vpop.f32.mrb[0].mxu0
      %v4695 = vadd.f32 0.0, %v4694
      %v4696 = vpop.f32.mrb[0].mxu0
      %v4697 = vpop.f32.mrb[0].mxu0
      %v4698 = vadd.f32 0.0, %v4697
      %v4699 = vpop.f32.mrb[0].mxu0
      %4700 = vmatprep.mubr.bf16.mxu0 0
      %4701 = vmatmul.mubr.bf16.gmra.mrb[0].mxu0 %v4477
      %v4702 = vpop.f32.mrb[0].mxu0
      %v4703 = vadd.f32 0.0, %v4702
      %v4704 = vpop.f32.mrb[0].mxu0
      %v4705 = vpop.f32.mrb[0].mxu0
      %v4706 = vadd.f32 0.0, %v4705
      %v4707 = vpop.f32.mrb[0].mxu0
      %4708 = vmatprep.mubr.bf16.mxu0 0
      %4709 = vmatmul.mubr.bf16.gmra.mrb[0].mxu0 %v4486
      %v4710 = vpop.f32.mrb[0].mxu0
      %v4711 = vadd.f32 0.0, %v4710
      %v4712 = vpop.f32.mrb[0].mxu0
      %v4713 = vpop.f32.mrb[0].mxu0
      %v4714 = vadd.f32 0.0, %v4713
      %v4715 = vpop.f32.mrb[0].mxu0
      %4716 = vmatprep.mubr.bf16.mxu0 0
      %4717 = vmatmul.mubr.bf16.gmra.mrb[0].mxu0 %v4495
      %v4718 = vpop.f32.mrb[0].mxu0
      %v4719 = vadd.f32 0.0, %v4718
      %v4720 = vpop.f32.mrb[0].mxu0
      %v4721 = vpop.f32.mrb[0].mxu0
      %v4722 = vadd.f32 0.0, %v4721
      %v4723 = vpop.f32.mrb[0].mxu0
      %4724 = vmatprep.mubr.bf16.mxu0 0
      %4725 = vmatmul.mubr.bf16.gmra.mrb[0].mxu0 %v4504
      %v4726 = vpop.f32.mrb[0].mxu0
      %v4727 = vadd.f32 0.0, %v4726
      %v4728 = vpop.f32.mrb[0].mxu0
      %v4729 = vpop.f32.mrb[0].mxu0
      %v4730 = vadd.f32 0.0, %v4729
      %v4731 = vpop.f32.mrb[0].mxu0
      %4732 = vmatprep.mubr.bf16.mxu0 0
      %4733 = vmatmul.mubr.bf16.gmra.mrb[0].mxu0 %v4513
      %v4734 = vpop.f32.mrb[0].mxu0
      %v4735 = vadd.f32 0.0, %v4734
      %v4736 = vpop.f32.mrb[0].mxu0
      %v4737 = vpop.f32.mrb[0].mxu0
      %v4738 = vadd.f32 0.0, %v4737
      %v4739 = vpop.f32.mrb[0].mxu0
      %4740 = vmatprep.mubr.bf16.mxu0 0
      %4741 = vmatmul.mubr.bf16.gmra.mrb[0].mxu0 %v4522
      %v4742 = vpop.f32.mrb[0].mxu0
      %v4743 = vadd.f32 0.0, %v4742
      %v4744 = vpop.f32.mrb[0].mxu0
      %v4745 = vpop.f32.mrb[0].mxu0
      %v4746 = vadd.f32 0.0, %v4745
      %v4747 = vpop.f32.mrb[0].mxu0
      %4748 = vmatprep.mubr.bf16.mxu0 0
      %4749 = vmatmul.mubr.bf16.gmra.mrb[0].mxu0 %v4531
      %v4750 = vpop.f32.mrb[0].mxu0
      %v4751 = vadd.f32 0.0, %v4750
      %v4752 = vpop.f32.mrb[0].mxu0
      %v4753 = vpop.f32.mrb[0].mxu0
      %v4754 = vadd.f32 0.0, %v4753
      %v4755 = vpop.f32.mrb[0].mxu0
      %4756 = vdwg.mxu0
      %v4757 = vmul.f32 %v4631, %v1315
      %v4758 = vmul.f32 %v4634, %v1316
      %v4759 = vmul.f32 %v4639, %v1317
      %v4760 = vmul.f32 %v4642, %v1318
      %v4761 = vmul.f32 %v4647, %v1319
      %v4762 = vmul.f32 %v4650, %v1320
      %v4763 = vmul.f32 %v4655, %v1321
      %v4764 = vmul.f32 %v4658, %v1322
      %v4765 = vmul.f32 %v4663, %v1323
      %v4766 = vmul.f32 %v4666, %v1324
      %v4767 = vmul.f32 %v4671, %v1325
      %v4768 = vmul.f32 %v4674, %v1326
      %v4769 = vmul.f32 %v4679, %v1327
      %v4770 = vmul.f32 %v4682, %v1328
      %v4771 = vmul.f32 %v4687, %v1329
      %v4772 = vmul.f32 %v4690, %v1330
      %v4773 = vmul.f32 %v4695, %v1331
      %v4774 = vmul.f32 %v4698, %v1332
      %v4775 = vmul.f32 %v4703, %v1333
      %v4776 = vmul.f32 %v4706, %v1334
      %v4777 = vmul.f32 %v4711, %v1335
      %v4778 = vmul.f32 %v4714, %v1336
      %v4779 = vmul.f32 %v4719, %v1337
      %v4780 = vmul.f32 %v4722, %v1338
      %v4781 = vmul.f32 %v4727, %v1339
      %v4782 = vmul.f32 %v4730, %v1340
      %v4783 = vmul.f32 %v4735, %v1341
      %v4784 = vmul.f32 %v4738, %v1342
      %v4785 = vmul.f32 %v4743, %v1343
      %v4786 = vmul.f32 %v4746, %v1344
      %v4787 = vmul.f32 %v4751, %v1345
      %v4788 = vmul.f32 %v4754, %v1346
      %v4789 = vld [vmem:[#allocation3] sm:$0xff]
      %v4790 = vld [vmem:[#allocation3 + $0x8] sm:$0xff]
      %v4791 = vld [vmem:[#allocation3 + $0x10] sm:$0xff]
      %v4792 = vld [vmem:[#allocation3 + $0x18] sm:$0xff]
      %v4793 = vld [vmem:[#allocation3 + $0x20] sm:$0xff]
      %v4794 = vld [vmem:[#allocation3 + $0x28] sm:$0xff]
      %v4795 = vld [vmem:[#allocation3 + $0x30] sm:$0xff]
      %v4796 = vld [vmem:[#allocation3 + $0x38] sm:$0xff]
      %v4797 = vld [vmem:[#allocation3 + $0x40] sm:$0xff]
      %v4798 = vld [vmem:[#allocation3 + $0x48] sm:$0xff]
      %v4799 = vld [vmem:[#allocation3 + $0x50] sm:$0xff]
      %v4800 = vld [vmem:[#allocation3 + $0x58] sm:$0xff]
      %v4801 = vld [vmem:[#allocation3 + $0x60] sm:$0xff]
      %v4802 = vld [vmem:[#allocation3 + $0x68] sm:$0xff]
      %v4803 = vld [vmem:[#allocation3 + $0x70] sm:$0xff]
      %v4804 = vld [vmem:[#allocation3 + $0x78] sm:$0xff]
      %v4805 = vld [vmem:[#allocation3 + $0x80] sm:$0xff]
      %v4806 = vld [vmem:[#allocation3 + $0x88] sm:$0xff]
      %v4807 = vld [vmem:[#allocation3 + $0x90] sm:$0xff]
      %v4808 = vld [vmem:[#allocation3 + $0x98] sm:$0xff]
      %v4809 = vld [vmem:[#allocation3 + $0xa0] sm:$0xff]
      %v4810 = vld [vmem:[#allocation3 + $0xa8] sm:$0xff]
      %v4811 = vld [vmem:[#allocation3 + $0xb0] sm:$0xff]
      %v4812 = vld [vmem:[#allocation3 + $0xb8] sm:$0xff]
      %v4813 = vld [vmem:[#allocation3 + $0xc0] sm:$0xff]
      %v4814 = vld [vmem:[#allocation3 + $0xc8] sm:$0xff]
      %v4815 = vld [vmem:[#allocation3 + $0xd0] sm:$0xff]
      %v4816 = vld [vmem:[#allocation3 + $0xd8] sm:$0xff]
      %v4817 = vld [vmem:[#allocation3 + $0xe0] sm:$0xff]
      %v4818 = vld [vmem:[#allocation3 + $0xe8] sm:$0xff]
      %v4819 = vld [vmem:[#allocation3 + $0xf0] sm:$0xff]
      %v4820 = vld [vmem:[#allocation3 + $0xf8] sm:$0xff]
      %v4821 = vadd.f32 %v4789, %v4757
      %v4822 = vadd.f32 %v4790, %v4758
      %v4823 = vadd.f32 %v4791, %v4759
      %v4824 = vadd.f32 %v4792, %v4760
      %v4825 = vadd.f32 %v4793, %v4761
      %v4826 = vadd.f32 %v4794, %v4762
      %v4827 = vadd.f32 %v4795, %v4763
      %v4828 = vadd.f32 %v4796, %v4764
      %v4829 = vadd.f32 %v4797, %v4765
      %v4830 = vadd.f32 %v4798, %v4766
      %v4831 = vadd.f32 %v4799, %v4767
      %v4832 = vadd.f32 %v4800, %v4768
      %v4833 = vadd.f32 %v4801, %v4769
      %v4834 = vadd.f32 %v4802, %v4770
      %v4835 = vadd.f32 %v4803, %v4771
      %v4836 = vadd.f32 %v4804, %v4772
      %v4837 = vadd.f32 %v4805, %v4773
      %v4838 = vadd.f32 %v4806, %v4774
      %v4839 = vadd.f32 %v4807, %v4775
      %v4840 = vadd.f32 %v4808, %v4776
      %v4841 = vadd.f32 %v4809, %v4777
      %v4842 = vadd.f32 %v4810, %v4778
      %v4843 = vadd.f32 %v4811, %v4779
      %v4844 = vadd.f32 %v4812, %v4780
      %v4845 = vadd.f32 %v4813, %v4781
      %v4846 = vadd.f32 %v4814, %v4782
      %v4847 = vadd.f32 %v4815, %v4783
      %v4848 = vadd.f32 %v4816, %v4784
      %v4849 = vadd.f32 %v4817, %v4785
      %v4850 = vadd.f32 %v4818, %v4786
      %v4851 = vadd.f32 %v4819, %v4787
      %v4852 = vadd.f32 %v4820, %v4788
      %4853 = vst [vmem:[#allocation3] sm:$0xff] %v4821
      %4854 = vst [vmem:[#allocation3 + $0x8] sm:$0xff] %v4822
      %4855 = vst [vmem:[#allocation3 + $0x10] sm:$0xff] %v4823
      %4856 = vst [vmem:[#allocation3 + $0x18] sm:$0xff] %v4824
      %4857 = vst [vmem:[#allocation3 + $0x20] sm:$0xff] %v4825
      %4858 = vst [vmem:[#allocation3 + $0x28] sm:$0xff] %v4826
      %4859 = vst [vmem:[#allocation3 + $0x30] sm:$0xff] %v4827
      %4860 = vst [vmem:[#allocation3 + $0x38] sm:$0xff] %v4828
      %4861 = vst [vmem:[#allocation3 + $0x40] sm:$0xff] %v4829
      %4862 = vst [vmem:[#allocation3 + $0x48] sm:$0xff] %v4830
      %4863 = vst [vmem:[#allocation3 + $0x50] sm:$0xff] %v4831
      %4864 = vst [vmem:[#allocation3 + $0x58] sm:$0xff] %v4832
      %4865 = vst [vmem:[#allocation3 + $0x60] sm:$0xff] %v4833
      %4866 = vst [vmem:[#allocation3 + $0x68] sm:$0xff] %v4834
      %4867 = vst [vmem:[#allocation3 + $0x70] sm:$0xff] %v4835
      %4868 = vst [vmem:[#allocation3 + $0x78] sm:$0xff] %v4836
      %4869 = vst [vmem:[#allocation3 + $0x80] sm:$0xff] %v4837
      %4870 = vst [vmem:[#allocation3 + $0x88] sm:$0xff] %v4838
      %4871 = vst [vmem:[#allocation3 + $0x90] sm:$0xff] %v4839
      %4872 = vst [vmem:[#allocation3 + $0x98] sm:$0xff] %v4840
      %4873 = vst [vmem:[#allocation3 + $0xa0] sm:$0xff] %v4841
      %4874 = vst [vmem:[#allocation3 + $0xa8] sm:$0xff] %v4842
      %4875 = vst [vmem:[#allocation3 + $0xb0] sm:$0xff] %v4843
      %4876 = vst [vmem:[#allocation3 + $0xb8] sm:$0xff] %v4844
      %4877 = vst [vmem:[#allocation3 + $0xc0] sm:$0xff] %v4845
      %4878 = vst [vmem:[#allocation3 + $0xc8] sm:$0xff] %v4846
      %4879 = vst [vmem:[#allocation3 + $0xd0] sm:$0xff] %v4847
      %4880 = vst [vmem:[#allocation3 + $0xd8] sm:$0xff] %v4848
      %4881 = vst [vmem:[#allocation3 + $0xe0] sm:$0xff] %v4849
      %4882 = vst [vmem:[#allocation3 + $0xe8] sm:$0xff] %v4850
      %4883 = vst [vmem:[#allocation3 + $0xf0] sm:$0xff] %v4851
      %4884 = vst [vmem:[#allocation3 + $0xf8] sm:$0xff] %v4852
      %v4885 = vld [vmem:[#allocation2 + $0x10] sm:$0xf0]
      %v4886 = vld [vmem:[#allocation2 + $0x18] sm:$0xff]
      %v4887 = vld [vmem:[#allocation2 + $0x20] sm:$0xff]
      %v4888 = vld [vmem:[#allocation2 + $0x28] sm:$0xff]
      %v4889 = vld [vmem:[#allocation2 + $0x30] sm:$0xff]
      %v4890 = vld [vmem:[#allocation2 + $0x38] sm:$0xff]
      %v4891 = vld [vmem:[#allocation2 + $0x40] sm:$0xff]
      %v4892 = vld [vmem:[#allocation2 + $0x48] sm:$0xff]
      %v4893 = vld [vmem:[#allocation2 + $0x50] sm:$0xff]
      %v4894 = vld [vmem:[#allocation2 + $0x58] sm:$0xff]
      %v4895 = vld [vmem:[#allocation2 + $0x60] sm:$0xff]
      %v4896 = vld [vmem:[#allocation2 + $0x68] sm:$0xff]
      %v4897 = vld [vmem:[#allocation2 + $0x70] sm:$0xff]
      %v4898 = vld [vmem:[#allocation2 + $0x78] sm:$0xff]
      %v4899 = vld [vmem:[#allocation2 + $0x80] sm:$0xff]
      %v4900 = vld [vmem:[#allocation2 + $0x88] sm:$0xff]
      %v4901 = vld [vmem:[#allocation2 + $0x90] sm:$0xf]
      %s4902 = scalar_lea.vmem %s2, 448
      %v4903 = vld [vmem:[%s4902] sm:$0xf]
      %v4904 = vld [vmem:[%s4902 + $0x4] sm:$0xf]
      %v4905 = vld [vmem:[%s4902 + $0x8] sm:$0xf]
      %v4906 = vld [vmem:[%s4902 + $0xc] sm:$0xf]
      %v4907 = vld [vmem:[%s4902 + $0x10] sm:$0xf]
      %v4908 = vld [vmem:[%s4902 + $0x14] sm:$0xf]
      %v4909 = vld [vmem:[%s4902 + $0x18] sm:$0xf]
      %v4910 = vld [vmem:[%s4902 + $0x1c] sm:$0xf]
      %v4911 = vld [vmem:[%s4902 + $0x20] sm:$0xf]
      %v4912 = vld [vmem:[%s4902 + $0x24] sm:$0xf]
      %v4913 = vld [vmem:[%s4902 + $0x28] sm:$0xf]
      %v4914 = vld [vmem:[%s4902 + $0x2c] sm:$0xf]
      %v4915 = vld [vmem:[%s4902 + $0x30] sm:$0xf]
      %v4916 = vld [vmem:[%s4902 + $0x34] sm:$0xf]
      %v4917 = vld [vmem:[%s4902 + $0x38] sm:$0xf]
      %v4918 = vld [vmem:[%s4902 + $0x3c] sm:$0xf]
      %v4936 = vrot.slane %v4885, 4
      %v4937 = vrot.slane %v4886, 4
      %v4938 = vsel %vm768, %v4936, %v4937
      %v4939 = vrot.slane %v4887, 4
      %v4940 = vsel %vm768, %v4937, %v4939
      %v4941 = vrot.slane %v4888, 4
      %v4942 = vsel %vm768, %v4939, %v4941
      %v4943 = vrot.slane %v4889, 4
      %v4944 = vsel %vm768, %v4941, %v4943
      %v4945 = vrot.slane %v4890, 4
      %v4946 = vsel %vm768, %v4943, %v4945
      %v4947 = vrot.slane %v4891, 4
      %v4948 = vsel %vm768, %v4945, %v4947
      %v4949 = vrot.slane %v4892, 4
      %v4950 = vsel %vm768, %v4947, %v4949
      %v4951 = vrot.slane %v4893, 4
      %v4952 = vsel %vm768, %v4949, %v4951
      %v4953 = vrot.slane %v4894, 4
      %v4954 = vsel %vm768, %v4951, %v4953
      %v4955 = vrot.slane %v4895, 4
      %v4956 = vsel %vm768, %v4953, %v4955
      %v4957 = vrot.slane %v4896, 4
      %v4958 = vsel %vm768, %v4955, %v4957
      %v4959 = vrot.slane %v4897, 4
      %v4960 = vsel %vm768, %v4957, %v4959
      %v4961 = vrot.slane %v4898, 4
      %v4962 = vsel %vm768, %v4959, %v4961
      %v4963 = vrot.slane %v4899, 4
      %v4964 = vsel %vm768, %v4961, %v4963
      %v4965 = vrot.slane %v4900, 4
      %v4966 = vsel %vm768, %v4963, %v4965
      %v4967 = vrot.slane %v4901, 4
      %v4968 = vsel %vm768, %v4965, %v4967
      %v5001 = vunpack.c.l.b16 %v4903
      %v5002 = vunpack.c.l.b16 %v4904
      %v5003 = vunpack.c.l.b16 %v4905
      %v5004 = vunpack.c.l.b16 %v4906
      %v5005 = vunpack.c.l.b16 %v4907
      %v5006 = vunpack.c.l.b16 %v4908
      %v5007 = vunpack.c.l.b16 %v4909
      %v5008 = vunpack.c.l.b16 %v4910
      %v5009 = vunpack.c.l.b16 %v4911
      %v5010 = vunpack.c.l.b16 %v4912
      %v5011 = vunpack.c.l.b16 %v4913
      %v5012 = vunpack.c.l.b16 %v4914
      %v5013 = vunpack.c.l.b16 %v4915
      %v5014 = vunpack.c.l.b16 %v4916
      %v5015 = vunpack.c.l.b16 %v4917
      %v5016 = vunpack.c.l.b16 %v4918
      %v5017 = vpack.c.b16 %v5002, %v5001
      %v5018 = vpack.c.b16 %v5004, %v5003
      %v5019 = vpack.c.b16 %v5006, %v5005
      %v5020 = vpack.c.b16 %v5008, %v5007
      %v5021 = vpack.c.b16 %v5010, %v5009
      %v5022 = vpack.c.b16 %v5012, %v5011
      %v5023 = vpack.c.b16 %v5014, %v5013
      %v5024 = vpack.c.b16 %v5016, %v5015
      %5033 = vmatprep.subr.bf16.mxu0 0
      %5034 = vmatpush1.bf16.msra.mxu0 %v5017
      %5035 = vmatprep.subr.bf16.mxu0 0
      %5036 = vmatpush1.bf16.msra.mxu0 %v5018
      %5037 = vmatprep.subr.bf16.mxu0 0
      %5038 = vmatpush1.bf16.msra.mxu0 %v5019
      %5039 = vmatprep.subr.bf16.mxu0 0
      %5040 = vmatpush1.bf16.msra.mxu0 %v5020
      %5041 = vmatprep.subr.bf16.mxu0 0
      %5042 = vmatpush1.bf16.msra.mxu0 %v5021
      %5043 = vmatprep.subr.bf16.mxu0 0
      %5044 = vmatpush1.bf16.msra.mxu0 %v5022
      %5045 = vmatprep.subr.bf16.mxu0 0
      %5046 = vmatpush1.bf16.msra.mxu0 %v5023
      %5047 = vmatprep.subr.bf16.mxu0 0
      %5048 = vmatpush1.bf16.msra.mxu0 %v5024
      %5049 = vmatprep.subr.bf16.mxu0 0
      %5050 = vmatpush1.bf16.msra.mxu0 0
      %5051 = vmatprep.subr.bf16.mxu0 0
      %5052 = vmatpush1.bf16.msra.mxu0 0
      %5053 = vmatprep.subr.bf16.mxu0 0
      %5054 = vmatpush1.bf16.msra.mxu0 0
      %5055 = vmatprep.subr.bf16.mxu0 0
      %5056 = vmatpush1.bf16.msra.mxu0 0
      %5057 = vmatprep.subr.bf16.mxu0 0
      %5058 = vmatpush1.bf16.msra.mxu0 0
      %5059 = vmatprep.subr.bf16.mxu0 0
      %5060 = vmatpush1.bf16.msra.mxu0 0
      %5061 = vmatprep.subr.bf16.mxu0 0
      %5062 = vmatpush1.bf16.msra.mxu0 0
      %5063 = vmatprep.subr.bf16.mxu0 0
      %5064 = vmatpush1.bf16.msra.mxu0 0
      %5065 = vmatprep.mubr.bf16.mxu0 0
      %5066 = vmatmul.mubr.bf16.gmra.mrb[0].mxu0 %v4938
      %v5067 = vpop.f32.mrb[0].mxu0
      %v5068 = vadd.f32 0.0, %v5067
      %v5069 = vpop.f32.mrb[0].mxu0
      %v5070 = vpop.f32.mrb[0].mxu0
      %v5071 = vadd.f32 0.0, %v5070
      %v5072 = vpop.f32.mrb[0].mxu0
      %5073 = vmatprep.mubr.bf16.mxu0 0
      %5074 = vmatmul.mubr.bf16.gmra.mrb[0].mxu0 %v4940
      %v5075 = vpop.f32.mrb[0].mxu0
      %v5076 = vadd.f32 0.0, %v5075
      %v5077 = vpop.f32.mrb[0].mxu0
      %v5078 = vpop.f32.mrb[0].mxu0
      %v5079 = vadd.f32 0.0, %v5078
      %v5080 = vpop.f32.mrb[0].mxu0
      %5081 = vmatprep.mubr.bf16.mxu0 0
      %5082 = vmatmul.mubr.bf16.gmra.mrb[0].mxu0 %v4942
      %v5083 = vpop.f32.mrb[0].mxu0
      %v5084 = vadd.f32 0.0, %v5083
      %v5085 = vpop.f32.mrb[0].mxu0
      %v5086 = vpop.f32.mrb[0].mxu0
      %v5087 = vadd.f32 0.0, %v5086
      %v5088 = vpop.f32.mrb[0].mxu0
      %5089 = vmatprep.mubr.bf16.mxu0 0
      %5090 = vmatmul.mubr.bf16.gmra.mrb[0].mxu0 %v4944
      %v5091 = vpop.f32.mrb[0].mxu0
      %v5092 = vadd.f32 0.0, %v5091
      %v5093 = vpop.f32.mrb[0].mxu0
      %v5094 = vpop.f32.mrb[0].mxu0
      %v5095 = vadd.f32 0.0, %v5094
      %v5096 = vpop.f32.mrb[0].mxu0
      %5097 = vmatprep.mubr.bf16.mxu0 0
      %5098 = vmatmul.mubr.bf16.gmra.mrb[0].mxu0 %v4946
      %v5099 = vpop.f32.mrb[0].mxu0
      %v5100 = vadd.f32 0.0, %v5099
      %v5101 = vpop.f32.mrb[0].mxu0
      %v5102 = vpop.f32.mrb[0].mxu0
      %v5103 = vadd.f32 0.0, %v5102
      %v5104 = vpop.f32.mrb[0].mxu0
      %5105 = vmatprep.mubr.bf16.mxu0 0
      %5106 = vmatmul.mubr.bf16.gmra.mrb[0].mxu0 %v4948
      %v5107 = vpop.f32.mrb[0].mxu0
      %v5108 = vadd.f32 0.0, %v5107
      %v5109 = vpop.f32.mrb[0].mxu0
      %v5110 = vpop.f32.mrb[0].mxu0
      %v5111 = vadd.f32 0.0, %v5110
      %v5112 = vpop.f32.mrb[0].mxu0
      %5113 = vmatprep.mubr.bf16.mxu0 0
      %5114 = vmatmul.mubr.bf16.gmra.mrb[0].mxu0 %v4950
      %v5115 = vpop.f32.mrb[0].mxu0
      %v5116 = vadd.f32 0.0, %v5115
      %v5117 = vpop.f32.mrb[0].mxu0
      %v5118 = vpop.f32.mrb[0].mxu0
      %v5119 = vadd.f32 0.0, %v5118
      %v5120 = vpop.f32.mrb[0].mxu0
      %5121 = vmatprep.mubr.bf16.mxu0 0
      %5122 = vmatmul.mubr.bf16.gmra.mrb[0].mxu0 %v4952
      %v5123 = vpop.f32.mrb[0].mxu0
      %v5124 = vadd.f32 0.0, %v5123
      %v5125 = vpop.f32.mrb[0].mxu0
      %v5126 = vpop.f32.mrb[0].mxu0
      %v5127 = vadd.f32 0.0, %v5126
      %v5128 = vpop.f32.mrb[0].mxu0
      %5129 = vmatprep.mubr.bf16.mxu0 0
      %5130 = vmatmul.mubr.bf16.gmra.mrb[0].mxu0 %v4954
      %v5131 = vpop.f32.mrb[0].mxu0
      %v5132 = vadd.f32 0.0, %v5131
      %v5133 = vpop.f32.mrb[0].mxu0
      %v5134 = vpop.f32.mrb[0].mxu0
      %v5135 = vadd.f32 0.0, %v5134
      %v5136 = vpop.f32.mrb[0].mxu0
      %5137 = vmatprep.mubr.bf16.mxu0 0
      %5138 = vmatmul.mubr.bf16.gmra.mrb[0].mxu0 %v4956
      %v5139 = vpop.f32.mrb[0].mxu0
      %v5140 = vadd.f32 0.0, %v5139
      %v5141 = vpop.f32.mrb[0].mxu0
      %v5142 = vpop.f32.mrb[0].mxu0
      %v5143 = vadd.f32 0.0, %v5142
      %v5144 = vpop.f32.mrb[0].mxu0
      %5145 = vmatprep.mubr.bf16.mxu0 0
      %5146 = vmatmul.mubr.bf16.gmra.mrb[0].mxu0 %v4958
      %v5147 = vpop.f32.mrb[0].mxu0
      %v5148 = vadd.f32 0.0, %v5147
      %v5149 = vpop.f32.mrb[0].mxu0
      %v5150 = vpop.f32.mrb[0].mxu0
      %v5151 = vadd.f32 0.0, %v5150
      %v5152 = vpop.f32.mrb[0].mxu0
      %5153 = vmatprep.mubr.bf16.mxu0 0
      %5154 = vmatmul.mubr.bf16.gmra.mrb[0].mxu0 %v4960
      %v5155 = vpop.f32.mrb[0].mxu0
      %v5156 = vadd.f32 0.0, %v5155
      %v5157 = vpop.f32.mrb[0].mxu0
      %v5158 = vpop.f32.mrb[0].mxu0
      %v5159 = vadd.f32 0.0, %v5158
      %v5160 = vpop.f32.mrb[0].mxu0
      %5161 = vmatprep.mubr.bf16.mxu0 0
      %5162 = vmatmul.mubr.bf16.gmra.mrb[0].mxu0 %v4962
      %v5163 = vpop.f32.mrb[0].mxu0
      %v5164 = vadd.f32 0.0, %v5163
      %v5165 = vpop.f32.mrb[0].mxu0
      %v5166 = vpop.f32.mrb[0].mxu0
      %v5167 = vadd.f32 0.0, %v5166
      %v5168 = vpop.f32.mrb[0].mxu0
      %5169 = vmatprep.mubr.bf16.mxu0 0
      %5170 = vmatmul.mubr.bf16.gmra.mrb[0].mxu0 %v4964
      %v5171 = vpop.f32.mrb[0].mxu0
      %v5172 = vadd.f32 0.0, %v5171
      %v5173 = vpop.f32.mrb[0].mxu0
      %v5174 = vpop.f32.mrb[0].mxu0
      %v5175 = vadd.f32 0.0, %v5174
      %v5176 = vpop.f32.mrb[0].mxu0
      %5177 = vmatprep.mubr.bf16.mxu0 0
      %5178 = vmatmul.mubr.bf16.gmra.mrb[0].mxu0 %v4966
      %v5179 = vpop.f32.mrb[0].mxu0
      %v5180 = vadd.f32 0.0, %v5179
      %v5181 = vpop.f32.mrb[0].mxu0
      %v5182 = vpop.f32.mrb[0].mxu0
      %v5183 = vadd.f32 0.0, %v5182
      %v5184 = vpop.f32.mrb[0].mxu0
      %5185 = vmatprep.mubr.bf16.mxu0 0
      %5186 = vmatmul.mubr.bf16.gmra.mrb[0].mxu0 %v4968
      %v5187 = vpop.f32.mrb[0].mxu0
      %v5188 = vadd.f32 0.0, %v5187
      %v5189 = vpop.f32.mrb[0].mxu0
      %v5190 = vpop.f32.mrb[0].mxu0
      %v5191 = vadd.f32 0.0, %v5190
      %v5192 = vpop.f32.mrb[0].mxu0
      %5193 = vdwg.mxu0
      %v5194 = vld [vmem:[#allocation3] sm:$0xff]
      %v5195 = vld [vmem:[#allocation3 + $0x8] sm:$0xff]
      %v5196 = vld [vmem:[#allocation3 + $0x10] sm:$0xff]
      %v5197 = vld [vmem:[#allocation3 + $0x18] sm:$0xff]
      %v5198 = vld [vmem:[#allocation3 + $0x20] sm:$0xff]
      %v5199 = vld [vmem:[#allocation3 + $0x28] sm:$0xff]
      %v5200 = vld [vmem:[#allocation3 + $0x30] sm:$0xff]
      %v5201 = vld [vmem:[#allocation3 + $0x38] sm:$0xff]
      %v5202 = vld [vmem:[#allocation3 + $0x40] sm:$0xff]
      %v5203 = vld [vmem:[#allocation3 + $0x48] sm:$0xff]
      %v5204 = vld [vmem:[#allocation3 + $0x50] sm:$0xff]
      %v5205 = vld [vmem:[#allocation3 + $0x58] sm:$0xff]
      %v5206 = vld [vmem:[#allocation3 + $0x60] sm:$0xff]
      %v5207 = vld [vmem:[#allocation3 + $0x68] sm:$0xff]
      %v5208 = vld [vmem:[#allocation3 + $0x70] sm:$0xff]
      %v5209 = vld [vmem:[#allocation3 + $0x78] sm:$0xff]
      %v5210 = vld [vmem:[#allocation3 + $0x80] sm:$0xff]
      %v5211 = vld [vmem:[#allocation3 + $0x88] sm:$0xff]
      %v5212 = vld [vmem:[#allocation3 + $0x90] sm:$0xff]
      %v5213 = vld [vmem:[#allocation3 + $0x98] sm:$0xff]
      %v5214 = vld [vmem:[#allocation3 + $0xa0] sm:$0xff]
      %v5215 = vld [vmem:[#allocation3 + $0xa8] sm:$0xff]
      %v5216 = vld [vmem:[#allocation3 + $0xb0] sm:$0xff]
      %v5217 = vld [vmem:[#allocation3 + $0xb8] sm:$0xff]
      %v5218 = vld [vmem:[#allocation3 + $0xc0] sm:$0xff]
      %v5219 = vld [vmem:[#allocation3 + $0xc8] sm:$0xff]
      %v5220 = vld [vmem:[#allocation3 + $0xd0] sm:$0xff]
      %v5221 = vld [vmem:[#allocation3 + $0xd8] sm:$0xff]
      %v5222 = vld [vmem:[#allocation3 + $0xe0] sm:$0xff]
      %v5223 = vld [vmem:[#allocation3 + $0xe8] sm:$0xff]
      %v5224 = vld [vmem:[#allocation3 + $0xf0] sm:$0xff]
      %v5225 = vld [vmem:[#allocation3 + $0xf8] sm:$0xff]
      %v5226 = vadd.f32 %v5194, %v5068
      %v5227 = vadd.f32 %v5195, %v5071
      %v5228 = vadd.f32 %v5196, %v5076
      %v5229 = vadd.f32 %v5197, %v5079
      %v5230 = vadd.f32 %v5198, %v5084
      %v5231 = vadd.f32 %v5199, %v5087
      %v5232 = vadd.f32 %v5200, %v5092
      %v5233 = vadd.f32 %v5201, %v5095
      %v5234 = vadd.f32 %v5202, %v5100
      %v5235 = vadd.f32 %v5203, %v5103
      %v5236 = vadd.f32 %v5204, %v5108
      %v5237 = vadd.f32 %v5205, %v5111
      %v5238 = vadd.f32 %v5206, %v5116
      %v5239 = vadd.f32 %v5207, %v5119
      %v5240 = vadd.f32 %v5208, %v5124
      %v5241 = vadd.f32 %v5209, %v5127
      %v5242 = vadd.f32 %v5210, %v5132
      %v5243 = vadd.f32 %v5211, %v5135
      %v5244 = vadd.f32 %v5212, %v5140
      %v5245 = vadd.f32 %v5213, %v5143
      %v5246 = vadd.f32 %v5214, %v5148
      %v5247 = vadd.f32 %v5215, %v5151
      %v5248 = vadd.f32 %v5216, %v5156
      %v5249 = vadd.f32 %v5217, %v5159
      %v5250 = vadd.f32 %v5218, %v5164
      %v5251 = vadd.f32 %v5219, %v5167
      %v5252 = vadd.f32 %v5220, %v5172
      %v5253 = vadd.f32 %v5221, %v5175
      %v5254 = vadd.f32 %v5222, %v5180
      %v5255 = vadd.f32 %v5223, %v5183
      %v5256 = vadd.f32 %v5224, %v5188
      %v5257 = vadd.f32 %v5225, %v5191
      %5258 = vst [vmem:[#allocation3] sm:$0xff] %v5226
      %5259 = vst [vmem:[#allocation3 + $0x8] sm:$0xff] %v5227
      %5260 = vst [vmem:[#allocation3 + $0x10] sm:$0xff] %v5228
      %5261 = vst [vmem:[#allocation3 + $0x18] sm:$0xff] %v5229
      %5262 = vst [vmem:[#allocation3 + $0x20] sm:$0xff] %v5230
      %5263 = vst [vmem:[#allocation3 + $0x28] sm:$0xff] %v5231
      %5264 = vst [vmem:[#allocation3 + $0x30] sm:$0xff] %v5232
      %5265 = vst [vmem:[#allocation3 + $0x38] sm:$0xff] %v5233
      %5266 = vst [vmem:[#allocation3 + $0x40] sm:$0xff] %v5234
      %5267 = vst [vmem:[#allocation3 + $0x48] sm:$0xff] %v5235
      %5268 = vst [vmem:[#allocation3 + $0x50] sm:$0xff] %v5236
      %5269 = vst [vmem:[#allocation3 + $0x58] sm:$0xff] %v5237
      %5270 = vst [vmem:[#allocation3 + $0x60] sm:$0xff] %v5238
      %5271 = vst [vmem:[#allocation3 + $0x68] sm:$0xff] %v5239
      %5272 = vst [vmem:[#allocation3 + $0x70] sm:$0xff] %v5240
      %5273 = vst [vmem:[#allocation3 + $0x78] sm:$0xff] %v5241
      %5274 = vst [vmem:[#allocation3 + $0x80] sm:$0xff] %v5242
      %5275 = vst [vmem:[#allocation3 + $0x88] sm:$0xff] %v5243
      %5276 = vst [vmem:[#allocation3 + $0x90] sm:$0xff] %v5244
      %5277 = vst [vmem:[#allocation3 + $0x98] sm:$0xff] %v5245
      %5278 = vst [vmem:[#allocation3 + $0xa0] sm:$0xff] %v5246
      %5279 = vst [vmem:[#allocation3 + $0xa8] sm:$0xff] %v5247
      %5280 = vst [vmem:[#allocation3 + $0xb0] sm:$0xff] %v5248
      %5281 = vst [vmem:[#allocation3 + $0xb8] sm:$0xff] %v5249
      %5282 = vst [vmem:[#allocation3 + $0xc0] sm:$0xff] %v5250
      %5283 = vst [vmem:[#allocation3 + $0xc8] sm:$0xff] %v5251
      %5284 = vst [vmem:[#allocation3 + $0xd0] sm:$0xff] %v5252
      %5285 = vst [vmem:[#allocation3 + $0xd8] sm:$0xff] %v5253
      %5286 = vst [vmem:[#allocation3 + $0xe0] sm:$0xff] %v5254
      %5287 = vst [vmem:[#allocation3 + $0xe8] sm:$0xff] %v5255
      %5288 = vst [vmem:[#allocation3 + $0xf0] sm:$0xff] %v5256
      %5289 = vst [vmem:[#allocation3 + $0xf8] sm:$0xff] %v5257
      %v5290 = vld [vmem:[#allocation2 + $0x10] sm:$0xf0]
      %v5291 = vld [vmem:[#allocation2 + $0x18] sm:$0xff]
      %v5292 = vld [vmem:[#allocation2 + $0x20] sm:$0xff]
      %v5293 = vld [vmem:[#allocation2 + $0x28] sm:$0xff]
      %v5294 = vld [vmem:[#allocation2 + $0x30] sm:$0xff]
      %v5295 = vld [vmem:[#allocation2 + $0x38] sm:$0xff]
      %v5296 = vld [vmem:[#allocation2 + $0x40] sm:$0xff]
      %v5297 = vld [vmem:[#allocation2 + $0x48] sm:$0xff]
      %v5298 = vld [vmem:[#allocation2 + $0x50] sm:$0xff]
      %v5299 = vld [vmem:[#allocation2 + $0x58] sm:$0xff]
      %v5300 = vld [vmem:[#allocation2 + $0x60] sm:$0xff]
      %v5301 = vld [vmem:[#allocation2 + $0x68] sm:$0xff]
      %v5302 = vld [vmem:[#allocation2 + $0x70] sm:$0xff]
      %v5303 = vld [vmem:[#allocation2 + $0x78] sm:$0xff]
      %v5304 = vld [vmem:[#allocation2 + $0x80] sm:$0xff]
      %v5305 = vld [vmem:[#allocation2 + $0x88] sm:$0xff]
      %v5306 = vld [vmem:[#allocation2 + $0x90] sm:$0x1f]
      %s5307 = scalar_lea.vmem %s2, 512
      %v5308 = vld [vmem:[%s5307] sm:$0xf]
      %v5309 = vld [vmem:[%s5307 + $0x4] sm:$0xf]
      %v5310 = vld [vmem:[%s5307 + $0x8] sm:$0xf]
      %v5311 = vld [vmem:[%s5307 + $0xc] sm:$0xf]
      %v5312 = vld [vmem:[%s5307 + $0x10] sm:$0xf]
      %v5313 = vld [vmem:[%s5307 + $0x14] sm:$0xf]
      %v5314 = vld [vmem:[%s5307 + $0x18] sm:$0xf]
      %v5315 = vld [vmem:[%s5307 + $0x1c] sm:$0xf]
      %v5316 = vld [vmem:[%s5307 + $0x20] sm:$0xf]
      %v5317 = vld [vmem:[%s5307 + $0x24] sm:$0xf]
      %v5318 = vld [vmem:[%s5307 + $0x28] sm:$0xf]
      %v5319 = vld [vmem:[%s5307 + $0x2c] sm:$0xf]
      %v5320 = vld [vmem:[%s5307 + $0x30] sm:$0xf]
      %v5321 = vld [vmem:[%s5307 + $0x34] sm:$0xf]
      %v5322 = vld [vmem:[%s5307 + $0x38] sm:$0xf]
      %v5323 = vld [vmem:[%s5307 + $0x3c] sm:$0xf]
      %v5325 = vshrl.u32 %v5290, 16
      %v5327 = vrot.slane %v5325, 4
      %v5328 = vshll.u32 %v5290, 16
      %v5330 = vrot.slane %v5328, 5
      %v5331 = vor.u32 %v5327, %v5330
      %v5333 = vshrl.u32 %v5291, 16
      %v5335 = vrot.slane %v5333, 4
      %v5336 = vshll.u32 %v5291, 16
      %v5338 = vrot.slane %v5336, 5
      %v5339 = vor.u32 %v5335, %v5338
      %v5340 = vsel %vm2357, %v5331, %v5339
      %v5342 = vshrl.u32 %v5292, 16
      %v5344 = vrot.slane %v5342, 4
      %v5345 = vshll.u32 %v5292, 16
      %v5347 = vrot.slane %v5345, 5
      %v5348 = vor.u32 %v5344, %v5347
      %v5349 = vsel %vm2357, %v5339, %v5348
      %v5351 = vshrl.u32 %v5293, 16
      %v5353 = vrot.slane %v5351, 4
      %v5354 = vshll.u32 %v5293, 16
      %v5356 = vrot.slane %v5354, 5
      %v5357 = vor.u32 %v5353, %v5356
      %v5358 = vsel %vm2357, %v5348, %v5357
      %v5360 = vshrl.u32 %v5294, 16
      %v5362 = vrot.slane %v5360, 4
      %v5363 = vshll.u32 %v5294, 16
      %v5365 = vrot.slane %v5363, 5
      %v5366 = vor.u32 %v5362, %v5365
      %v5367 = vsel %vm2357, %v5357, %v5366
      %v5369 = vshrl.u32 %v5295, 16
      %v5371 = vrot.slane %v5369, 4
      %v5372 = vshll.u32 %v5295, 16
      %v5374 = vrot.slane %v5372, 5
      %v5375 = vor.u32 %v5371, %v5374
      %v5376 = vsel %vm2357, %v5366, %v5375
      %v5378 = vshrl.u32 %v5296, 16
      %v5380 = vrot.slane %v5378, 4
      %v5381 = vshll.u32 %v5296, 16
      %v5383 = vrot.slane %v5381, 5
      %v5384 = vor.u32 %v5380, %v5383
      %v5385 = vsel %vm2357, %v5375, %v5384
      %v5387 = vshrl.u32 %v5297, 16
      %v5389 = vrot.slane %v5387, 4
      %v5390 = vshll.u32 %v5297, 16
      %v5392 = vrot.slane %v5390, 5
      %v5393 = vor.u32 %v5389, %v5392
      %v5394 = vsel %vm2357, %v5384, %v5393
      %v5396 = vshrl.u32 %v5298, 16
      %v5398 = vrot.slane %v5396, 4
      %v5399 = vshll.u32 %v5298, 16
      %v5401 = vrot.slane %v5399, 5
      %v5402 = vor.u32 %v5398, %v5401
      %v5403 = vsel %vm2357, %v5393, %v5402
      %v5405 = vshrl.u32 %v5299, 16
      %v5407 = vrot.slane %v5405, 4
      %v5408 = vshll.u32 %v5299, 16
      %v5410 = vrot.slane %v5408, 5
      %v5411 = vor.u32 %v5407, %v5410
      %v5412 = vsel %vm2357, %v5402, %v5411
      %v5414 = vshrl.u32 %v5300, 16
      %v5416 = vrot.slane %v5414, 4
      %v5417 = vshll.u32 %v5300, 16
      %v5419 = vrot.slane %v5417, 5
      %v5420 = vor.u32 %v5416, %v5419
      %v5421 = vsel %vm2357, %v5411, %v5420
      %v5423 = vshrl.u32 %v5301, 16
      %v5425 = vrot.slane %v5423, 4
      %v5426 = vshll.u32 %v5301, 16
      %v5428 = vrot.slane %v5426, 5
      %v5429 = vor.u32 %v5425, %v5428
      %v5430 = vsel %vm2357, %v5420, %v5429
      %v5432 = vshrl.u32 %v5302, 16
      %v5434 = vrot.slane %v5432, 4
      %v5435 = vshll.u32 %v5302, 16
      %v5437 = vrot.slane %v5435, 5
      %v5438 = vor.u32 %v5434, %v5437
      %v5439 = vsel %vm2357, %v5429, %v5438
      %v5441 = vshrl.u32 %v5303, 16
      %v5443 = vrot.slane %v5441, 4
      %v5444 = vshll.u32 %v5303, 16
      %v5446 = vrot.slane %v5444, 5
      %v5447 = vor.u32 %v5443, %v5446
      %v5448 = vsel %vm2357, %v5438, %v5447
      %v5450 = vshrl.u32 %v5304, 16
      %v5452 = vrot.slane %v5450, 4
      %v5453 = vshll.u32 %v5304, 16
      %v5455 = vrot.slane %v5453, 5
      %v5456 = vor.u32 %v5452, %v5455
      %v5457 = vsel %vm2357, %v5447, %v5456
      %v5459 = vshrl.u32 %v5305, 16
      %v5461 = vrot.slane %v5459, 4
      %v5462 = vshll.u32 %v5305, 16
      %v5464 = vrot.slane %v5462, 5
      %v5465 = vor.u32 %v5461, %v5464
      %v5466 = vsel %vm2357, %v5456, %v5465
      %v5468 = vshrl.u32 %v5306, 16
      %v5470 = vrot.slane %v5468, 4
      %v5471 = vshll.u32 %v5306, 16
      %v5473 = vrot.slane %v5471, 5
      %v5474 = vor.u32 %v5470, %v5473
      %v5475 = vsel %vm2357, %v5465, %v5474
      %v5508 = vunpack.c.l.b16 %v5308
      %v5509 = vunpack.c.l.b16 %v5309
      %v5510 = vunpack.c.l.b16 %v5310
      %v5511 = vunpack.c.l.b16 %v5311
      %v5512 = vunpack.c.l.b16 %v5312
      %v5513 = vunpack.c.l.b16 %v5313
      %v5514 = vunpack.c.l.b16 %v5314
      %v5515 = vunpack.c.l.b16 %v5315
      %v5516 = vunpack.c.l.b16 %v5316
      %v5517 = vunpack.c.l.b16 %v5317
      %v5518 = vunpack.c.l.b16 %v5318
      %v5519 = vunpack.c.l.b16 %v5319
      %v5520 = vunpack.c.l.b16 %v5320
      %v5521 = vunpack.c.l.b16 %v5321
      %v5522 = vunpack.c.l.b16 %v5322
      %v5523 = vunpack.c.l.b16 %v5323
      %v5524 = vpack.c.b16 %v5509, %v5508
      %v5525 = vpack.c.b16 %v5511, %v5510
      %v5526 = vpack.c.b16 %v5513, %v5512
      %v5527 = vpack.c.b16 %v5515, %v5514
      %v5528 = vpack.c.b16 %v5517, %v5516
      %v5529 = vpack.c.b16 %v5519, %v5518
      %v5530 = vpack.c.b16 %v5521, %v5520
      %v5531 = vpack.c.b16 %v5523, %v5522
      %5540 = vmatprep.subr.bf16.mxu0 0
      %5541 = vmatpush1.bf16.msra.mxu0 %v5524
      %5542 = vmatprep.subr.bf16.mxu0 0
      %5543 = vmatpush1.bf16.msra.mxu0 %v5525
      %5544 = vmatprep.subr.bf16.mxu0 0
      %5545 = vmatpush1.bf16.msra.mxu0 %v5526
      %5546 = vmatprep.subr.bf16.mxu0 0
      %5547 = vmatpush1.bf16.msra.mxu0 %v5527
      %5548 = vmatprep.subr.bf16.mxu0 0
      %5549 = vmatpush1.bf16.msra.mxu0 %v5528
      %5550 = vmatprep.subr.bf16.mxu0 0
      %5551 = vmatpush1.bf16.msra.mxu0 %v5529
      %5552 = vmatprep.subr.bf16.mxu0 0
      %5553 = vmatpush1.bf16.msra.mxu0 %v5530
      %5554 = vmatprep.subr.bf16.mxu0 0
      %5555 = vmatpush1.bf16.msra.mxu0 %v5531
      %5556 = vmatprep.subr.bf16.mxu0 0
      %5557 = vmatpush1.bf16.msra.mxu0 0
      %5558 = vmatprep.subr.bf16.mxu0 0
      %5559 = vmatpush1.bf16.msra.mxu0 0
      %5560 = vmatprep.subr.bf16.mxu0 0
      %5561 = vmatpush1.bf16.msra.mxu0 0
      %5562 = vmatprep.subr.bf16.mxu0 0
      %5563 = vmatpush1.bf16.msra.mxu0 0
      %5564 = vmatprep.subr.bf16.mxu0 0
      %5565 = vmatpush1.bf16.msra.mxu0 0
      %5566 = vmatprep.subr.bf16.mxu0 0
      %5567 = vmatpush1.bf16.msra.mxu0 0
      %5568 = vmatprep.subr.bf16.mxu0 0
      %5569 = vmatpush1.bf16.msra.mxu0 0
      %5570 = vmatprep.subr.bf16.mxu0 0
      %5571 = vmatpush1.bf16.msra.mxu0 0
      %5572 = vmatprep.mubr.bf16.mxu0 0
      %5573 = vmatmul.mubr.bf16.gmra.mrb[0].mxu0 %v5340
      %v5574 = vpop.f32.mrb[0].mxu0
      %v5575 = vadd.f32 0.0, %v5574
      %v5576 = vpop.f32.mrb[0].mxu0
      %v5577 = vpop.f32.mrb[0].mxu0
      %v5578 = vadd.f32 0.0, %v5577
      %v5579 = vpop.f32.mrb[0].mxu0
      %5580 = vmatprep.mubr.bf16.mxu0 0
      %5581 = vmatmul.mubr.bf16.gmra.mrb[0].mxu0 %v5349
      %v5582 = vpop.f32.mrb[0].mxu0
      %v5583 = vadd.f32 0.0, %v5582
      %v5584 = vpop.f32.mrb[0].mxu0
      %v5585 = vpop.f32.mrb[0].mxu0
      %v5586 = vadd.f32 0.0, %v5585
      %v5587 = vpop.f32.mrb[0].mxu0
      %5588 = vmatprep.mubr.bf16.mxu0 0
      %5589 = vmatmul.mubr.bf16.gmra.mrb[0].mxu0 %v5358
      %v5590 = vpop.f32.mrb[0].mxu0
      %v5591 = vadd.f32 0.0, %v5590
      %v5592 = vpop.f32.mrb[0].mxu0
      %v5593 = vpop.f32.mrb[0].mxu0
      %v5594 = vadd.f32 0.0, %v5593
      %v5595 = vpop.f32.mrb[0].mxu0
      %5596 = vmatprep.mubr.bf16.mxu0 0
      %5597 = vmatmul.mubr.bf16.gmra.mrb[0].mxu0 %v5367
      %v5598 = vpop.f32.mrb[0].mxu0
      %v5599 = vadd.f32 0.0, %v5598
      %v5600 = vpop.f32.mrb[0].mxu0
      %v5601 = vpop.f32.mrb[0].mxu0
      %v5602 = vadd.f32 0.0, %v5601
      %v5603 = vpop.f32.mrb[0].mxu0
      %5604 = vmatprep.mubr.bf16.mxu0 0
      %5605 = vmatmul.mubr.bf16.gmra.mrb[0].mxu0 %v5376
      %v5606 = vpop.f32.mrb[0].mxu0
      %v5607 = vadd.f32 0.0, %v5606
      %v5608 = vpop.f32.mrb[0].mxu0
      %v5609 = vpop.f32.mrb[0].mxu0
      %v5610 = vadd.f32 0.0, %v5609
      %v5611 = vpop.f32.mrb[0].mxu0
      %5612 = vmatprep.mubr.bf16.mxu0 0
      %5613 = vmatmul.mubr.bf16.gmra.mrb[0].mxu0 %v5385
      %v5614 = vpop.f32.mrb[0].mxu0
      %v5615 = vadd.f32 0.0, %v5614
      %v5616 = vpop.f32.mrb[0].mxu0
      %v5617 = vpop.f32.mrb[0].mxu0
      %v5618 = vadd.f32 0.0, %v5617
      %v5619 = vpop.f32.mrb[0].mxu0
      %5620 = vmatprep.mubr.bf16.mxu0 0
      %5621 = vmatmul.mubr.bf16.gmra.mrb[0].mxu0 %v5394
      %v5622 = vpop.f32.mrb[0].mxu0
      %v5623 = vadd.f32 0.0, %v5622
      %v5624 = vpop.f32.mrb[0].mxu0
      %v5625 = vpop.f32.mrb[0].mxu0
      %v5626 = vadd.f32 0.0, %v5625
      %v5627 = vpop.f32.mrb[0].mxu0
      %5628 = vmatprep.mubr.bf16.mxu0 0
      %5629 = vmatmul.mubr.bf16.gmra.mrb[0].mxu0 %v5403
      %v5630 = vpop.f32.mrb[0].mxu0
      %v5631 = vadd.f32 0.0, %v5630
      %v5632 = vpop.f32.mrb[0].mxu0
      %v5633 = vpop.f32.mrb[0].mxu0
      %v5634 = vadd.f32 0.0, %v5633
      %v5635 = vpop.f32.mrb[0].mxu0
      %5636 = vmatprep.mubr.bf16.mxu0 0
      %5637 = vmatmul.mubr.bf16.gmra.mrb[0].mxu0 %v5412
      %v5638 = vpop.f32.mrb[0].mxu0
      %v5639 = vadd.f32 0.0, %v5638
      %v5640 = vpop.f32.mrb[0].mxu0
      %v5641 = vpop.f32.mrb[0].mxu0
      %v5642 = vadd.f32 0.0, %v5641
      %v5643 = vpop.f32.mrb[0].mxu0
      %5644 = vmatprep.mubr.bf16.mxu0 0
      %5645 = vmatmul.mubr.bf16.gmra.mrb[0].mxu0 %v5421
      %v5646 = vpop.f32.mrb[0].mxu0
      %v5647 = vadd.f32 0.0, %v5646
      %v5648 = vpop.f32.mrb[0].mxu0
      %v5649 = vpop.f32.mrb[0].mxu0
      %v5650 = vadd.f32 0.0, %v5649
      %v5651 = vpop.f32.mrb[0].mxu0
      %5652 = vmatprep.mubr.bf16.mxu0 0
      %5653 = vmatmul.mubr.bf16.gmra.mrb[0].mxu0 %v5430
      %v5654 = vpop.f32.mrb[0].mxu0
      %v5655 = vadd.f32 0.0, %v5654
      %v5656 = vpop.f32.mrb[0].mxu0
      %v5657 = vpop.f32.mrb[0].mxu0
      %v5658 = vadd.f32 0.0, %v5657
      %v5659 = vpop.f32.mrb[0].mxu0
      %5660 = vmatprep.mubr.bf16.mxu0 0
      %5661 = vmatmul.mubr.bf16.gmra.mrb[0].mxu0 %v5439
      %v5662 = vpop.f32.mrb[0].mxu0
      %v5663 = vadd.f32 0.0, %v5662
      %v5664 = vpop.f32.mrb[0].mxu0
      %v5665 = vpop.f32.mrb[0].mxu0
      %v5666 = vadd.f32 0.0, %v5665
      %v5667 = vpop.f32.mrb[0].mxu0
      %5668 = vmatprep.mubr.bf16.mxu0 0
      %5669 = vmatmul.mubr.bf16.gmra.mrb[0].mxu0 %v5448
      %v5670 = vpop.f32.mrb[0].mxu0
      %v5671 = vadd.f32 0.0, %v5670
      %v5672 = vpop.f32.mrb[0].mxu0
      %v5673 = vpop.f32.mrb[0].mxu0
      %v5674 = vadd.f32 0.0, %v5673
      %v5675 = vpop.f32.mrb[0].mxu0
      %5676 = vmatprep.mubr.bf16.mxu0 0
      %5677 = vmatmul.mubr.bf16.gmra.mrb[0].mxu0 %v5457
      %v5678 = vpop.f32.mrb[0].mxu0
      %v5679 = vadd.f32 0.0, %v5678
      %v5680 = vpop.f32.mrb[0].mxu0
      %v5681 = vpop.f32.mrb[0].mxu0
      %v5682 = vadd.f32 0.0, %v5681
      %v5683 = vpop.f32.mrb[0].mxu0
      %5684 = vmatprep.mubr.bf16.mxu0 0
      %5685 = vmatmul.mubr.bf16.gmra.mrb[0].mxu0 %v5466
      %v5686 = vpop.f32.mrb[0].mxu0
      %v5687 = vadd.f32 0.0, %v5686
      %v5688 = vpop.f32.mrb[0].mxu0
      %v5689 = vpop.f32.mrb[0].mxu0
      %v5690 = vadd.f32 0.0, %v5689
      %v5691 = vpop.f32.mrb[0].mxu0
      %5692 = vmatprep.mubr.bf16.mxu0 0
      %5693 = vmatmul.mubr.bf16.gmra.mrb[0].mxu0 %v5475
      %v5694 = vpop.f32.mrb[0].mxu0
      %v5695 = vadd.f32 0.0, %v5694
      %v5696 = vpop.f32.mrb[0].mxu0
      %v5697 = vpop.f32.mrb[0].mxu0
      %v5698 = vadd.f32 0.0, %v5697
      %v5699 = vpop.f32.mrb[0].mxu0
      %5700 = vdwg.mxu0
      %v5701 = vmul.f32 %v5575, %v1411
      %v5702 = vmul.f32 %v5578, %v1412
      %v5703 = vmul.f32 %v5583, %v1413
      %v5704 = vmul.f32 %v5586, %v1414
      %v5705 = vmul.f32 %v5591, %v1415
      %v5706 = vmul.f32 %v5594, %v1416
      %v5707 = vmul.f32 %v5599, %v1417
      %v5708 = vmul.f32 %v5602, %v1418
      %v5709 = vmul.f32 %v5607, %v1419
      %v5710 = vmul.f32 %v5610, %v1420
      %v5711 = vmul.f32 %v5615, %v1421
      %v5712 = vmul.f32 %v5618, %v1422
      %v5713 = vmul.f32 %v5623, %v1423
      %v5714 = vmul.f32 %v5626, %v1424
      %v5715 = vmul.f32 %v5631, %v1425
      %v5716 = vmul.f32 %v5634, %v1426
      %v5717 = vmul.f32 %v5639, %v1427
      %v5718 = vmul.f32 %v5642, %v1428
      %v5719 = vmul.f32 %v5647, %v1429
      %v5720 = vmul.f32 %v5650, %v1430
      %v5721 = vmul.f32 %v5655, %v1431
      %v5722 = vmul.f32 %v5658, %v1432
      %v5723 = vmul.f32 %v5663, %v1433
      %v5724 = vmul.f32 %v5666, %v1434
      %v5725 = vmul.f32 %v5671, %v1435
      %v5726 = vmul.f32 %v5674, %v1436
      %v5727 = vmul.f32 %v5679, %v1437
      %v5728 = vmul.f32 %v5682, %v1438
      %v5729 = vmul.f32 %v5687, %v1439
      %v5730 = vmul.f32 %v5690, %v1440
      %v5731 = vmul.f32 %v5695, %v1441
      %v5732 = vmul.f32 %v5698, %v1442
      %v5733 = vld [vmem:[#allocation3] sm:$0xff]
      %v5734 = vld [vmem:[#allocation3 + $0x8] sm:$0xff]
      %v5735 = vld [vmem:[#allocation3 + $0x10] sm:$0xff]
      %v5736 = vld [vmem:[#allocation3 + $0x18] sm:$0xff]
      %v5737 = vld [vmem:[#allocation3 + $0x20] sm:$0xff]
      %v5738 = vld [vmem:[#allocation3 + $0x28] sm:$0xff]
      %v5739 = vld [vmem:[#allocation3 + $0x30] sm:$0xff]
      %v5740 = vld [vmem:[#allocation3 + $0x38] sm:$0xff]
      %v5741 = vld [vmem:[#allocation3 + $0x40] sm:$0xff]
      %v5742 = vld [vmem:[#allocation3 + $0x48] sm:$0xff]
      %v5743 = vld [vmem:[#allocation3 + $0x50] sm:$0xff]
      %v5744 = vld [vmem:[#allocation3 + $0x58] sm:$0xff]
      %v5745 = vld [vmem:[#allocation3 + $0x60] sm:$0xff]
      %v5746 = vld [vmem:[#allocation3 + $0x68] sm:$0xff]
      %v5747 = vld [vmem:[#allocation3 + $0x70] sm:$0xff]
      %v5748 = vld [vmem:[#allocation3 + $0x78] sm:$0xff]
      %v5749 = vld [vmem:[#allocation3 + $0x80] sm:$0xff]
      %v5750 = vld [vmem:[#allocation3 + $0x88] sm:$0xff]
      %v5751 = vld [vmem:[#allocation3 + $0x90] sm:$0xff]
      %v5752 = vld [vmem:[#allocation3 + $0x98] sm:$0xff]
      %v5753 = vld [vmem:[#allocation3 + $0xa0] sm:$0xff]
      %v5754 = vld [vmem:[#allocation3 + $0xa8] sm:$0xff]
      %v5755 = vld [vmem:[#allocation3 + $0xb0] sm:$0xff]
      %v5756 = vld [vmem:[#allocation3 + $0xb8] sm:$0xff]
      %v5757 = vld [vmem:[#allocation3 + $0xc0] sm:$0xff]
      %v5758 = vld [vmem:[#allocation3 + $0xc8] sm:$0xff]
      %v5759 = vld [vmem:[#allocation3 + $0xd0] sm:$0xff]
      %v5760 = vld [vmem:[#allocation3 + $0xd8] sm:$0xff]
      %v5761 = vld [vmem:[#allocation3 + $0xe0] sm:$0xff]
      %v5762 = vld [vmem:[#allocation3 + $0xe8] sm:$0xff]
      %v5763 = vld [vmem:[#allocation3 + $0xf0] sm:$0xff]
      %v5764 = vld [vmem:[#allocation3 + $0xf8] sm:$0xff]
      %v5765 = vadd.f32 %v5733, %v5701
      %v5766 = vadd.f32 %v5734, %v5702
      %v5767 = vadd.f32 %v5735, %v5703
      %v5768 = vadd.f32 %v5736, %v5704
      %v5769 = vadd.f32 %v5737, %v5705
      %v5770 = vadd.f32 %v5738, %v5706
      %v5771 = vadd.f32 %v5739, %v5707
      %v5772 = vadd.f32 %v5740, %v5708
      %v5773 = vadd.f32 %v5741, %v5709
      %v5774 = vadd.f32 %v5742, %v5710
      %v5775 = vadd.f32 %v5743, %v5711
      %v5776 = vadd.f32 %v5744, %v5712
      %v5777 = vadd.f32 %v5745, %v5713
      %v5778 = vadd.f32 %v5746, %v5714
      %v5779 = vadd.f32 %v5747, %v5715
      %v5780 = vadd.f32 %v5748, %v5716
      %v5781 = vadd.f32 %v5749, %v5717
      %v5782 = vadd.f32 %v5750, %v5718
      %v5783 = vadd.f32 %v5751, %v5719
      %v5784 = vadd.f32 %v5752, %v5720
      %v5785 = vadd.f32 %v5753, %v5721
      %v5786 = vadd.f32 %v5754, %v5722
      %v5787 = vadd.f32 %v5755, %v5723
      %v5788 = vadd.f32 %v5756, %v5724
      %v5789 = vadd.f32 %v5757, %v5725
      %v5790 = vadd.f32 %v5758, %v5726
      %v5791 = vadd.f32 %v5759, %v5727
      %v5792 = vadd.f32 %v5760, %v5728
      %v5793 = vadd.f32 %v5761, %v5729
      %v5794 = vadd.f32 %v5762, %v5730
      %v5795 = vadd.f32 %v5763, %v5731
      %v5796 = vadd.f32 %v5764, %v5732
      %5797 = vst [vmem:[#allocation3] sm:$0xff] %v5765
      %5798 = vst [vmem:[#allocation3 + $0x8] sm:$0xff] %v5766
      %5799 = vst [vmem:[#allocation3 + $0x10] sm:$0xff] %v5767
      %5800 = vst [vmem:[#allocation3 + $0x18] sm:$0xff] %v5768
      %5801 = vst [vmem:[#allocation3 + $0x20] sm:$0xff] %v5769
      %5802 = vst [vmem:[#allocation3 + $0x28] sm:$0xff] %v5770
      %5803 = vst [vmem:[#allocation3 + $0x30] sm:$0xff] %v5771
      %5804 = vst [vmem:[#allocation3 + $0x38] sm:$0xff] %v5772
      %5805 = vst [vmem:[#allocation3 + $0x40] sm:$0xff] %v5773
      %5806 = vst [vmem:[#allocation3 + $0x48] sm:$0xff] %v5774
      %5807 = vst [vmem:[#allocation3 + $0x50] sm:$0xff] %v5775
      %5808 = vst [vmem:[#allocation3 + $0x58] sm:$0xff] %v5776
      %5809 = vst [vmem:[#allocation3 + $0x60] sm:$0xff] %v5777
      %5810 = vst [vmem:[#allocation3 + $0x68] sm:$0xff] %v5778
      %5811 = vst [vmem:[#allocation3 + $0x70] sm:$0xff] %v5779
      %5812 = vst [vmem:[#allocation3 + $0x78] sm:$0xff] %v5780
      %5813 = vst [vmem:[#allocation3 + $0x80] sm:$0xff] %v5781
      %5814 = vst [vmem:[#allocation3 + $0x88] sm:$0xff] %v5782
      %5815 = vst [vmem:[#allocation3 + $0x90] sm:$0xff] %v5783
      %5816 = vst [vmem:[#allocation3 + $0x98] sm:$0xff] %v5784
      %5817 = vst [vmem:[#allocation3 + $0xa0] sm:$0xff] %v5785
      %5818 = vst [vmem:[#allocation3 + $0xa8] sm:$0xff] %v5786
      %5819 = vst [vmem:[#allocation3 + $0xb0] sm:$0xff] %v5787
      %5820 = vst [vmem:[#allocation3 + $0xb8] sm:$0xff] %v5788
      %5821 = vst [vmem:[#allocation3 + $0xc0] sm:$0xff] %v5789
      %5822 = vst [vmem:[#allocation3 + $0xc8] sm:$0xff] %v5790
      %5823 = vst [vmem:[#allocation3 + $0xd0] sm:$0xff] %v5791
      %5824 = vst [vmem:[#allocation3 + $0xd8] sm:$0xff] %v5792
      %5825 = vst [vmem:[#allocation3 + $0xe0] sm:$0xff] %v5793
      %5826 = vst [vmem:[#allocation3 + $0xe8] sm:$0xff] %v5794
      %5827 = vst [vmem:[#allocation3 + $0xf0] sm:$0xff] %v5795
      %5828 = vst [vmem:[#allocation3 + $0xf8] sm:$0xff] %v5796
      %v5829 = vld [vmem:[#allocation3] sm:$0xff]
      %v5830 = vld [vmem:[#allocation3 + $0x8] sm:$0xff]
      %v5831 = vld [vmem:[#allocation3 + $0x10] sm:$0xff]
      %v5832 = vld [vmem:[#allocation3 + $0x18] sm:$0xff]
      %v5833 = vld [vmem:[#allocation3 + $0x20] sm:$0xff]
      %v5834 = vld [vmem:[#allocation3 + $0x28] sm:$0xff]
      %v5835 = vld [vmem:[#allocation3 + $0x30] sm:$0xff]
      %v5836 = vld [vmem:[#allocation3 + $0x38] sm:$0xff]
      %v5837 = vld [vmem:[#allocation3 + $0x40] sm:$0xff]
      %v5838 = vld [vmem:[#allocation3 + $0x48] sm:$0xff]
      %v5839 = vld [vmem:[#allocation3 + $0x50] sm:$0xff]
      %v5840 = vld [vmem:[#allocation3 + $0x58] sm:$0xff]
      %v5841 = vld [vmem:[#allocation3 + $0x60] sm:$0xff]
      %v5842 = vld [vmem:[#allocation3 + $0x68] sm:$0xff]
      %v5843 = vld [vmem:[#allocation3 + $0x70] sm:$0xff]
      %v5844 = vld [vmem:[#allocation3 + $0x78] sm:$0xff]
      %v5845 = vld [vmem:[#allocation3 + $0x80] sm:$0xff]
      %v5846 = vld [vmem:[#allocation3 + $0x88] sm:$0xff]
      %v5847 = vld [vmem:[#allocation3 + $0x90] sm:$0xff]
      %v5848 = vld [vmem:[#allocation3 + $0x98] sm:$0xff]
      %v5849 = vld [vmem:[#allocation3 + $0xa0] sm:$0xff]
      %v5850 = vld [vmem:[#allocation3 + $0xa8] sm:$0xff]
      %v5851 = vld [vmem:[#allocation3 + $0xb0] sm:$0xff]
      %v5852 = vld [vmem:[#allocation3 + $0xb8] sm:$0xff]
      %v5853 = vld [vmem:[#allocation3 + $0xc0] sm:$0xff]
      %v5854 = vld [vmem:[#allocation3 + $0xc8] sm:$0xff]
      %v5855 = vld [vmem:[#allocation3 + $0xd0] sm:$0xff]
      %v5856 = vld [vmem:[#allocation3 + $0xd8] sm:$0xff]
      %v5857 = vld [vmem:[#allocation3 + $0xe0] sm:$0xff]
      %v5858 = vld [vmem:[#allocation3 + $0xe8] sm:$0xff]
      %v5859 = vld [vmem:[#allocation3 + $0xf0] sm:$0xff]
      %v5860 = vld [vmem:[#allocation3 + $0xf8] sm:$0xff]
      %v5861 = vld [vmem:[%s5] sm:$0x1]
      %v5863 = vlaneseq
      %v5864 = vshrl.u32 %v5863, 7
      %v5865 = vsub.s32 0, %v5864
      %v5866 = vrot.slane %v5861, %v5865
      %v5868 = vmul.f32 %v5829, %v5866
      %v5869 = vmul.f32 %v5830, %v5866
      %v5870 = vmul.f32 %v5831, %v5866
      %v5871 = vmul.f32 %v5832, %v5866
      %v5872 = vmul.f32 %v5833, %v5866
      %v5873 = vmul.f32 %v5834, %v5866
      %v5874 = vmul.f32 %v5835, %v5866
      %v5875 = vmul.f32 %v5836, %v5866
      %v5876 = vmul.f32 %v5837, %v5866
      %v5877 = vmul.f32 %v5838, %v5866
      %v5878 = vmul.f32 %v5839, %v5866
      %v5879 = vmul.f32 %v5840, %v5866
      %v5880 = vmul.f32 %v5841, %v5866
      %v5881 = vmul.f32 %v5842, %v5866
      %v5882 = vmul.f32 %v5843, %v5866
      %v5883 = vmul.f32 %v5844, %v5866
      %v5884 = vmul.f32 %v5845, %v5866
      %v5885 = vmul.f32 %v5846, %v5866
      %v5886 = vmul.f32 %v5847, %v5866
      %v5887 = vmul.f32 %v5848, %v5866
      %v5888 = vmul.f32 %v5849, %v5866
      %v5889 = vmul.f32 %v5850, %v5866
      %v5890 = vmul.f32 %v5851, %v5866
      %v5891 = vmul.f32 %v5852, %v5866
      %v5892 = vmul.f32 %v5853, %v5866
      %v5893 = vmul.f32 %v5854, %v5866
      %v5894 = vmul.f32 %v5855, %v5866
      %v5895 = vmul.f32 %v5856, %v5866
      %v5896 = vmul.f32 %v5857, %v5866
      %v5897 = vmul.f32 %v5858, %v5866
      %v5898 = vmul.f32 %v5859, %v5866
      %v5899 = vmul.f32 %v5860, %v5866
      %v5900 = vld [vmem:[%s6] sm:$0x1]
      %v5902 = vlaneseq
      %v5903 = vshrl.u32 %v5902, 7
      %v5904 = vsub.s32 0, %v5903
      %v5905 = vrot.slane %v5900, %v5904
      %v5907 = vadd.f32 %v5868, %v5905
      %v5908 = vadd.f32 %v5869, %v5905
      %v5909 = vadd.f32 %v5870, %v5905
      %v5910 = vadd.f32 %v5871, %v5905
      %v5911 = vadd.f32 %v5872, %v5905
      %v5912 = vadd.f32 %v5873, %v5905
      %v5913 = vadd.f32 %v5874, %v5905
      %v5914 = vadd.f32 %v5875, %v5905
      %v5915 = vadd.f32 %v5876, %v5905
      %v5916 = vadd.f32 %v5877, %v5905
      %v5917 = vadd.f32 %v5878, %v5905
      %v5918 = vadd.f32 %v5879, %v5905
      %v5919 = vadd.f32 %v5880, %v5905
      %v5920 = vadd.f32 %v5881, %v5905
      %v5921 = vadd.f32 %v5882, %v5905
      %v5922 = vadd.f32 %v5883, %v5905
      %v5923 = vadd.f32 %v5884, %v5905
      %v5924 = vadd.f32 %v5885, %v5905
      %v5925 = vadd.f32 %v5886, %v5905
      %v5926 = vadd.f32 %v5887, %v5905
      %v5927 = vadd.f32 %v5888, %v5905
      %v5928 = vadd.f32 %v5889, %v5905
      %v5929 = vadd.f32 %v5890, %v5905
      %v5930 = vadd.f32 %v5891, %v5905
      %v5931 = vadd.f32 %v5892, %v5905
      %v5932 = vadd.f32 %v5893, %v5905
      %v5933 = vadd.f32 %v5894, %v5905
      %v5934 = vadd.f32 %v5895, %v5905
      %v5935 = vadd.f32 %v5896, %v5905
      %v5936 = vadd.f32 %v5897, %v5905
      %v5937 = vadd.f32 %v5898, %v5905
      %v5938 = vadd.f32 %v5899, %v5905
      %v5939 = vmax.f32 %v5907, 0.0
      %v5940 = vmax.f32 %v5908, 0.0
      %v5941 = vmax.f32 %v5909, 0.0
      %v5942 = vmax.f32 %v5910, 0.0
      %v5943 = vmax.f32 %v5911, 0.0
      %v5944 = vmax.f32 %v5912, 0.0
      %v5945 = vmax.f32 %v5913, 0.0
      %v5946 = vmax.f32 %v5914, 0.0
      %v5947 = vmax.f32 %v5915, 0.0
      %v5948 = vmax.f32 %v5916, 0.0
      %v5949 = vmax.f32 %v5917, 0.0
      %v5950 = vmax.f32 %v5918, 0.0
      %v5951 = vmax.f32 %v5919, 0.0
      %v5952 = vmax.f32 %v5920, 0.0
      %v5953 = vmax.f32 %v5921, 0.0
      %v5954 = vmax.f32 %v5922, 0.0
      %v5955 = vmax.f32 %v5923, 0.0
      %v5956 = vmax.f32 %v5924, 0.0
      %v5957 = vmax.f32 %v5925, 0.0
      %v5958 = vmax.f32 %v5926, 0.0
      %v5959 = vmax.f32 %v5927, 0.0
      %v5960 = vmax.f32 %v5928, 0.0
      %v5961 = vmax.f32 %v5929, 0.0
      %v5962 = vmax.f32 %v5930, 0.0
      %v5963 = vmax.f32 %v5931, 0.0
      %v5964 = vmax.f32 %v5932, 0.0
      %v5965 = vmax.f32 %v5933, 0.0
      %v5966 = vmax.f32 %v5934, 0.0
      %v5967 = vmax.f32 %v5935, 0.0
      %v5968 = vmax.f32 %v5936, 0.0
      %v5969 = vmax.f32 %v5937, 0.0
      %v5970 = vmax.f32 %v5938, 0.0
      %5971 = vst [vmem:[%s278] sm:$0xff] %v5939
      %5972 = vst [vmem:[%s278 + $0x8] sm:$0xff] %v5940
      %5973 = vst [vmem:[%s278 + $0x10] sm:$0xff] %v5941
      %5974 = vst [vmem:[%s278 + $0x18] sm:$0xff] %v5942
      %5975 = vst [vmem:[%s278 + $0x20] sm:$0xff] %v5943
      %5976 = vst [vmem:[%s278 + $0x28] sm:$0xff] %v5944
      %5977 = vst [vmem:[%s278 + $0x30] sm:$0xff] %v5945
      %5978 = vst [vmem:[%s278 + $0x38] sm:$0xff] %v5946
      %5979 = vst [vmem:[%s278 + $0x40] sm:$0xff] %v5947
      %5980 = vst [vmem:[%s278 + $0x48] sm:$0xff] %v5948
      %5981 = vst [vmem:[%s278 + $0x50] sm:$0xff] %v5949
      %5982 = vst [vmem:[%s278 + $0x58] sm:$0xff] %v5950
      %5983 = vst [vmem:[%s278 + $0x60] sm:$0xff] %v5951
      %5984 = vst [vmem:[%s278 + $0x68] sm:$0xff] %v5952
      %5985 = vst [vmem:[%s278 + $0x70] sm:$0xff] %v5953
      %5986 = vst [vmem:[%s278 + $0x78] sm:$0xff] %v5954
      %5987 = vst [vmem:[%s278 + $0x80] sm:$0xff] %v5955
      %5988 = vst [vmem:[%s278 + $0x88] sm:$0xff] %v5956
      %5989 = vst [vmem:[%s278 + $0x90] sm:$0xff] %v5957
      %5990 = vst [vmem:[%s278 + $0x98] sm:$0xff] %v5958
      %5991 = vst [vmem:[%s278 + $0xa0] sm:$0xff] %v5959
      %5992 = vst [vmem:[%s278 + $0xa8] sm:$0xff] %v5960
      %5993 = vst [vmem:[%s278 + $0xb0] sm:$0xff] %v5961
      %5994 = vst [vmem:[%s278 + $0xb8] sm:$0xff] %v5962
      %5995 = vst [vmem:[%s278 + $0xc0] sm:$0xff] %v5963
      %5996 = vst [vmem:[%s278 + $0xc8] sm:$0xff] %v5964
      %5997 = vst [vmem:[%s278 + $0xd0] sm:$0xff] %v5965
      %5998 = vst [vmem:[%s278 + $0xd8] sm:$0xff] %v5966
      %5999 = vst [vmem:[%s278 + $0xe0] sm:$0xff] %v5967
      %6000 = vst [vmem:[%s278 + $0xe8] sm:$0xff] %v5968
      %6001 = vst [vmem:[%s278 + $0xf0] sm:$0xff] %v5969
      %6002 = vst [vmem:[%s278 + $0xf8] sm:$0xff] %v5970
      %p6003 = scmp.lt.s32.totalorder %s18, 1
      %s6004 = scalar_select %p6003, %s18, 1
      %s6005 = smul.addr %s6004, 32
      %s6006 = smul.addr %s6005, 8
      %s6007 = scalar_lea.vmem %s7, %s6006
      // Predicated region
      $region49: #{bottleneck_forward.1} parent=47 // pred_check
        %p6008 = pneg %p188
      $region50: #{bottleneck_forward.1} parent=47 // pred_check_branch
        %6010 = sbr.rel (%p6008) target = $region52
      $region51: #{bottleneck_forward.1} parent=47 // pred_region
        _
      $region52: #{bottleneck_forward.1} parent=47 // pred_fallthru
        _
    $region48: #{bottleneck_forward.1} parent=5 // pred_fallthru
      _
    %p6011 = scmp.le.s32.totalorder 2, %s13
    // Predicated region
    $region53: #{bottleneck_forward.1} parent=5 // pred_check
      %p6012 = pneg %p6011
    $region54: #{bottleneck_forward.1} parent=5 // pred_check_branch
      %6014 = sbr.rel (%p6012) target = $region56
    $region55: #{bottleneck_forward.1} parent=5 // pred_region
      %s6015 = ssub.s32 %s13, 2
      // Predicated region
      $region57: #{bottleneck_forward.1} parent=55 // pred_check
        %p6016 = pneg %p194
      $region58: #{bottleneck_forward.1} parent=55 // pred_check_branch
        %6018 = sbr.rel (%p6016) target = $region60
      $region59: #{bottleneck_forward.1} parent=55 // pred_region
        %p6019 = scmp.lt.s32.totalorder %s19, 1
        %s6020 = scalar_select %p6019, %s19, 1
        %s6021 = smul.addr %s6020, 32
        %s6022 = smul.addr %s6021, 8
        %s6023 = scalar_lea.vmem %s7, %s6022
      $region60: #{bottleneck_forward.1} parent=55 // pred_fallthru
        _
    $region56: #{bottleneck_forward.1} parent=5 // pred_fallthru
      _
  $region6: #{bottleneck_forward.1} parent=0 // loop_footer
    %s17 = sadd.s32 1, %s13
  $region7: #{bottleneck_forward.1} parent=0 // loop_footer_branch
    %12 = sbr.rel target = $region3
  $region8: #{bottleneck_forward.1} parent=0 // loop_exit
    _

</llo_original>
